<compile_context>
chip_gen: v7x
topology: tpu7x:2x2x1
jax: 0.10.0
libtpu: 0.0.40
codegen_flags: <defaults>
</compile_context>

<pallas_src>
import functools

import jax
import jax.numpy as jnp
from jax.experimental import pallas as pl
from jax.experimental.pallas import tpu as pltpu

BN_EPS = 1e-5
NEG_SLOPE = 1e-2
LANE = 128

H1, H2, L1, L2 = 200, 100, 100, 50      # hidden / latent dims of the reference

_VMEM = pl.BlockSpec(memory_space=pltpu.MemorySpace.VMEM)
_SMEM = pl.BlockSpec(memory_space=pltpu.MemorySpace.SMEM)

# 10 BatchNorm dense layers after merging the mu||logvar heads and fc4||fc10:
#   0: fc1        (PD  -> 256) tanh
#   1: fc2        (256 -> 256) tanh
#   2: fc31||fc32 (256 -> 256)       mu @ [0:100], logvar @ [128:228]
#   3: fc4||fc10  (128 -> 384) tanh  h4 @ [0:128),  h10 @ [128:384)
#   4: fc5        (128 -> 128) tanh
#   5: fc61||fc62 (128 -> 128)       mu @ [0:50],  logvar @ [64:114]
#   6: fc7        (128 -> 128) tanh
#   7: fc8        (128 -> 128) tanh
#   8: fc91||fc92 (128 -> 256)       mu @ [0:100], logvar @ [128:228]
#   9: fc11       (256 -> 256) tanh
_WIDTHS = (256, 256, 256, 384, 128, 128, 128, 128, 256, 256)
_TANH = (True, True, False, True, True, False, True, True, False, True)
_NUM_BN = len(_WIDTHS)
_GBW = max(_WIDTHS)                      # gamma/beta slab width

# packed output slab column offsets
_OFF_Z1S, _OFF_Z1, _OFF_Z1F = 0, 256, 384
_OFF_Z2S, _OFF_Z2, _OFF_Z2F = 512, 640, 768
_OFF_PZ1S, _OFF_PDX = 896, 1152
_LD1_COL, _LD2_COL = _OFF_Z1 + 126, _OFF_Z1 + 127   # spare padded lanes of z1


def _rpad(n: int) -> int:
    return ((n + LANE - 1) // LANE) * LANE


# ----------------------------------------------------------------------------
# Fused forward kernel factory.
# ----------------------------------------------------------------------------
def _make_kernel(flow_layers: int, kernel_size: int, PD: int, TB: int):
    inv_n = 1.0 / TB
    FL, KS = flow_layers, kernel_size

    def kernel(inp_ref, eps_ref, gam_ref, bet_ref, *rest):
        w_refs = rest[:_NUM_BN]
        (w12_ref, b12_ref, taps_ref, bias_ref,
         lmbd_ref, logtab_ref, out_ref) = rest[_NUM_BN:]

        lane = jax.lax.broadcasted_iota(jnp.int32, (TB, LANE), 1)

        def bn_dense(x, idx):
            # Linear (bias dropped: it cancels exactly under training-mode BN
            # mean subtraction) + BatchNorm1d (single-pass biased batch stats)
            # [+ tanh].  bf16 MXU operands, all VPU/EUP math in f32.
            wdt = _WIDTHS[idx]
            y = jnp.dot(x.astype(jnp.bfloat16), w_refs[idx][...],
                        preferred_element_type=jnp.float32)
            mean = jnp.sum(y, axis=0, keepdims=True) * inv_n
            ex2 = jnp.sum(y * y, axis=0, keepdims=True) * inv_n
            var = jnp.maximum(ex2 - mean * mean, 0.0)
            g = gam_ref[idx:idx + 1, 0:wdt]
            b = bet_ref[idx:idx + 1, 0:wdt]
            y = (y - mean) * jax.lax.rsqrt(var + BN_EPS) * g + b
            return jnp.tanh(y) if _TANH[idx] else y

        def conv_flow(z, f):
            # K-tap, dilation-1, right-zero-padded conv flow done as shifted
            # adds (independent XLU rolls + VPU FMAs).  lambda == 0 on padded
            # lanes masks roll wrap-around, skip update and logdet there.
            ld_elem = jnp.zeros_like(z)
            for l in range(FL):
                row = f * FL + l
                lm = lmbd_ref[row:row + 1, :]
                w0 = taps_ref[row * KS]
                conv = w0 * z
                for k in range(1, KS):
                    conv = conv + taps_ref[row * KS + k] * pltpu.roll(
                        z, LANE - k, axis=1)
                c = conv + bias_ref[row]
                pos = c >= 0.0
                act = jnp.where(pos, c, NEG_SLOPE * c)
                z = act * lm + z
                # precomputed log|1 + lambda*grad*w0| rows, selected by sign(c)
                ld_elem = ld_elem + jnp.where(
                    pos, logtab_ref[2 * row:2 * row + 1, :],
                    logtab_ref[2 * row + 1:2 * row + 2, :])
            return z, jnp.sum(ld_elem, axis=1, keepdims=True)

        # ---- encode_x (kvs == 0 -> no tau layers) ----
        h1 = bn_dense(inp_ref[...], 0)
        h2 = bn_dense(h1, 1)
        z1_stats = bn_dense(h2, 2)                              # [mu || logvar]
        z1 = (eps_ref[:, 0:LANE] * jnp.exp(0.5 * z1_stats[:, LANE:2 * LANE])
              + z1_stats[:, 0:LANE])
        z1_f, logdet1 = conv_flow(z1, 0)

        # ---- fc4 || fc10 share input z1_f: one matmul + one BN pass ----
        h4_h10 = bn_dense(z1_f, 3)
        h4 = h4_h10[:, 0:LANE]
        h10 = h4_h10[:, LANE:3 * LANE]

        # ---- encode_z1 ----
        h5 = bn_dense(h4, 4)
        z2_stats = bn_dense(h5, 5)              # mu @ [0:50], logvar @ [64:114]
        lv2 = pltpu.roll(z2_stats, 64, axis=1)  # logvar half -> lanes [0:64)
        z2 = jnp.where(lane < 64,
                       eps_ref[:, LANE:2 * LANE] * jnp.exp(0.5 * lv2) + z2_stats,
                       0.0)
        z2_f, logdet2 = conv_flow(z2, 1)

        # ---- decode_z2 ----
        h7 = bn_dense(z2_f, 6)
        h8 = bn_dense(h7, 7)
        pz1_stats = bn_dense(h8, 8)

        # ---- decode_z1 tail (plain Linear fc12) ----
        h11 = bn_dense(h10, 9)
        p_dec_x = jnp.dot(h11.astype(jnp.bfloat16), w12_ref[...],
                          preferred_element_type=jnp.float32) + b12_ref[...]

        # ---- pack everything into one lane-dense output slab ----
        z1_blk = jnp.where(lane == 126, logdet1,
                           jnp.where(lane == 127, logdet2, z1))
        out_ref[:, _OFF_Z1S:_OFF_Z1S + 256] = z1_stats
        out_ref[:, _OFF_Z1:_OFF_Z1 + 128] = z1_blk
        out_ref[:, _OFF_Z1F:_OFF_Z1F + 128] = z1_f
        out_ref[:, _OFF_Z2S:_OFF_Z2S + 128] = z2_stats
        out_ref[:, _OFF_Z2:_OFF_Z2 + 128] = z2
        out_ref[:, _OFF_Z2F:_OFF_Z2F + 128] = z2_f
        out_ref[:, _OFF_PZ1S:_OFF_PZ1S + 256] = pz1_stats
        out_ref[:, _OFF_PDX:_OFF_PDX + PD] = p_dec_x

    return kernel


# ----------------------------------------------------------------------------
# Parameter construction (deterministic, synthetic, lane-padded, bf16 weights).
# ----------------------------------------------------------------------------
def _uniform(key, shape, fan_in):
    b = 1.0 / (fan_in ** 0.5)
    return jax.random.uniform(key, shape, jnp.float32, -b, b)


def _padded_weight(key, in_pad, out_pad, blocks):
    # blocks: list of (col_off, din, dout); real weights occupy rows [0:din].
    W = jnp.zeros((in_pad, out_pad), jnp.float32)
    keys = jax.random.split(key, len(blocks))
    for k, (co, din, dout) in zip(keys, blocks):
        W = W.at[:din, co:co + dout].set(_uniform(k, (din, dout), din))
    return W.astype(jnp.bfloat16)


def _gamma_row(blocks):
    g = jnp.zeros((_GBW,), jnp.float32)
    for co, _, dout in blocks:
        g = g.at[co:co + dout].set(1.0)
    return g


def init_params(key, data_dim, flow_layers=8, kernel_size=5):
    PD = _rpad(data_dim)
    layer_defs = [
        (PD,  256, [(0, data_dim, H1)]),                 # fc1
        (256, 256, [(0, H1, H1)]),                       # fc2
        (256, 256, [(0, H1, L1), (LANE, H1, L1)]),       # fc31 || fc32
        (128, 384, [(0, L1, H2), (LANE, L1, H1)]),       # fc4 || fc10
        (128, 128, [(0, H2, H2)]),                       # fc5
        (128, 128, [(0, H2, L2), (64, H2, L2)]),         # fc61 || fc62
        (128, 128, [(0, L2, H2)]),                       # fc7
        (128, 128, [(0, H2, H2)]),                       # fc8
        (128, 256, [(0, H2, L1), (LANE, H2, L1)]),       # fc91 || fc92
        (256, 256, [(0, H1, H1)]),                       # fc11
    ]
    keys = jax.random.split(key, _NUM_BN + 3)
    Ws = [_padded_weight(keys[i], ip, op, blks)
          for i, (ip, op, blks) in enumerate(layer_defs)]
    gamma = jnp.stack([_gamma_row(blks) for (_, _, blks) in layer_defs])
    beta = jnp.zeros((_NUM_BN, _GBW), jnp.float32)

    W12 = jnp.zeros((256, PD), jnp.float32).at[:H1, :data_dim].set(
        _uniform(keys[_NUM_BN], (H1, data_dim), H1)).astype(jnp.bfloat16)
    b12 = jnp.zeros((1, PD), jnp.float32).at[:, :data_dim].set(
        _uniform(keys[_NUM_BN + 1], (1, data_dim), H1))

    bound = 1.0 / (kernel_size ** 0.5)
    kt, kb, kl = jax.random.split(keys[_NUM_BN + 2], 3)
    taps = jax.random.uniform(kt, (2, flow_layers, kernel_size), jnp.float32,
                              -bound, bound)
    fbias = jax.random.uniform(kb, (2, flow_layers), jnp.float32, -bound, bound)
    kl1, kl2 = jax.random.split(kl)
    lmbd = jnp.zeros((2, flow_layers, LANE), jnp.float32)
    lmbd = lmbd.at[0, :, :L1].set(jax.random.normal(kl1, (flow_layers, L1)))
    lmbd = lmbd.at[1, :, :L2].set(jax.random.normal(kl2, (flow_layers, L2)))
    return {"W": Ws, "gamma": gamma, "beta": beta, "W12": W12, "b12": b12,
            "taps": taps, "fbias": fbias, "lmbd": lmbd}


# ----------------------------------------------------------------------------
# Forward pass (mirrors Model.forward with defaults kvs=0, noise_dim=0).
# ----------------------------------------------------------------------------
@functools.partial(jax.jit,
                   static_argnames=("data_dim", "TIW", "flow_layers", "kernel_size"))
def forward(params, x, key, *, data_dim, TIW, flow_layers=8, kernel_size=5):
    PD = _rpad(data_dim)
    x = x.reshape(-1, data_dim).astype(jnp.float32)
    B = x.shape[0]
    TB = TIW * B

    # x.repeat(TIW, 1), lane-padded to PD
    xp = jnp.zeros((B, PD), jnp.float32).at[:, :data_dim].set(x)
    inp = jnp.tile(xp, (TIW, 1))

    # reparametrization noise, packed [eps1(128) || eps2(128)], zero in pads
    k1, k2 = jax.random.split(key)
    eps = jnp.zeros((TB, 2 * LANE), jnp.float32)
    eps = eps.at[:, :L1].set(jax.random.normal(k1, (TB, L1), jnp.float32))
    eps = eps.at[:, LANE:LANE + L2].set(jax.random.normal(k2, (TB, L2), jnp.float32))

    # flow scalars (SMEM) + per-layer logdet lookup rows (VMEM, precomputed)
    taps_flat = params["taps"].reshape(-1)
    bias_flat = params["fbias"].reshape(-1)
    lmbd_flat = params["lmbd"].reshape(2 * flow_layers, LANE)
    w0 = params["taps"][:, :, 0:1]                       # (2, FL, 1)
    log_pos = jnp.log(jnp.abs(1.0 + params["lmbd"] * w0))
    log_neg = jnp.log(jnp.abs(1.0 + params["lmbd"] * w0 * NEG_SLOPE))
    logtab = jnp.stack([log_pos, log_neg], axis=2).reshape(4 * flow_layers, LANE)

    out_w = _OFF_PDX + PD
    slab = pl.pallas_call(
        _make_kernel(flow_layers, kernel_size, PD, TB),
        out_shape=jax.ShapeDtypeStruct((TB, out_w), jnp.float32),
        in_specs=([_VMEM] * (4 + _NUM_BN + 2) + [_SMEM, _SMEM, _VMEM, _VMEM]),
        out_specs=_VMEM,
    )(inp, eps, params["gamma"], params["beta"], *params["W"],
      params["W12"], params["b12"], taps_flat, bias_flat, lmbd_flat, logtab)

    def rows3(a):
        return a.reshape(TIW, B, a.shape[-1])

    z1_mu = rows3(slab[:, 0:L1])
    z1_logvar = rows3(slab[:, LANE:LANE + L1])
    z1 = rows3(slab[:, _OFF_Z1:_OFF_Z1 + L1])
    z1_f = rows3(slab[:, _OFF_Z1F:_OFF_Z1F + L1])
    logdet1 = slab[:, _LD1_COL].reshape(TIW, B)
    z2_mu = rows3(slab[:, _OFF_Z2S:_OFF_Z2S + L2])
    z2_logvar = rows3(slab[:, _OFF_Z2S + 64:_OFF_Z2S + 64 + L2])
    z2 = rows3(slab[:, _OFF_Z2:_OFF_Z2 + L2])
    z2_f = rows3(slab[:, _OFF_Z2F:_OFF_Z2F + L2])
    logdet2 = slab[:, _LD2_COL].reshape(TIW, B)
    p_z1_mu = rows3(slab[:, _OFF_PZ1S:_OFF_PZ1S + L1])
    p_z1_logvar = rows3(slab[:, _OFF_PZ1S + LANE:_OFF_PZ1S + LANE + L1])
    p_dec_x = rows3(slab[:, _OFF_PDX:_OFF_PDX + data_dim])

    return (z1_mu, z1_logvar, z1, z1_f, logdet1,
            z2_mu, z2_logvar, z2, z2_f, logdet2,
            p_z1_mu, p_z1_logvar, p_dec_x)


# ----------------------------------------------------------------------------
if __name__ == "__main__":
    DATA_DIM = 64          # Model(data_dim=64, kvs=0, noise_dim=0, batchnorm=True,
    FLOW_LAYERS = 8        #       flowtype='convflow', flow_layers=8, kernel_size=5)
    KERNEL_SIZE = 5
    BATCH = 4
    TIW = 2

    root = jax.random.PRNGKey(0)
    k_param, k_x, k_noise = jax.random.split(root, 3)

    params = init_params(k_param, DATA_DIM, FLOW_LAYERS, KERNEL_SIZE)
    x = jax.random.normal(k_x, (BATCH, 1, 8, 8), jnp.float32)   # viewed as (-1, 64)

    outs = forward(params, x, k_noise, data_dim=DATA_DIM, TIW=TIW,
                   flow_layers=FLOW_LAYERS, kernel_size=KERNEL_SIZE)
    outs = jax.block_until_ready(outs)

    # sanity checks: shapes + finiteness
    assert outs[0].shape == (TIW, BATCH, 100)        # z1_mu
    assert outs[4].shape == (TIW, BATCH)             # logdet1
    assert outs[8].shape == (TIW, BATCH, 50)         # z2_f
    assert outs[12].shape == (TIW, BATCH, DATA_DIM)  # p_dec_x
    assert all(bool(jnp.all(jnp.isfinite(t))) for t in outs)
    print("KERNEL_OK")
</pallas_src>

<mosaic_0001>
module attributes {stable_mosaic.version = 11 : i64} {
  func.func @kernel(%arg0: memref<8x128xf32, #tpu.memory_space<vmem>>, %arg1: memref<8x256xf32, #tpu.memory_space<vmem>>, %arg2: memref<10x384xf32, #tpu.memory_space<vmem>>, %arg3: memref<10x384xf32, #tpu.memory_space<vmem>>, %arg4: memref<128x256xbf16, #tpu.memory_space<vmem>>, %arg5: memref<256x256xbf16, #tpu.memory_space<vmem>>, %arg6: memref<256x256xbf16, #tpu.memory_space<vmem>>, %arg7: memref<128x384xbf16, #tpu.memory_space<vmem>>, %arg8: memref<128x128xbf16, #tpu.memory_space<vmem>>, %arg9: memref<128x128xbf16, #tpu.memory_space<vmem>>, %arg10: memref<128x128xbf16, #tpu.memory_space<vmem>>, %arg11: memref<128x128xbf16, #tpu.memory_space<vmem>>, %arg12: memref<128x256xbf16, #tpu.memory_space<vmem>>, %arg13: memref<256x256xbf16, #tpu.memory_space<vmem>>, %arg14: memref<256x128xbf16, #tpu.memory_space<vmem>>, %arg15: memref<1x128xf32, #tpu.memory_space<vmem>>, %arg16: memref<80xf32, #tpu.memory_space<smem>>, %arg17: memref<16xf32, #tpu.memory_space<smem>>, %arg18: memref<16x128xf32, #tpu.memory_space<vmem>>, %arg19: memref<32x128xf32, #tpu.memory_space<vmem>>, %arg20: memref<8x1280xf32, #tpu.memory_space<vmem>>) attributes {dimension_semantics = [], scalar_prefetch = 0 : i64, scratch_operands = 0 : i64, tpu.core_type = #tpu.core_type<tc>} {
    %0 = tpu.iota {dimensions = array<i32: 1>} : vector<8x128xi32>
    %c0 = arith.constant 0 : index
    %c0_0 = arith.constant 0 : index
    %1 = vector.load %arg0[%c0, %c0_0] : memref<8x128xf32, #tpu.memory_space<vmem>>, vector<8x128xf32>
    %2 = arith.truncf %1 : vector<8x128xf32> to vector<8x128xbf16>
    %c0_1 = arith.constant 0 : index
    %c0_2 = arith.constant 0 : index
    %3 = vector.load %arg4[%c0_1, %c0_2] : memref<128x256xbf16, #tpu.memory_space<vmem>>, vector<128x256xbf16>
    %cst = arith.constant dense<0.000000e+00> : vector<8x256xf32>
    %4 = tpu.matmul %2, %3, %cst {dimension_numbers = #tpu.dot_dimension_numbers<[1], [0], [0], [1], [0, 0, 1, 1], [], []>} : vector<8x128xbf16>, vector<128x256xbf16>, vector<8x256xf32> -> vector<8x256xf32>
    %cst_3 = arith.constant dense<0.000000e+00> : vector<256xf32>
    %5 = vector.multi_reduction <add>, %4, %cst_3 [0] : vector<8x256xf32> to vector<256xf32>
    %6 = vector.shape_cast %5 : vector<256xf32> to vector<1x256xf32>
    %cst_4 = arith.constant 1.250000e-01 : f32
    %7 = vector.broadcast %cst_4 : f32 to vector<1x256xf32>
    %8 = arith.mulf %6, %7 : vector<1x256xf32>
    %9 = arith.mulf %4, %4 : vector<8x256xf32>
    %cst_5 = arith.constant dense<0.000000e+00> : vector<256xf32>
    %10 = vector.multi_reduction <add>, %9, %cst_5 [0] : vector<8x256xf32> to vector<256xf32>
    %11 = vector.shape_cast %10 : vector<256xf32> to vector<1x256xf32>
    %cst_6 = arith.constant 1.250000e-01 : f32
    %12 = vector.broadcast %cst_6 : f32 to vector<1x256xf32>
    %13 = arith.mulf %11, %12 : vector<1x256xf32>
    %14 = arith.mulf %8, %8 : vector<1x256xf32>
    %15 = arith.subf %13, %14 : vector<1x256xf32>
    %cst_7 = arith.constant 0.000000e+00 : f32
    %16 = vector.broadcast %cst_7 : f32 to vector<1x256xf32>
    %17 = arith.maximumf %15, %16 : vector<1x256xf32>
    %c0_8 = arith.constant 0 : index
    %c0_9 = arith.constant 0 : index
    %18 = vector.load %arg2[%c0_8, %c0_9] : memref<10x384xf32, #tpu.memory_space<vmem>>, vector<1x256xf32>
    %c0_10 = arith.constant 0 : index
    %c0_11 = arith.constant 0 : index
    %19 = vector.load %arg3[%c0_10, %c0_11] : memref<10x384xf32, #tpu.memory_space<vmem>>, vector<1x256xf32>
    %20 = vector.broadcast %8 : vector<1x256xf32> to vector<8x256xf32>
    %21 = arith.subf %4, %20 : vector<8x256xf32>
    %cst_12 = arith.constant 9.99999974E-6 : f32
    %22 = vector.broadcast %cst_12 : f32 to vector<1x256xf32>
    %23 = arith.addf %17, %22 : vector<1x256xf32>
    %24 = math.rsqrt %23 : vector<1x256xf32>
    %25 = vector.broadcast %24 : vector<1x256xf32> to vector<8x256xf32>
    %26 = arith.mulf %21, %25 : vector<8x256xf32>
    %27 = vector.broadcast %18 : vector<1x256xf32> to vector<8x256xf32>
    %28 = arith.mulf %26, %27 : vector<8x256xf32>
    %29 = vector.broadcast %19 : vector<1x256xf32> to vector<8x256xf32>
    %30 = arith.addf %28, %29 : vector<8x256xf32>
    %31 = math.tanh %30 : vector<8x256xf32>
    %32 = arith.truncf %31 : vector<8x256xf32> to vector<8x256xbf16>
    %c0_13 = arith.constant 0 : index
    %c0_14 = arith.constant 0 : index
    %33 = vector.load %arg5[%c0_13, %c0_14] : memref<256x256xbf16, #tpu.memory_space<vmem>>, vector<256x256xbf16>
    %cst_15 = arith.constant dense<0.000000e+00> : vector<8x256xf32>
    %34 = tpu.matmul %32, %33, %cst_15 {dimension_numbers = #tpu.dot_dimension_numbers<[1], [0], [0], [1], [0, 0, 1, 1], [], []>} : vector<8x256xbf16>, vector<256x256xbf16>, vector<8x256xf32> -> vector<8x256xf32>
    %cst_16 = arith.constant dense<0.000000e+00> : vector<256xf32>
    %35 = vector.multi_reduction <add>, %34, %cst_16 [0] : vector<8x256xf32> to vector<256xf32>
    %36 = vector.shape_cast %35 : vector<256xf32> to vector<1x256xf32>
    %cst_17 = arith.constant 1.250000e-01 : f32
    %37 = vector.broadcast %cst_17 : f32 to vector<1x256xf32>
    %38 = arith.mulf %36, %37 : vector<1x256xf32>
    %39 = arith.mulf %34, %34 : vector<8x256xf32>
    %cst_18 = arith.constant dense<0.000000e+00> : vector<256xf32>
    %40 = vector.multi_reduction <add>, %39, %cst_18 [0] : vector<8x256xf32> to vector<256xf32>
    %41 = vector.shape_cast %40 : vector<256xf32> to vector<1x256xf32>
    %cst_19 = arith.constant 1.250000e-01 : f32
    %42 = vector.broadcast %cst_19 : f32 to vector<1x256xf32>
    %43 = arith.mulf %41, %42 : vector<1x256xf32>
    %44 = arith.mulf %38, %38 : vector<1x256xf32>
    %45 = arith.subf %43, %44 : vector<1x256xf32>
    %cst_20 = arith.constant 0.000000e+00 : f32
    %46 = vector.broadcast %cst_20 : f32 to vector<1x256xf32>
    %47 = arith.maximumf %45, %46 : vector<1x256xf32>
    %c1 = arith.constant 1 : index
    %c0_21 = arith.constant 0 : index
    %48 = vector.load %arg2[%c1, %c0_21] : memref<10x384xf32, #tpu.memory_space<vmem>>, vector<1x256xf32>
    %c1_22 = arith.constant 1 : index
    %c0_23 = arith.constant 0 : index
    %49 = vector.load %arg3[%c1_22, %c0_23] : memref<10x384xf32, #tpu.memory_space<vmem>>, vector<1x256xf32>
    %50 = vector.broadcast %38 : vector<1x256xf32> to vector<8x256xf32>
    %51 = arith.subf %34, %50 : vector<8x256xf32>
    %cst_24 = arith.constant 9.99999974E-6 : f32
    %52 = vector.broadcast %cst_24 : f32 to vector<1x256xf32>
    %53 = arith.addf %47, %52 : vector<1x256xf32>
    %54 = math.rsqrt %53 : vector<1x256xf32>
    %55 = vector.broadcast %54 : vector<1x256xf32> to vector<8x256xf32>
    %56 = arith.mulf %51, %55 : vector<8x256xf32>
    %57 = vector.broadcast %48 : vector<1x256xf32> to vector<8x256xf32>
    %58 = arith.mulf %56, %57 : vector<8x256xf32>
    %59 = vector.broadcast %49 : vector<1x256xf32> to vector<8x256xf32>
    %60 = arith.addf %58, %59 : vector<8x256xf32>
    %61 = math.tanh %60 : vector<8x256xf32>
    %62 = arith.truncf %61 : vector<8x256xf32> to vector<8x256xbf16>
    %c0_25 = arith.constant 0 : index
    %c0_26 = arith.constant 0 : index
    %63 = vector.load %arg6[%c0_25, %c0_26] : memref<256x256xbf16, #tpu.memory_space<vmem>>, vector<256x256xbf16>
    %cst_27 = arith.constant dense<0.000000e+00> : vector<8x256xf32>
    %64 = tpu.matmul %62, %63, %cst_27 {dimension_numbers = #tpu.dot_dimension_numbers<[1], [0], [0], [1], [0, 0, 1, 1], [], []>} : vector<8x256xbf16>, vector<256x256xbf16>, vector<8x256xf32> -> vector<8x256xf32>
    %cst_28 = arith.constant dense<0.000000e+00> : vector<256xf32>
    %65 = vector.multi_reduction <add>, %64, %cst_28 [0] : vector<8x256xf32> to vector<256xf32>
    %66 = vector.shape_cast %65 : vector<256xf32> to vector<1x256xf32>
    %cst_29 = arith.constant 1.250000e-01 : f32
    %67 = vector.broadcast %cst_29 : f32 to vector<1x256xf32>
    %68 = arith.mulf %66, %67 : vector<1x256xf32>
    %69 = arith.mulf %64, %64 : vector<8x256xf32>
    %cst_30 = arith.constant dense<0.000000e+00> : vector<256xf32>
    %70 = vector.multi_reduction <add>, %69, %cst_30 [0] : vector<8x256xf32> to vector<256xf32>
    %71 = vector.shape_cast %70 : vector<256xf32> to vector<1x256xf32>
    %cst_31 = arith.constant 1.250000e-01 : f32
    %72 = vector.broadcast %cst_31 : f32 to vector<1x256xf32>
    %73 = arith.mulf %71, %72 : vector<1x256xf32>
    %74 = arith.mulf %68, %68 : vector<1x256xf32>
    %75 = arith.subf %73, %74 : vector<1x256xf32>
    %cst_32 = arith.constant 0.000000e+00 : f32
    %76 = vector.broadcast %cst_32 : f32 to vector<1x256xf32>
    %77 = arith.maximumf %75, %76 : vector<1x256xf32>
    %c2 = arith.constant 2 : index
    %c0_33 = arith.constant 0 : index
    %78 = vector.load %arg2[%c2, %c0_33] : memref<10x384xf32, #tpu.memory_space<vmem>>, vector<1x256xf32>
    %c2_34 = arith.constant 2 : index
    %c0_35 = arith.constant 0 : index
    %79 = vector.load %arg3[%c2_34, %c0_35] : memref<10x384xf32, #tpu.memory_space<vmem>>, vector<1x256xf32>
    %80 = vector.broadcast %68 : vector<1x256xf32> to vector<8x256xf32>
    %81 = arith.subf %64, %80 : vector<8x256xf32>
    %cst_36 = arith.constant 9.99999974E-6 : f32
    %82 = vector.broadcast %cst_36 : f32 to vector<1x256xf32>
    %83 = arith.addf %77, %82 : vector<1x256xf32>
    %84 = math.rsqrt %83 : vector<1x256xf32>
    %85 = vector.broadcast %84 : vector<1x256xf32> to vector<8x256xf32>
    %86 = arith.mulf %81, %85 : vector<8x256xf32>
    %87 = vector.broadcast %78 : vector<1x256xf32> to vector<8x256xf32>
    %88 = arith.mulf %86, %87 : vector<8x256xf32>
    %89 = vector.broadcast %79 : vector<1x256xf32> to vector<8x256xf32>
    %90 = arith.addf %88, %89 : vector<8x256xf32>
    %c0_37 = arith.constant 0 : index
    %c0_38 = arith.constant 0 : index
    %91 = vector.load %arg1[%c0_37, %c0_38] : memref<8x256xf32, #tpu.memory_space<vmem>>, vector<8x128xf32>
    %92 = vector.extract_strided_slice %90 {offsets = [0, 128], sizes = [8, 128], strides = [1, 1]} : vector<8x256xf32> to vector<8x128xf32>
    %cst_39 = arith.constant 5.000000e-01 : f32
    %93 = vector.broadcast %cst_39 : f32 to vector<8x128xf32>
    %94 = arith.mulf %93, %92 : vector<8x128xf32>
    %95 = math.exp %94 : vector<8x128xf32>
    %96 = arith.mulf %91, %95 : vector<8x128xf32>
    %97 = vector.extract_strided_slice %90 {offsets = [0, 0], sizes = [8, 128], strides = [1, 1]} : vector<8x256xf32> to vector<8x128xf32>
    %98 = arith.addf %96, %97 : vector<8x128xf32>
    %cst_40 = arith.constant 0.000000e+00 : f32
    %99 = vector.broadcast %cst_40 : f32 to vector<8x128xf32>
    %c0_41 = arith.constant 0 : index
    %c0_42 = arith.constant 0 : index
    %100 = vector.load %arg18[%c0_41, %c0_42] : memref<16x128xf32, #tpu.memory_space<vmem>>, vector<1x128xf32>
    %c0_43 = arith.constant 0 : index
    %101 = memref.load %arg16[%c0_43] : memref<80xf32, #tpu.memory_space<smem>>
    %102 = vector.broadcast %101 : f32 to vector<8x128xf32>
    %103 = arith.mulf %102, %98 : vector<8x128xf32>
    %c1_44 = arith.constant 1 : index
    %104 = memref.load %arg16[%c1_44] : memref<80xf32, #tpu.memory_space<smem>>
    %c127_i32 = arith.constant 127 : i32
    %105 = tpu.dynamic_rotate %98 by %c127_i32 dim 1 : vector<8x128xf32>, i32 -> vector<8x128xf32>
    %106 = vector.broadcast %104 : f32 to vector<8x128xf32>
    %107 = arith.mulf %106, %105 : vector<8x128xf32>
    %108 = arith.addf %103, %107 : vector<8x128xf32>
    %c2_45 = arith.constant 2 : index
    %109 = memref.load %arg16[%c2_45] : memref<80xf32, #tpu.memory_space<smem>>
    %c126_i32 = arith.constant 126 : i32
    %110 = tpu.dynamic_rotate %98 by %c126_i32 dim 1 : vector<8x128xf32>, i32 -> vector<8x128xf32>
    %111 = vector.broadcast %109 : f32 to vector<8x128xf32>
    %112 = arith.mulf %111, %110 : vector<8x128xf32>
    %113 = arith.addf %108, %112 : vector<8x128xf32>
    %c3 = arith.constant 3 : index
    %114 = memref.load %arg16[%c3] : memref<80xf32, #tpu.memory_space<smem>>
    %c125_i32 = arith.constant 125 : i32
    %115 = tpu.dynamic_rotate %98 by %c125_i32 dim 1 : vector<8x128xf32>, i32 -> vector<8x128xf32>
    %116 = vector.broadcast %114 : f32 to vector<8x128xf32>
    %117 = arith.mulf %116, %115 : vector<8x128xf32>
    %118 = arith.addf %113, %117 : vector<8x128xf32>
    %c4 = arith.constant 4 : index
    %119 = memref.load %arg16[%c4] : memref<80xf32, #tpu.memory_space<smem>>
    %c124_i32 = arith.constant 124 : i32
    %120 = tpu.dynamic_rotate %98 by %c124_i32 dim 1 : vector<8x128xf32>, i32 -> vector<8x128xf32>
    %121 = vector.broadcast %119 : f32 to vector<8x128xf32>
    %122 = arith.mulf %121, %120 : vector<8x128xf32>
    %123 = arith.addf %118, %122 : vector<8x128xf32>
    %c0_46 = arith.constant 0 : index
    %124 = memref.load %arg17[%c0_46] : memref<16xf32, #tpu.memory_space<smem>>
    %125 = vector.broadcast %124 : f32 to vector<8x128xf32>
    %126 = arith.addf %123, %125 : vector<8x128xf32>
    %cst_47 = arith.constant 0.000000e+00 : f32
    %127 = vector.broadcast %cst_47 : f32 to vector<8x128xf32>
    %128 = arith.cmpf oge, %126, %127 : vector<8x128xf32>
    %cst_48 = arith.constant 0.00999999977 : f32
    %129 = vector.broadcast %cst_48 : f32 to vector<8x128xf32>
    %130 = arith.mulf %129, %126 : vector<8x128xf32>
    %131 = arith.select %128, %126, %130 : vector<8x128xi1>, vector<8x128xf32>
    %132 = vector.broadcast %100 : vector<1x128xf32> to vector<8x128xf32>
    %133 = arith.mulf %131, %132 : vector<8x128xf32>
    %134 = arith.addf %133, %98 : vector<8x128xf32>
    %c0_49 = arith.constant 0 : index
    %c0_50 = arith.constant 0 : index
    %135 = vector.load %arg19[%c0_49, %c0_50] : memref<32x128xf32, #tpu.memory_space<vmem>>, vector<1x128xf32>
    %c1_51 = arith.constant 1 : index
    %c0_52 = arith.constant 0 : index
    %136 = vector.load %arg19[%c1_51, %c0_52] : memref<32x128xf32, #tpu.memory_space<vmem>>, vector<1x128xf32>
    %137 = vector.shape_cast %135 : vector<1x128xf32> to vector<1x128xf32>
    %138 = vector.broadcast %137 : vector<1x128xf32> to vector<8x128xf32>
    %139 = vector.shape_cast %136 : vector<1x128xf32> to vector<1x128xf32>
    %140 = vector.broadcast %139 : vector<1x128xf32> to vector<8x128xf32>
    %141 = arith.select %128, %138, %140 : vector<8x128xi1>, vector<8x128xf32>
    %142 = arith.addf %99, %141 : vector<8x128xf32>
    %c1_53 = arith.constant 1 : index
    %c0_54 = arith.constant 0 : index
    %143 = vector.load %arg18[%c1_53, %c0_54] : memref<16x128xf32, #tpu.memory_space<vmem>>, vector<1x128xf32>
    %c5 = arith.constant 5 : index
    %144 = memref.load %arg16[%c5] : memref<80xf32, #tpu.memory_space<smem>>
    %145 = vector.broadcast %144 : f32 to vector<8x128xf32>
    %146 = arith.mulf %145, %134 : vector<8x128xf32>
    %c6 = arith.constant 6 : index
    %147 = memref.load %arg16[%c6] : memref<80xf32, #tpu.memory_space<smem>>
    %c127_i32_55 = arith.constant 127 : i32
    %148 = tpu.dynamic_rotate %134 by %c127_i32_55 dim 1 : vector<8x128xf32>, i32 -> vector<8x128xf32>
    %149 = vector.broadcast %147 : f32 to vector<8x128xf32>
    %150 = arith.mulf %149, %148 : vector<8x128xf32>
    %151 = arith.addf %146, %150 : vector<8x128xf32>
    %c7 = arith.constant 7 : index
    %152 = memref.load %arg16[%c7] : memref<80xf32, #tpu.memory_space<smem>>
    %c126_i32_56 = arith.constant 126 : i32
    %153 = tpu.dynamic_rotate %134 by %c126_i32_56 dim 1 : vector<8x128xf32>, i32 -> vector<8x128xf32>
    %154 = vector.broadcast %152 : f32 to vector<8x128xf32>
    %155 = arith.mulf %154, %153 : vector<8x128xf32>
    %156 = arith.addf %151, %155 : vector<8x128xf32>
    %c8 = arith.constant 8 : index
    %157 = memref.load %arg16[%c8] : memref<80xf32, #tpu.memory_space<smem>>
    %c125_i32_57 = arith.constant 125 : i32
    %158 = tpu.dynamic_rotate %134 by %c125_i32_57 dim 1 : vector<8x128xf32>, i32 -> vector<8x128xf32>
    %159 = vector.broadcast %157 : f32 to vector<8x128xf32>
    %160 = arith.mulf %159, %158 : vector<8x128xf32>
    %161 = arith.addf %156, %160 : vector<8x128xf32>
    %c9 = arith.constant 9 : index
    %162 = memref.load %arg16[%c9] : memref<80xf32, #tpu.memory_space<smem>>
    %c124_i32_58 = arith.constant 124 : i32
    %163 = tpu.dynamic_rotate %134 by %c124_i32_58 dim 1 : vector<8x128xf32>, i32 -> vector<8x128xf32>
    %164 = vector.broadcast %162 : f32 to vector<8x128xf32>
    %165 = arith.mulf %164, %163 : vector<8x128xf32>
    %166 = arith.addf %161, %165 : vector<8x128xf32>
    %c1_59 = arith.constant 1 : index
    %167 = memref.load %arg17[%c1_59] : memref<16xf32, #tpu.memory_space<smem>>
    %168 = vector.broadcast %167 : f32 to vector<8x128xf32>
    %169 = arith.addf %166, %168 : vector<8x128xf32>
    %cst_60 = arith.constant 0.000000e+00 : f32
    %170 = vector.broadcast %cst_60 : f32 to vector<8x128xf32>
    %171 = arith.cmpf oge, %169, %170 : vector<8x128xf32>
    %cst_61 = arith.constant 0.00999999977 : f32
    %172 = vector.broadcast %cst_61 : f32 to vector<8x128xf32>
    %173 = arith.mulf %172, %169 : vector<8x128xf32>
    %174 = arith.select %171, %169, %173 : vector<8x128xi1>, vector<8x128xf32>
    %175 = vector.broadcast %143 : vector<1x128xf32> to vector<8x128xf32>
    %176 = arith.mulf %174, %175 : vector<8x128xf32>
    %177 = arith.addf %176, %134 : vector<8x128xf32>
    %c2_62 = arith.constant 2 : index
    %c0_63 = arith.constant 0 : index
    %178 = vector.load %arg19[%c2_62, %c0_63] : memref<32x128xf32, #tpu.memory_space<vmem>>, vector<1x128xf32>
    %c3_64 = arith.constant 3 : index
    %c0_65 = arith.constant 0 : index
    %179 = vector.load %arg19[%c3_64, %c0_65] : memref<32x128xf32, #tpu.memory_space<vmem>>, vector<1x128xf32>
    %180 = vector.shape_cast %178 : vector<1x128xf32> to vector<1x128xf32>
    %181 = vector.broadcast %180 : vector<1x128xf32> to vector<8x128xf32>
    %182 = vector.shape_cast %179 : vector<1x128xf32> to vector<1x128xf32>
    %183 = vector.broadcast %182 : vector<1x128xf32> to vector<8x128xf32>
    %184 = arith.select %171, %181, %183 : vector<8x128xi1>, vector<8x128xf32>
    %185 = arith.addf %142, %184 : vector<8x128xf32>
    %c2_66 = arith.constant 2 : index
    %c0_67 = arith.constant 0 : index
    %186 = vector.load %arg18[%c2_66, %c0_67] : memref<16x128xf32, #tpu.memory_space<vmem>>, vector<1x128xf32>
    %c10 = arith.constant 10 : index
    %187 = memref.load %arg16[%c10] : memref<80xf32, #tpu.memory_space<smem>>
    %188 = vector.broadcast %187 : f32 to vector<8x128xf32>
    %189 = arith.mulf %188, %177 : vector<8x128xf32>
    %c11 = arith.constant 11 : index
    %190 = memref.load %arg16[%c11] : memref<80xf32, #tpu.memory_space<smem>>
    %c127_i32_68 = arith.constant 127 : i32
    %191 = tpu.dynamic_rotate %177 by %c127_i32_68 dim 1 : vector<8x128xf32>, i32 -> vector<8x128xf32>
    %192 = vector.broadcast %190 : f32 to vector<8x128xf32>
    %193 = arith.mulf %192, %191 : vector<8x128xf32>
    %194 = arith.addf %189, %193 : vector<8x128xf32>
    %c12 = arith.constant 12 : index
    %195 = memref.load %arg16[%c12] : memref<80xf32, #tpu.memory_space<smem>>
    %c126_i32_69 = arith.constant 126 : i32
    %196 = tpu.dynamic_rotate %177 by %c126_i32_69 dim 1 : vector<8x128xf32>, i32 -> vector<8x128xf32>
    %197 = vector.broadcast %195 : f32 to vector<8x128xf32>
    %198 = arith.mulf %197, %196 : vector<8x128xf32>
    %199 = arith.addf %194, %198 : vector<8x128xf32>
    %c13 = arith.constant 13 : index
    %200 = memref.load %arg16[%c13] : memref<80xf32, #tpu.memory_space<smem>>
    %c125_i32_70 = arith.constant 125 : i32
    %201 = tpu.dynamic_rotate %177 by %c125_i32_70 dim 1 : vector<8x128xf32>, i32 -> vector<8x128xf32>
    %202 = vector.broadcast %200 : f32 to vector<8x128xf32>
    %203 = arith.mulf %202, %201 : vector<8x128xf32>
    %204 = arith.addf %199, %203 : vector<8x128xf32>
    %c14 = arith.constant 14 : index
    %205 = memref.load %arg16[%c14] : memref<80xf32, #tpu.memory_space<smem>>
    %c124_i32_71 = arith.constant 124 : i32
    %206 = tpu.dynamic_rotate %177 by %c124_i32_71 dim 1 : vector<8x128xf32>, i32 -> vector<8x128xf32>
    %207 = vector.broadcast %205 : f32 to vector<8x128xf32>
    %208 = arith.mulf %207, %206 : vector<8x128xf32>
    %209 = arith.addf %204, %208 : vector<8x128xf32>
    %c2_72 = arith.constant 2 : index
    %210 = memref.load %arg17[%c2_72] : memref<16xf32, #tpu.memory_space<smem>>
    %211 = vector.broadcast %210 : f32 to vector<8x128xf32>
    %212 = arith.addf %209, %211 : vector<8x128xf32>
    %cst_73 = arith.constant 0.000000e+00 : f32
    %213 = vector.broadcast %cst_73 : f32 to vector<8x128xf32>
    %214 = arith.cmpf oge, %212, %213 : vector<8x128xf32>
    %cst_74 = arith.constant 0.00999999977 : f32
    %215 = vector.broadcast %cst_74 : f32 to vector<8x128xf32>
    %216 = arith.mulf %215, %212 : vector<8x128xf32>
    %217 = arith.select %214, %212, %216 : vector<8x128xi1>, vector<8x128xf32>
    %218 = vector.broadcast %186 : vector<1x128xf32> to vector<8x128xf32>
    %219 = arith.mulf %217, %218 : vector<8x128xf32>
    %220 = arith.addf %219, %177 : vector<8x128xf32>
    %c4_75 = arith.constant 4 : index
    %c0_76 = arith.constant 0 : index
    %221 = vector.load %arg19[%c4_75, %c0_76] : memref<32x128xf32, #tpu.memory_space<vmem>>, vector<1x128xf32>
    %c5_77 = arith.constant 5 : index
    %c0_78 = arith.constant 0 : index
    %222 = vector.load %arg19[%c5_77, %c0_78] : memref<32x128xf32, #tpu.memory_space<vmem>>, vector<1x128xf32>
    %223 = vector.shape_cast %221 : vector<1x128xf32> to vector<1x128xf32>
    %224 = vector.broadcast %223 : vector<1x128xf32> to vector<8x128xf32>
    %225 = vector.shape_cast %222 : vector<1x128xf32> to vector<1x128xf32>
    %226 = vector.broadcast %225 : vector<1x128xf32> to vector<8x128xf32>
    %227 = arith.select %214, %224, %226 : vector<8x128xi1>, vector<8x128xf32>
    %228 = arith.addf %185, %227 : vector<8x128xf32>
    %c3_79 = arith.constant 3 : index
    %c0_80 = arith.constant 0 : index
    %229 = vector.load %arg18[%c3_79, %c0_80] : memref<16x128xf32, #tpu.memory_space<vmem>>, vector<1x128xf32>
    %c15 = arith.constant 15 : index
    %230 = memref.load %arg16[%c15] : memref<80xf32, #tpu.memory_space<smem>>
    %231 = vector.broadcast %230 : f32 to vector<8x128xf32>
    %232 = arith.mulf %231, %220 : vector<8x128xf32>
    %c16 = arith.constant 16 : index
    %233 = memref.load %arg16[%c16] : memref<80xf32, #tpu.memory_space<smem>>
    %c127_i32_81 = arith.constant 127 : i32
    %234 = tpu.dynamic_rotate %220 by %c127_i32_81 dim 1 : vector<8x128xf32>, i32 -> vector<8x128xf32>
    %235 = vector.broadcast %233 : f32 to vector<8x128xf32>
    %236 = arith.mulf %235, %234 : vector<8x128xf32>
    %237 = arith.addf %232, %236 : vector<8x128xf32>
    %c17 = arith.constant 17 : index
    %238 = memref.load %arg16[%c17] : memref<80xf32, #tpu.memory_space<smem>>
    %c126_i32_82 = arith.constant 126 : i32
    %239 = tpu.dynamic_rotate %220 by %c126_i32_82 dim 1 : vector<8x128xf32>, i32 -> vector<8x128xf32>
    %240 = vector.broadcast %238 : f32 to vector<8x128xf32>
    %241 = arith.mulf %240, %239 : vector<8x128xf32>
    %242 = arith.addf %237, %241 : vector<8x128xf32>
    %c18 = arith.constant 18 : index
    %243 = memref.load %arg16[%c18] : memref<80xf32, #tpu.memory_space<smem>>
    %c125_i32_83 = arith.constant 125 : i32
    %244 = tpu.dynamic_rotate %220 by %c125_i32_83 dim 1 : vector<8x128xf32>, i32 -> vector<8x128xf32>
    %245 = vector.broadcast %243 : f32 to vector<8x128xf32>
    %246 = arith.mulf %245, %244 : vector<8x128xf32>
    %247 = arith.addf %242, %246 : vector<8x128xf32>
    %c19 = arith.constant 19 : index
    %248 = memref.load %arg16[%c19] : memref<80xf32, #tpu.memory_space<smem>>
    %c124_i32_84 = arith.constant 124 : i32
    %249 = tpu.dynamic_rotate %220 by %c124_i32_84 dim 1 : vector<8x128xf32>, i32 -> vector<8x128xf32>
    %250 = vector.broadcast %248 : f32 to vector<8x128xf32>
    %251 = arith.mulf %250, %249 : vector<8x128xf32>
    %252 = arith.addf %247, %251 : vector<8x128xf32>
    %c3_85 = arith.constant 3 : index
    %253 = memref.load %arg17[%c3_85] : memref<16xf32, #tpu.memory_space<smem>>
    %254 = vector.broadcast %253 : f32 to vector<8x128xf32>
    %255 = arith.addf %252, %254 : vector<8x128xf32>
    %cst_86 = arith.constant 0.000000e+00 : f32
    %256 = vector.broadcast %cst_86 : f32 to vector<8x128xf32>
    %257 = arith.cmpf oge, %255, %256 : vector<8x128xf32>
    %cst_87 = arith.constant 0.00999999977 : f32
    %258 = vector.broadcast %cst_87 : f32 to vector<8x128xf32>
    %259 = arith.mulf %258, %255 : vector<8x128xf32>
    %260 = arith.select %257, %255, %259 : vector<8x128xi1>, vector<8x128xf32>
    %261 = vector.broadcast %229 : vector<1x128xf32> to vector<8x128xf32>
    %262 = arith.mulf %260, %261 : vector<8x128xf32>
    %263 = arith.addf %262, %220 : vector<8x128xf32>
    %c6_88 = arith.constant 6 : index
    %c0_89 = arith.constant 0 : index
    %264 = vector.load %arg19[%c6_88, %c0_89] : memref<32x128xf32, #tpu.memory_space<vmem>>, vector<1x128xf32>
    %c7_90 = arith.constant 7 : index
    %c0_91 = arith.constant 0 : index
    %265 = vector.load %arg19[%c7_90, %c0_91] : memref<32x128xf32, #tpu.memory_space<vmem>>, vector<1x128xf32>
    %266 = vector.shape_cast %264 : vector<1x128xf32> to vector<1x128xf32>
    %267 = vector.broadcast %266 : vector<1x128xf32> to vector<8x128xf32>
    %268 = vector.shape_cast %265 : vector<1x128xf32> to vector<1x128xf32>
    %269 = vector.broadcast %268 : vector<1x128xf32> to vector<8x128xf32>
    %270 = arith.select %257, %267, %269 : vector<8x128xi1>, vector<8x128xf32>
    %271 = arith.addf %228, %270 : vector<8x128xf32>
    %c4_92 = arith.constant 4 : index
    %c0_93 = arith.constant 0 : index
    %272 = vector.load %arg18[%c4_92, %c0_93] : memref<16x128xf32, #tpu.memory_space<vmem>>, vector<1x128xf32>
    %c20 = arith.constant 20 : index
    %273 = memref.load %arg16[%c20] : memref<80xf32, #tpu.memory_space<smem>>
    %274 = vector.broadcast %273 : f32 to vector<8x128xf32>
    %275 = arith.mulf %274, %263 : vector<8x128xf32>
    %c21 = arith.constant 21 : index
    %276 = memref.load %arg16[%c21] : memref<80xf32, #tpu.memory_space<smem>>
    %c127_i32_94 = arith.constant 127 : i32
    %277 = tpu.dynamic_rotate %263 by %c127_i32_94 dim 1 : vector<8x128xf32>, i32 -> vector<8x128xf32>
    %278 = vector.broadcast %276 : f32 to vector<8x128xf32>
    %279 = arith.mulf %278, %277 : vector<8x128xf32>
    %280 = arith.addf %275, %279 : vector<8x128xf32>
    %c22 = arith.constant 22 : index
    %281 = memref.load %arg16[%c22] : memref<80xf32, #tpu.memory_space<smem>>
    %c126_i32_95 = arith.constant 126 : i32
    %282 = tpu.dynamic_rotate %263 by %c126_i32_95 dim 1 : vector<8x128xf32>, i32 -> vector<8x128xf32>
    %283 = vector.broadcast %281 : f32 to vector<8x128xf32>
    %284 = arith.mulf %283, %282 : vector<8x128xf32>
    %285 = arith.addf %280, %284 : vector<8x128xf32>
    %c23 = arith.constant 23 : index
    %286 = memref.load %arg16[%c23] : memref<80xf32, #tpu.memory_space<smem>>
    %c125_i32_96 = arith.constant 125 : i32
    %287 = tpu.dynamic_rotate %263 by %c125_i32_96 dim 1 : vector<8x128xf32>, i32 -> vector<8x128xf32>
    %288 = vector.broadcast %286 : f32 to vector<8x128xf32>
    %289 = arith.mulf %288, %287 : vector<8x128xf32>
    %290 = arith.addf %285, %289 : vector<8x128xf32>
    %c24 = arith.constant 24 : index
    %291 = memref.load %arg16[%c24] : memref<80xf32, #tpu.memory_space<smem>>
    %c124_i32_97 = arith.constant 124 : i32
    %292 = tpu.dynamic_rotate %263 by %c124_i32_97 dim 1 : vector<8x128xf32>, i32 -> vector<8x128xf32>
    %293 = vector.broadcast %291 : f32 to vector<8x128xf32>
    %294 = arith.mulf %293, %292 : vector<8x128xf32>
    %295 = arith.addf %290, %294 : vector<8x128xf32>
    %c4_98 = arith.constant 4 : index
    %296 = memref.load %arg17[%c4_98] : memref<16xf32, #tpu.memory_space<smem>>
    %297 = vector.broadcast %296 : f32 to vector<8x128xf32>
    %298 = arith.addf %295, %297 : vector<8x128xf32>
    %cst_99 = arith.constant 0.000000e+00 : f32
    %299 = vector.broadcast %cst_99 : f32 to vector<8x128xf32>
    %300 = arith.cmpf oge, %298, %299 : vector<8x128xf32>
    %cst_100 = arith.constant 0.00999999977 : f32
    %301 = vector.broadcast %cst_100 : f32 to vector<8x128xf32>
    %302 = arith.mulf %301, %298 : vector<8x128xf32>
    %303 = arith.select %300, %298, %302 : vector<8x128xi1>, vector<8x128xf32>
    %304 = vector.broadcast %272 : vector<1x128xf32> to vector<8x128xf32>
    %305 = arith.mulf %303, %304 : vector<8x128xf32>
    %306 = arith.addf %305, %263 : vector<8x128xf32>
    %c8_101 = arith.constant 8 : index
    %c0_102 = arith.constant 0 : index
    %307 = vector.load %arg19[%c8_101, %c0_102] : memref<32x128xf32, #tpu.memory_space<vmem>>, vector<1x128xf32>
    %c9_103 = arith.constant 9 : index
    %c0_104 = arith.constant 0 : index
    %308 = vector.load %arg19[%c9_103, %c0_104] : memref<32x128xf32, #tpu.memory_space<vmem>>, vector<1x128xf32>
    %309 = vector.shape_cast %307 : vector<1x128xf32> to vector<1x128xf32>
    %310 = vector.broadcast %309 : vector<1x128xf32> to vector<8x128xf32>
    %311 = vector.shape_cast %308 : vector<1x128xf32> to vector<1x128xf32>
    %312 = vector.broadcast %311 : vector<1x128xf32> to vector<8x128xf32>
    %313 = arith.select %300, %310, %312 : vector<8x128xi1>, vector<8x128xf32>
    %314 = arith.addf %271, %313 : vector<8x128xf32>
    %c5_105 = arith.constant 5 : index
    %c0_106 = arith.constant 0 : index
    %315 = vector.load %arg18[%c5_105, %c0_106] : memref<16x128xf32, #tpu.memory_space<vmem>>, vector<1x128xf32>
    %c25 = arith.constant 25 : index
    %316 = memref.load %arg16[%c25] : memref<80xf32, #tpu.memory_space<smem>>
    %317 = vector.broadcast %316 : f32 to vector<8x128xf32>
    %318 = arith.mulf %317, %306 : vector<8x128xf32>
    %c26 = arith.constant 26 : index
    %319 = memref.load %arg16[%c26] : memref<80xf32, #tpu.memory_space<smem>>
    %c127_i32_107 = arith.constant 127 : i32
    %320 = tpu.dynamic_rotate %306 by %c127_i32_107 dim 1 : vector<8x128xf32>, i32 -> vector<8x128xf32>
    %321 = vector.broadcast %319 : f32 to vector<8x128xf32>
    %322 = arith.mulf %321, %320 : vector<8x128xf32>
    %323 = arith.addf %318, %322 : vector<8x128xf32>
    %c27 = arith.constant 27 : index
    %324 = memref.load %arg16[%c27] : memref<80xf32, #tpu.memory_space<smem>>
    %c126_i32_108 = arith.constant 126 : i32
    %325 = tpu.dynamic_rotate %306 by %c126_i32_108 dim 1 : vector<8x128xf32>, i32 -> vector<8x128xf32>
    %326 = vector.broadcast %324 : f32 to vector<8x128xf32>
    %327 = arith.mulf %326, %325 : vector<8x128xf32>
    %328 = arith.addf %323, %327 : vector<8x128xf32>
    %c28 = arith.constant 28 : index
    %329 = memref.load %arg16[%c28] : memref<80xf32, #tpu.memory_space<smem>>
    %c125_i32_109 = arith.constant 125 : i32
    %330 = tpu.dynamic_rotate %306 by %c125_i32_109 dim 1 : vector<8x128xf32>, i32 -> vector<8x128xf32>
    %331 = vector.broadcast %329 : f32 to vector<8x128xf32>
    %332 = arith.mulf %331, %330 : vector<8x128xf32>
    %333 = arith.addf %328, %332 : vector<8x128xf32>
    %c29 = arith.constant 29 : index
    %334 = memref.load %arg16[%c29] : memref<80xf32, #tpu.memory_space<smem>>
    %c124_i32_110 = arith.constant 124 : i32
    %335 = tpu.dynamic_rotate %306 by %c124_i32_110 dim 1 : vector<8x128xf32>, i32 -> vector<8x128xf32>
    %336 = vector.broadcast %334 : f32 to vector<8x128xf32>
    %337 = arith.mulf %336, %335 : vector<8x128xf32>
    %338 = arith.addf %333, %337 : vector<8x128xf32>
    %c5_111 = arith.constant 5 : index
    %339 = memref.load %arg17[%c5_111] : memref<16xf32, #tpu.memory_space<smem>>
    %340 = vector.broadcast %339 : f32 to vector<8x128xf32>
    %341 = arith.addf %338, %340 : vector<8x128xf32>
    %cst_112 = arith.constant 0.000000e+00 : f32
    %342 = vector.broadcast %cst_112 : f32 to vector<8x128xf32>
    %343 = arith.cmpf oge, %341, %342 : vector<8x128xf32>
    %cst_113 = arith.constant 0.00999999977 : f32
    %344 = vector.broadcast %cst_113 : f32 to vector<8x128xf32>
    %345 = arith.mulf %344, %341 : vector<8x128xf32>
    %346 = arith.select %343, %341, %345 : vector<8x128xi1>, vector<8x128xf32>
    %347 = vector.broadcast %315 : vector<1x128xf32> to vector<8x128xf32>
    %348 = arith.mulf %346, %347 : vector<8x128xf32>
    %349 = arith.addf %348, %306 : vector<8x128xf32>
    %c10_114 = arith.constant 10 : index
    %c0_115 = arith.constant 0 : index
    %350 = vector.load %arg19[%c10_114, %c0_115] : memref<32x128xf32, #tpu.memory_space<vmem>>, vector<1x128xf32>
    %c11_116 = arith.constant 11 : index
    %c0_117 = arith.constant 0 : index
    %351 = vector.load %arg19[%c11_116, %c0_117] : memref<32x128xf32, #tpu.memory_space<vmem>>, vector<1x128xf32>
    %352 = vector.shape_cast %350 : vector<1x128xf32> to vector<1x128xf32>
    %353 = vector.broadcast %352 : vector<1x128xf32> to vector<8x128xf32>
    %354 = vector.shape_cast %351 : vector<1x128xf32> to vector<1x128xf32>
    %355 = vector.broadcast %354 : vector<1x128xf32> to vector<8x128xf32>
    %356 = arith.select %343, %353, %355 : vector<8x128xi1>, vector<8x128xf32>
    %357 = arith.addf %314, %356 : vector<8x128xf32>
    %c6_118 = arith.constant 6 : index
    %c0_119 = arith.constant 0 : index
    %358 = vector.load %arg18[%c6_118, %c0_119] : memref<16x128xf32, #tpu.memory_space<vmem>>, vector<1x128xf32>
    %c30 = arith.constant 30 : index
    %359 = memref.load %arg16[%c30] : memref<80xf32, #tpu.memory_space<smem>>
    %360 = vector.broadcast %359 : f32 to vector<8x128xf32>
    %361 = arith.mulf %360, %349 : vector<8x128xf32>
    %c31 = arith.constant 31 : index
    %362 = memref.load %arg16[%c31] : memref<80xf32, #tpu.memory_space<smem>>
    %c127_i32_120 = arith.constant 127 : i32
    %363 = tpu.dynamic_rotate %349 by %c127_i32_120 dim 1 : vector<8x128xf32>, i32 -> vector<8x128xf32>
    %364 = vector.broadcast %362 : f32 to vector<8x128xf32>
    %365 = arith.mulf %364, %363 : vector<8x128xf32>
    %366 = arith.addf %361, %365 : vector<8x128xf32>
    %c32 = arith.constant 32 : index
    %367 = memref.load %arg16[%c32] : memref<80xf32, #tpu.memory_space<smem>>
    %c126_i32_121 = arith.constant 126 : i32
    %368 = tpu.dynamic_rotate %349 by %c126_i32_121 dim 1 : vector<8x128xf32>, i32 -> vector<8x128xf32>
    %369 = vector.broadcast %367 : f32 to vector<8x128xf32>
    %370 = arith.mulf %369, %368 : vector<8x128xf32>
    %371 = arith.addf %366, %370 : vector<8x128xf32>
    %c33 = arith.constant 33 : index
    %372 = memref.load %arg16[%c33] : memref<80xf32, #tpu.memory_space<smem>>
    %c125_i32_122 = arith.constant 125 : i32
    %373 = tpu.dynamic_rotate %349 by %c125_i32_122 dim 1 : vector<8x128xf32>, i32 -> vector<8x128xf32>
    %374 = vector.broadcast %372 : f32 to vector<8x128xf32>
    %375 = arith.mulf %374, %373 : vector<8x128xf32>
    %376 = arith.addf %371, %375 : vector<8x128xf32>
    %c34 = arith.constant 34 : index
    %377 = memref.load %arg16[%c34] : memref<80xf32, #tpu.memory_space<smem>>
    %c124_i32_123 = arith.constant 124 : i32
    %378 = tpu.dynamic_rotate %349 by %c124_i32_123 dim 1 : vector<8x128xf32>, i32 -> vector<8x128xf32>
    %379 = vector.broadcast %377 : f32 to vector<8x128xf32>
    %380 = arith.mulf %379, %378 : vector<8x128xf32>
    %381 = arith.addf %376, %380 : vector<8x128xf32>
    %c6_124 = arith.constant 6 : index
    %382 = memref.load %arg17[%c6_124] : memref<16xf32, #tpu.memory_space<smem>>
    %383 = vector.broadcast %382 : f32 to vector<8x128xf32>
    %384 = arith.addf %381, %383 : vector<8x128xf32>
    %cst_125 = arith.constant 0.000000e+00 : f32
    %385 = vector.broadcast %cst_125 : f32 to vector<8x128xf32>
    %386 = arith.cmpf oge, %384, %385 : vector<8x128xf32>
    %cst_126 = arith.constant 0.00999999977 : f32
    %387 = vector.broadcast %cst_126 : f32 to vector<8x128xf32>
    %388 = arith.mulf %387, %384 : vector<8x128xf32>
    %389 = arith.select %386, %384, %388 : vector<8x128xi1>, vector<8x128xf32>
    %390 = vector.broadcast %358 : vector<1x128xf32> to vector<8x128xf32>
    %391 = arith.mulf %389, %390 : vector<8x128xf32>
    %392 = arith.addf %391, %349 : vector<8x128xf32>
    %c12_127 = arith.constant 12 : index
    %c0_128 = arith.constant 0 : index
    %393 = vector.load %arg19[%c12_127, %c0_128] : memref<32x128xf32, #tpu.memory_space<vmem>>, vector<1x128xf32>
    %c13_129 = arith.constant 13 : index
    %c0_130 = arith.constant 0 : index
    %394 = vector.load %arg19[%c13_129, %c0_130] : memref<32x128xf32, #tpu.memory_space<vmem>>, vector<1x128xf32>
    %395 = vector.shape_cast %393 : vector<1x128xf32> to vector<1x128xf32>
    %396 = vector.broadcast %395 : vector<1x128xf32> to vector<8x128xf32>
    %397 = vector.shape_cast %394 : vector<1x128xf32> to vector<1x128xf32>
    %398 = vector.broadcast %397 : vector<1x128xf32> to vector<8x128xf32>
    %399 = arith.select %386, %396, %398 : vector<8x128xi1>, vector<8x128xf32>
    %400 = arith.addf %357, %399 : vector<8x128xf32>
    %c7_131 = arith.constant 7 : index
    %c0_132 = arith.constant 0 : index
    %401 = vector.load %arg18[%c7_131, %c0_132] : memref<16x128xf32, #tpu.memory_space<vmem>>, vector<1x128xf32>
    %c35 = arith.constant 35 : index
    %402 = memref.load %arg16[%c35] : memref<80xf32, #tpu.memory_space<smem>>
    %403 = vector.broadcast %402 : f32 to vector<8x128xf32>
    %404 = arith.mulf %403, %392 : vector<8x128xf32>
    %c36 = arith.constant 36 : index
    %405 = memref.load %arg16[%c36] : memref<80xf32, #tpu.memory_space<smem>>
    %c127_i32_133 = arith.constant 127 : i32
    %406 = tpu.dynamic_rotate %392 by %c127_i32_133 dim 1 : vector<8x128xf32>, i32 -> vector<8x128xf32>
    %407 = vector.broadcast %405 : f32 to vector<8x128xf32>
    %408 = arith.mulf %407, %406 : vector<8x128xf32>
    %409 = arith.addf %404, %408 : vector<8x128xf32>
    %c37 = arith.constant 37 : index
    %410 = memref.load %arg16[%c37] : memref<80xf32, #tpu.memory_space<smem>>
    %c126_i32_134 = arith.constant 126 : i32
    %411 = tpu.dynamic_rotate %392 by %c126_i32_134 dim 1 : vector<8x128xf32>, i32 -> vector<8x128xf32>
    %412 = vector.broadcast %410 : f32 to vector<8x128xf32>
    %413 = arith.mulf %412, %411 : vector<8x128xf32>
    %414 = arith.addf %409, %413 : vector<8x128xf32>
    %c38 = arith.constant 38 : index
    %415 = memref.load %arg16[%c38] : memref<80xf32, #tpu.memory_space<smem>>
    %c125_i32_135 = arith.constant 125 : i32
    %416 = tpu.dynamic_rotate %392 by %c125_i32_135 dim 1 : vector<8x128xf32>, i32 -> vector<8x128xf32>
    %417 = vector.broadcast %415 : f32 to vector<8x128xf32>
    %418 = arith.mulf %417, %416 : vector<8x128xf32>
    %419 = arith.addf %414, %418 : vector<8x128xf32>
    %c39 = arith.constant 39 : index
    %420 = memref.load %arg16[%c39] : memref<80xf32, #tpu.memory_space<smem>>
    %c124_i32_136 = arith.constant 124 : i32
    %421 = tpu.dynamic_rotate %392 by %c124_i32_136 dim 1 : vector<8x128xf32>, i32 -> vector<8x128xf32>
    %422 = vector.broadcast %420 : f32 to vector<8x128xf32>
    %423 = arith.mulf %422, %421 : vector<8x128xf32>
    %424 = arith.addf %419, %423 : vector<8x128xf32>
    %c7_137 = arith.constant 7 : index
    %425 = memref.load %arg17[%c7_137] : memref<16xf32, #tpu.memory_space<smem>>
    %426 = vector.broadcast %425 : f32 to vector<8x128xf32>
    %427 = arith.addf %424, %426 : vector<8x128xf32>
    %cst_138 = arith.constant 0.000000e+00 : f32
    %428 = vector.broadcast %cst_138 : f32 to vector<8x128xf32>
    %429 = arith.cmpf oge, %427, %428 : vector<8x128xf32>
    %cst_139 = arith.constant 0.00999999977 : f32
    %430 = vector.broadcast %cst_139 : f32 to vector<8x128xf32>
    %431 = arith.mulf %430, %427 : vector<8x128xf32>
    %432 = arith.select %429, %427, %431 : vector<8x128xi1>, vector<8x128xf32>
    %433 = vector.broadcast %401 : vector<1x128xf32> to vector<8x128xf32>
    %434 = arith.mulf %432, %433 : vector<8x128xf32>
    %435 = arith.addf %434, %392 : vector<8x128xf32>
    %c14_140 = arith.constant 14 : index
    %c0_141 = arith.constant 0 : index
    %436 = vector.load %arg19[%c14_140, %c0_141] : memref<32x128xf32, #tpu.memory_space<vmem>>, vector<1x128xf32>
    %c15_142 = arith.constant 15 : index
    %c0_143 = arith.constant 0 : index
    %437 = vector.load %arg19[%c15_142, %c0_143] : memref<32x128xf32, #tpu.memory_space<vmem>>, vector<1x128xf32>
    %438 = vector.shape_cast %436 : vector<1x128xf32> to vector<1x128xf32>
    %439 = vector.broadcast %438 : vector<1x128xf32> to vector<8x128xf32>
    %440 = vector.shape_cast %437 : vector<1x128xf32> to vector<1x128xf32>
    %441 = vector.broadcast %440 : vector<1x128xf32> to vector<8x128xf32>
    %442 = arith.select %429, %439, %441 : vector<8x128xi1>, vector<8x128xf32>
    %443 = arith.addf %400, %442 : vector<8x128xf32>
    %cst_144 = arith.constant dense<0.000000e+00> : vector<8xf32>
    %444 = vector.multi_reduction <add>, %443, %cst_144 [1] : vector<8x128xf32> to vector<8xf32>
    %445 = vector.shape_cast %444 : vector<8xf32> to vector<8x1xf32>
    %446 = arith.truncf %435 : vector<8x128xf32> to vector<8x128xbf16>
    %c0_145 = arith.constant 0 : index
    %c0_146 = arith.constant 0 : index
    %447 = vector.load %arg7[%c0_145, %c0_146] : memref<128x384xbf16, #tpu.memory_space<vmem>>, vector<128x384xbf16>
    %cst_147 = arith.constant dense<0.000000e+00> : vector<8x384xf32>
    %448 = tpu.matmul %446, %447, %cst_147 {dimension_numbers = #tpu.dot_dimension_numbers<[1], [0], [0], [1], [0, 0, 1, 1], [], []>} : vector<8x128xbf16>, vector<128x384xbf16>, vector<8x384xf32> -> vector<8x384xf32>
    %cst_148 = arith.constant dense<0.000000e+00> : vector<384xf32>
    %449 = vector.multi_reduction <add>, %448, %cst_148 [0] : vector<8x384xf32> to vector<384xf32>
    %450 = vector.shape_cast %449 : vector<384xf32> to vector<1x384xf32>
    %cst_149 = arith.constant 1.250000e-01 : f32
    %451 = vector.broadcast %cst_149 : f32 to vector<1x384xf32>
    %452 = arith.mulf %450, %451 : vector<1x384xf32>
    %453 = arith.mulf %448, %448 : vector<8x384xf32>
    %cst_150 = arith.constant dense<0.000000e+00> : vector<384xf32>
    %454 = vector.multi_reduction <add>, %453, %cst_150 [0] : vector<8x384xf32> to vector<384xf32>
    %455 = vector.shape_cast %454 : vector<384xf32> to vector<1x384xf32>
    %cst_151 = arith.constant 1.250000e-01 : f32
    %456 = vector.broadcast %cst_151 : f32 to vector<1x384xf32>
    %457 = arith.mulf %455, %456 : vector<1x384xf32>
    %458 = arith.mulf %452, %452 : vector<1x384xf32>
    %459 = arith.subf %457, %458 : vector<1x384xf32>
    %cst_152 = arith.constant 0.000000e+00 : f32
    %460 = vector.broadcast %cst_152 : f32 to vector<1x384xf32>
    %461 = arith.maximumf %459, %460 : vector<1x384xf32>
    %c3_153 = arith.constant 3 : index
    %c0_154 = arith.constant 0 : index
    %462 = vector.load %arg2[%c3_153, %c0_154] : memref<10x384xf32, #tpu.memory_space<vmem>>, vector<1x384xf32>
    %c3_155 = arith.constant 3 : index
    %c0_156 = arith.constant 0 : index
    %463 = vector.load %arg3[%c3_155, %c0_156] : memref<10x384xf32, #tpu.memory_space<vmem>>, vector<1x384xf32>
    %464 = vector.broadcast %452 : vector<1x384xf32> to vector<8x384xf32>
    %465 = arith.subf %448, %464 : vector<8x384xf32>
    %cst_157 = arith.constant 9.99999974E-6 : f32
    %466 = vector.broadcast %cst_157 : f32 to vector<1x384xf32>
    %467 = arith.addf %461, %466 : vector<1x384xf32>
    %468 = math.rsqrt %467 : vector<1x384xf32>
    %469 = vector.broadcast %468 : vector<1x384xf32> to vector<8x384xf32>
    %470 = arith.mulf %465, %469 : vector<8x384xf32>
    %471 = vector.broadcast %462 : vector<1x384xf32> to vector<8x384xf32>
    %472 = arith.mulf %470, %471 : vector<8x384xf32>
    %473 = vector.broadcast %463 : vector<1x384xf32> to vector<8x384xf32>
    %474 = arith.addf %472, %473 : vector<8x384xf32>
    %475 = math.tanh %474 : vector<8x384xf32>
    %476 = vector.extract_strided_slice %475 {offsets = [0, 0], sizes = [8, 128], strides = [1, 1]} : vector<8x384xf32> to vector<8x128xf32>
    %477 = vector.extract_strided_slice %475 {offsets = [0, 128], sizes = [8, 256], strides = [1, 1]} : vector<8x384xf32> to vector<8x256xf32>
    %478 = arith.truncf %476 : vector<8x128xf32> to vector<8x128xbf16>
    %c0_158 = arith.constant 0 : index
    %c0_159 = arith.constant 0 : index
    %479 = vector.load %arg8[%c0_158, %c0_159] : memref<128x128xbf16, #tpu.memory_space<vmem>>, vector<128x128xbf16>
    %cst_160 = arith.constant dense<0.000000e+00> : vector<8x128xf32>
    %480 = tpu.matmul %478, %479, %cst_160 {dimension_numbers = #tpu.dot_dimension_numbers<[1], [0], [0], [1], [0, 0, 1, 1], [], []>} : vector<8x128xbf16>, vector<128x128xbf16>, vector<8x128xf32> -> vector<8x128xf32>
    %cst_161 = arith.constant dense<0.000000e+00> : vector<128xf32>
    %481 = vector.multi_reduction <add>, %480, %cst_161 [0] : vector<8x128xf32> to vector<128xf32>
    %482 = vector.shape_cast %481 : vector<128xf32> to vector<1x128xf32>
    %cst_162 = arith.constant 1.250000e-01 : f32
    %483 = vector.broadcast %cst_162 : f32 to vector<1x128xf32>
    %484 = arith.mulf %482, %483 : vector<1x128xf32>
    %485 = arith.mulf %480, %480 : vector<8x128xf32>
    %cst_163 = arith.constant dense<0.000000e+00> : vector<128xf32>
    %486 = vector.multi_reduction <add>, %485, %cst_163 [0] : vector<8x128xf32> to vector<128xf32>
    %487 = vector.shape_cast %486 : vector<128xf32> to vector<1x128xf32>
    %cst_164 = arith.constant 1.250000e-01 : f32
    %488 = vector.broadcast %cst_164 : f32 to vector<1x128xf32>
    %489 = arith.mulf %487, %488 : vector<1x128xf32>
    %490 = arith.mulf %484, %484 : vector<1x128xf32>
    %491 = arith.subf %489, %490 : vector<1x128xf32>
    %cst_165 = arith.constant 0.000000e+00 : f32
    %492 = vector.broadcast %cst_165 : f32 to vector<1x128xf32>
    %493 = arith.maximumf %491, %492 : vector<1x128xf32>
    %c4_166 = arith.constant 4 : index
    %c0_167 = arith.constant 0 : index
    %494 = vector.load %arg2[%c4_166, %c0_167] : memref<10x384xf32, #tpu.memory_space<vmem>>, vector<1x128xf32>
    %c4_168 = arith.constant 4 : index
    %c0_169 = arith.constant 0 : index
    %495 = vector.load %arg3[%c4_168, %c0_169] : memref<10x384xf32, #tpu.memory_space<vmem>>, vector<1x128xf32>
    %496 = vector.broadcast %484 : vector<1x128xf32> to vector<8x128xf32>
    %497 = arith.subf %480, %496 : vector<8x128xf32>
    %cst_170 = arith.constant 9.99999974E-6 : f32
    %498 = vector.broadcast %cst_170 : f32 to vector<1x128xf32>
    %499 = arith.addf %493, %498 : vector<1x128xf32>
    %500 = math.rsqrt %499 : vector<1x128xf32>
    %501 = vector.broadcast %500 : vector<1x128xf32> to vector<8x128xf32>
    %502 = arith.mulf %497, %501 : vector<8x128xf32>
    %503 = vector.broadcast %494 : vector<1x128xf32> to vector<8x128xf32>
    %504 = arith.mulf %502, %503 : vector<8x128xf32>
    %505 = vector.broadcast %495 : vector<1x128xf32> to vector<8x128xf32>
    %506 = arith.addf %504, %505 : vector<8x128xf32>
    %507 = math.tanh %506 : vector<8x128xf32>
    %508 = arith.truncf %507 : vector<8x128xf32> to vector<8x128xbf16>
    %c0_171 = arith.constant 0 : index
    %c0_172 = arith.constant 0 : index
    %509 = vector.load %arg9[%c0_171, %c0_172] : memref<128x128xbf16, #tpu.memory_space<vmem>>, vector<128x128xbf16>
    %cst_173 = arith.constant dense<0.000000e+00> : vector<8x128xf32>
    %510 = tpu.matmul %508, %509, %cst_173 {dimension_numbers = #tpu.dot_dimension_numbers<[1], [0], [0], [1], [0, 0, 1, 1], [], []>} : vector<8x128xbf16>, vector<128x128xbf16>, vector<8x128xf32> -> vector<8x128xf32>
    %cst_174 = arith.constant dense<0.000000e+00> : vector<128xf32>
    %511 = vector.multi_reduction <add>, %510, %cst_174 [0] : vector<8x128xf32> to vector<128xf32>
    %512 = vector.shape_cast %511 : vector<128xf32> to vector<1x128xf32>
    %cst_175 = arith.constant 1.250000e-01 : f32
    %513 = vector.broadcast %cst_175 : f32 to vector<1x128xf32>
    %514 = arith.mulf %512, %513 : vector<1x128xf32>
    %515 = arith.mulf %510, %510 : vector<8x128xf32>
    %cst_176 = arith.constant dense<0.000000e+00> : vector<128xf32>
    %516 = vector.multi_reduction <add>, %515, %cst_176 [0] : vector<8x128xf32> to vector<128xf32>
    %517 = vector.shape_cast %516 : vector<128xf32> to vector<1x128xf32>
    %cst_177 = arith.constant 1.250000e-01 : f32
    %518 = vector.broadcast %cst_177 : f32 to vector<1x128xf32>
    %519 = arith.mulf %517, %518 : vector<1x128xf32>
    %520 = arith.mulf %514, %514 : vector<1x128xf32>
    %521 = arith.subf %519, %520 : vector<1x128xf32>
    %cst_178 = arith.constant 0.000000e+00 : f32
    %522 = vector.broadcast %cst_178 : f32 to vector<1x128xf32>
    %523 = arith.maximumf %521, %522 : vector<1x128xf32>
    %c5_179 = arith.constant 5 : index
    %c0_180 = arith.constant 0 : index
    %524 = vector.load %arg2[%c5_179, %c0_180] : memref<10x384xf32, #tpu.memory_space<vmem>>, vector<1x128xf32>
    %c5_181 = arith.constant 5 : index
    %c0_182 = arith.constant 0 : index
    %525 = vector.load %arg3[%c5_181, %c0_182] : memref<10x384xf32, #tpu.memory_space<vmem>>, vector<1x128xf32>
    %526 = vector.broadcast %514 : vector<1x128xf32> to vector<8x128xf32>
    %527 = arith.subf %510, %526 : vector<8x128xf32>
    %cst_183 = arith.constant 9.99999974E-6 : f32
    %528 = vector.broadcast %cst_183 : f32 to vector<1x128xf32>
    %529 = arith.addf %523, %528 : vector<1x128xf32>
    %530 = math.rsqrt %529 : vector<1x128xf32>
    %531 = vector.broadcast %530 : vector<1x128xf32> to vector<8x128xf32>
    %532 = arith.mulf %527, %531 : vector<8x128xf32>
    %533 = vector.broadcast %524 : vector<1x128xf32> to vector<8x128xf32>
    %534 = arith.mulf %532, %533 : vector<8x128xf32>
    %535 = vector.broadcast %525 : vector<1x128xf32> to vector<8x128xf32>
    %536 = arith.addf %534, %535 : vector<8x128xf32>
    %c64_i32 = arith.constant 64 : i32
    %537 = tpu.dynamic_rotate %536 by %c64_i32 dim 1 : vector<8x128xf32>, i32 -> vector<8x128xf32>
    %c64_i32_184 = arith.constant 64 : i32
    %538 = vector.broadcast %c64_i32_184 : i32 to vector<8x128xi32>
    %539 = arith.cmpi slt, %0, %538 : vector<8x128xi32>
    %c0_185 = arith.constant 0 : index
    %c128 = arith.constant 128 : index
    %540 = vector.load %arg1[%c0_185, %c128] : memref<8x256xf32, #tpu.memory_space<vmem>>, vector<8x128xf32>
    %cst_186 = arith.constant 5.000000e-01 : f32
    %541 = vector.broadcast %cst_186 : f32 to vector<8x128xf32>
    %542 = arith.mulf %541, %537 : vector<8x128xf32>
    %543 = math.exp %542 : vector<8x128xf32>
    %544 = arith.mulf %540, %543 : vector<8x128xf32>
    %545 = arith.addf %544, %536 : vector<8x128xf32>
    %cst_187 = arith.constant 0.000000e+00 : f32
    %546 = vector.broadcast %cst_187 : f32 to vector<8x128xf32>
    %547 = arith.select %539, %545, %546 : vector<8x128xi1>, vector<8x128xf32>
    %cst_188 = arith.constant 0.000000e+00 : f32
    %548 = vector.broadcast %cst_188 : f32 to vector<8x128xf32>
    %c8_189 = arith.constant 8 : index
    %c0_190 = arith.constant 0 : index
    %549 = vector.load %arg18[%c8_189, %c0_190] : memref<16x128xf32, #tpu.memory_space<vmem>>, vector<1x128xf32>
    %c40 = arith.constant 40 : index
    %550 = memref.load %arg16[%c40] : memref<80xf32, #tpu.memory_space<smem>>
    %551 = vector.broadcast %550 : f32 to vector<8x128xf32>
    %552 = arith.mulf %551, %547 : vector<8x128xf32>
    %c41 = arith.constant 41 : index
    %553 = memref.load %arg16[%c41] : memref<80xf32, #tpu.memory_space<smem>>
    %c127_i32_191 = arith.constant 127 : i32
    %554 = tpu.dynamic_rotate %547 by %c127_i32_191 dim 1 : vector<8x128xf32>, i32 -> vector<8x128xf32>
    %555 = vector.broadcast %553 : f32 to vector<8x128xf32>
    %556 = arith.mulf %555, %554 : vector<8x128xf32>
    %557 = arith.addf %552, %556 : vector<8x128xf32>
    %c42 = arith.constant 42 : index
    %558 = memref.load %arg16[%c42] : memref<80xf32, #tpu.memory_space<smem>>
    %c126_i32_192 = arith.constant 126 : i32
    %559 = tpu.dynamic_rotate %547 by %c126_i32_192 dim 1 : vector<8x128xf32>, i32 -> vector<8x128xf32>
    %560 = vector.broadcast %558 : f32 to vector<8x128xf32>
    %561 = arith.mulf %560, %559 : vector<8x128xf32>
    %562 = arith.addf %557, %561 : vector<8x128xf32>
    %c43 = arith.constant 43 : index
    %563 = memref.load %arg16[%c43] : memref<80xf32, #tpu.memory_space<smem>>
    %c125_i32_193 = arith.constant 125 : i32
    %564 = tpu.dynamic_rotate %547 by %c125_i32_193 dim 1 : vector<8x128xf32>, i32 -> vector<8x128xf32>
    %565 = vector.broadcast %563 : f32 to vector<8x128xf32>
    %566 = arith.mulf %565, %564 : vector<8x128xf32>
    %567 = arith.addf %562, %566 : vector<8x128xf32>
    %c44 = arith.constant 44 : index
    %568 = memref.load %arg16[%c44] : memref<80xf32, #tpu.memory_space<smem>>
    %c124_i32_194 = arith.constant 124 : i32
    %569 = tpu.dynamic_rotate %547 by %c124_i32_194 dim 1 : vector<8x128xf32>, i32 -> vector<8x128xf32>
    %570 = vector.broadcast %568 : f32 to vector<8x128xf32>
    %571 = arith.mulf %570, %569 : vector<8x128xf32>
    %572 = arith.addf %567, %571 : vector<8x128xf32>
    %c8_195 = arith.constant 8 : index
    %573 = memref.load %arg17[%c8_195] : memref<16xf32, #tpu.memory_space<smem>>
    %574 = vector.broadcast %573 : f32 to vector<8x128xf32>
    %575 = arith.addf %572, %574 : vector<8x128xf32>
    %cst_196 = arith.constant 0.000000e+00 : f32
    %576 = vector.broadcast %cst_196 : f32 to vector<8x128xf32>
    %577 = arith.cmpf oge, %575, %576 : vector<8x128xf32>
    %cst_197 = arith.constant 0.00999999977 : f32
    %578 = vector.broadcast %cst_197 : f32 to vector<8x128xf32>
    %579 = arith.mulf %578, %575 : vector<8x128xf32>
    %580 = arith.select %577, %575, %579 : vector<8x128xi1>, vector<8x128xf32>
    %581 = vector.broadcast %549 : vector<1x128xf32> to vector<8x128xf32>
    %582 = arith.mulf %580, %581 : vector<8x128xf32>
    %583 = arith.addf %582, %547 : vector<8x128xf32>
    %c16_198 = arith.constant 16 : index
    %c0_199 = arith.constant 0 : index
    %584 = vector.load %arg19[%c16_198, %c0_199] : memref<32x128xf32, #tpu.memory_space<vmem>>, vector<1x128xf32>
    %c17_200 = arith.constant 17 : index
    %c0_201 = arith.constant 0 : index
    %585 = vector.load %arg19[%c17_200, %c0_201] : memref<32x128xf32, #tpu.memory_space<vmem>>, vector<1x128xf32>
    %586 = vector.shape_cast %584 : vector<1x128xf32> to vector<1x128xf32>
    %587 = vector.broadcast %586 : vector<1x128xf32> to vector<8x128xf32>
    %588 = vector.shape_cast %585 : vector<1x128xf32> to vector<1x128xf32>
    %589 = vector.broadcast %588 : vector<1x128xf32> to vector<8x128xf32>
    %590 = arith.select %577, %587, %589 : vector<8x128xi1>, vector<8x128xf32>
    %591 = arith.addf %548, %590 : vector<8x128xf32>
    %c9_202 = arith.constant 9 : index
    %c0_203 = arith.constant 0 : index
    %592 = vector.load %arg18[%c9_202, %c0_203] : memref<16x128xf32, #tpu.memory_space<vmem>>, vector<1x128xf32>
    %c45 = arith.constant 45 : index
    %593 = memref.load %arg16[%c45] : memref<80xf32, #tpu.memory_space<smem>>
    %594 = vector.broadcast %593 : f32 to vector<8x128xf32>
    %595 = arith.mulf %594, %583 : vector<8x128xf32>
    %c46 = arith.constant 46 : index
    %596 = memref.load %arg16[%c46] : memref<80xf32, #tpu.memory_space<smem>>
    %c127_i32_204 = arith.constant 127 : i32
    %597 = tpu.dynamic_rotate %583 by %c127_i32_204 dim 1 : vector<8x128xf32>, i32 -> vector<8x128xf32>
    %598 = vector.broadcast %596 : f32 to vector<8x128xf32>
    %599 = arith.mulf %598, %597 : vector<8x128xf32>
    %600 = arith.addf %595, %599 : vector<8x128xf32>
    %c47 = arith.constant 47 : index
    %601 = memref.load %arg16[%c47] : memref<80xf32, #tpu.memory_space<smem>>
    %c126_i32_205 = arith.constant 126 : i32
    %602 = tpu.dynamic_rotate %583 by %c126_i32_205 dim 1 : vector<8x128xf32>, i32 -> vector<8x128xf32>
    %603 = vector.broadcast %601 : f32 to vector<8x128xf32>
    %604 = arith.mulf %603, %602 : vector<8x128xf32>
    %605 = arith.addf %600, %604 : vector<8x128xf32>
    %c48 = arith.constant 48 : index
    %606 = memref.load %arg16[%c48] : memref<80xf32, #tpu.memory_space<smem>>
    %c125_i32_206 = arith.constant 125 : i32
    %607 = tpu.dynamic_rotate %583 by %c125_i32_206 dim 1 : vector<8x128xf32>, i32 -> vector<8x128xf32>
    %608 = vector.broadcast %606 : f32 to vector<8x128xf32>
    %609 = arith.mulf %608, %607 : vector<8x128xf32>
    %610 = arith.addf %605, %609 : vector<8x128xf32>
    %c49 = arith.constant 49 : index
    %611 = memref.load %arg16[%c49] : memref<80xf32, #tpu.memory_space<smem>>
    %c124_i32_207 = arith.constant 124 : i32
    %612 = tpu.dynamic_rotate %583 by %c124_i32_207 dim 1 : vector<8x128xf32>, i32 -> vector<8x128xf32>
    %613 = vector.broadcast %611 : f32 to vector<8x128xf32>
    %614 = arith.mulf %613, %612 : vector<8x128xf32>
    %615 = arith.addf %610, %614 : vector<8x128xf32>
    %c9_208 = arith.constant 9 : index
    %616 = memref.load %arg17[%c9_208] : memref<16xf32, #tpu.memory_space<smem>>
    %617 = vector.broadcast %616 : f32 to vector<8x128xf32>
    %618 = arith.addf %615, %617 : vector<8x128xf32>
    %cst_209 = arith.constant 0.000000e+00 : f32
    %619 = vector.broadcast %cst_209 : f32 to vector<8x128xf32>
    %620 = arith.cmpf oge, %618, %619 : vector<8x128xf32>
    %cst_210 = arith.constant 0.00999999977 : f32
    %621 = vector.broadcast %cst_210 : f32 to vector<8x128xf32>
    %622 = arith.mulf %621, %618 : vector<8x128xf32>
    %623 = arith.select %620, %618, %622 : vector<8x128xi1>, vector<8x128xf32>
    %624 = vector.broadcast %592 : vector<1x128xf32> to vector<8x128xf32>
    %625 = arith.mulf %623, %624 : vector<8x128xf32>
    %626 = arith.addf %625, %583 : vector<8x128xf32>
    %c18_211 = arith.constant 18 : index
    %c0_212 = arith.constant 0 : index
    %627 = vector.load %arg19[%c18_211, %c0_212] : memref<32x128xf32, #tpu.memory_space<vmem>>, vector<1x128xf32>
    %c19_213 = arith.constant 19 : index
    %c0_214 = arith.constant 0 : index
    %628 = vector.load %arg19[%c19_213, %c0_214] : memref<32x128xf32, #tpu.memory_space<vmem>>, vector<1x128xf32>
    %629 = vector.shape_cast %627 : vector<1x128xf32> to vector<1x128xf32>
    %630 = vector.broadcast %629 : vector<1x128xf32> to vector<8x128xf32>
    %631 = vector.shape_cast %628 : vector<1x128xf32> to vector<1x128xf32>
    %632 = vector.broadcast %631 : vector<1x128xf32> to vector<8x128xf32>
    %633 = arith.select %620, %630, %632 : vector<8x128xi1>, vector<8x128xf32>
    %634 = arith.addf %591, %633 : vector<8x128xf32>
    %c10_215 = arith.constant 10 : index
    %c0_216 = arith.constant 0 : index
    %635 = vector.load %arg18[%c10_215, %c0_216] : memref<16x128xf32, #tpu.memory_space<vmem>>, vector<1x128xf32>
    %c50 = arith.constant 50 : index
    %636 = memref.load %arg16[%c50] : memref<80xf32, #tpu.memory_space<smem>>
    %637 = vector.broadcast %636 : f32 to vector<8x128xf32>
    %638 = arith.mulf %637, %626 : vector<8x128xf32>
    %c51 = arith.constant 51 : index
    %639 = memref.load %arg16[%c51] : memref<80xf32, #tpu.memory_space<smem>>
    %c127_i32_217 = arith.constant 127 : i32
    %640 = tpu.dynamic_rotate %626 by %c127_i32_217 dim 1 : vector<8x128xf32>, i32 -> vector<8x128xf32>
    %641 = vector.broadcast %639 : f32 to vector<8x128xf32>
    %642 = arith.mulf %641, %640 : vector<8x128xf32>
    %643 = arith.addf %638, %642 : vector<8x128xf32>
    %c52 = arith.constant 52 : index
    %644 = memref.load %arg16[%c52] : memref<80xf32, #tpu.memory_space<smem>>
    %c126_i32_218 = arith.constant 126 : i32
    %645 = tpu.dynamic_rotate %626 by %c126_i32_218 dim 1 : vector<8x128xf32>, i32 -> vector<8x128xf32>
    %646 = vector.broadcast %644 : f32 to vector<8x128xf32>
    %647 = arith.mulf %646, %645 : vector<8x128xf32>
    %648 = arith.addf %643, %647 : vector<8x128xf32>
    %c53 = arith.constant 53 : index
    %649 = memref.load %arg16[%c53] : memref<80xf32, #tpu.memory_space<smem>>
    %c125_i32_219 = arith.constant 125 : i32
    %650 = tpu.dynamic_rotate %626 by %c125_i32_219 dim 1 : vector<8x128xf32>, i32 -> vector<8x128xf32>
    %651 = vector.broadcast %649 : f32 to vector<8x128xf32>
    %652 = arith.mulf %651, %650 : vector<8x128xf32>
    %653 = arith.addf %648, %652 : vector<8x128xf32>
    %c54 = arith.constant 54 : index
    %654 = memref.load %arg16[%c54] : memref<80xf32, #tpu.memory_space<smem>>
    %c124_i32_220 = arith.constant 124 : i32
    %655 = tpu.dynamic_rotate %626 by %c124_i32_220 dim 1 : vector<8x128xf32>, i32 -> vector<8x128xf32>
    %656 = vector.broadcast %654 : f32 to vector<8x128xf32>
    %657 = arith.mulf %656, %655 : vector<8x128xf32>
    %658 = arith.addf %653, %657 : vector<8x128xf32>
    %c10_221 = arith.constant 10 : index
    %659 = memref.load %arg17[%c10_221] : memref<16xf32, #tpu.memory_space<smem>>
    %660 = vector.broadcast %659 : f32 to vector<8x128xf32>
    %661 = arith.addf %658, %660 : vector<8x128xf32>
    %cst_222 = arith.constant 0.000000e+00 : f32
    %662 = vector.broadcast %cst_222 : f32 to vector<8x128xf32>
    %663 = arith.cmpf oge, %661, %662 : vector<8x128xf32>
    %cst_223 = arith.constant 0.00999999977 : f32
    %664 = vector.broadcast %cst_223 : f32 to vector<8x128xf32>
    %665 = arith.mulf %664, %661 : vector<8x128xf32>
    %666 = arith.select %663, %661, %665 : vector<8x128xi1>, vector<8x128xf32>
    %667 = vector.broadcast %635 : vector<1x128xf32> to vector<8x128xf32>
    %668 = arith.mulf %666, %667 : vector<8x128xf32>
    %669 = arith.addf %668, %626 : vector<8x128xf32>
    %c20_224 = arith.constant 20 : index
    %c0_225 = arith.constant 0 : index
    %670 = vector.load %arg19[%c20_224, %c0_225] : memref<32x128xf32, #tpu.memory_space<vmem>>, vector<1x128xf32>
    %c21_226 = arith.constant 21 : index
    %c0_227 = arith.constant 0 : index
    %671 = vector.load %arg19[%c21_226, %c0_227] : memref<32x128xf32, #tpu.memory_space<vmem>>, vector<1x128xf32>
    %672 = vector.shape_cast %670 : vector<1x128xf32> to vector<1x128xf32>
    %673 = vector.broadcast %672 : vector<1x128xf32> to vector<8x128xf32>
    %674 = vector.shape_cast %671 : vector<1x128xf32> to vector<1x128xf32>
    %675 = vector.broadcast %674 : vector<1x128xf32> to vector<8x128xf32>
    %676 = arith.select %663, %673, %675 : vector<8x128xi1>, vector<8x128xf32>
    %677 = arith.addf %634, %676 : vector<8x128xf32>
    %c11_228 = arith.constant 11 : index
    %c0_229 = arith.constant 0 : index
    %678 = vector.load %arg18[%c11_228, %c0_229] : memref<16x128xf32, #tpu.memory_space<vmem>>, vector<1x128xf32>
    %c55 = arith.constant 55 : index
    %679 = memref.load %arg16[%c55] : memref<80xf32, #tpu.memory_space<smem>>
    %680 = vector.broadcast %679 : f32 to vector<8x128xf32>
    %681 = arith.mulf %680, %669 : vector<8x128xf32>
    %c56 = arith.constant 56 : index
    %682 = memref.load %arg16[%c56] : memref<80xf32, #tpu.memory_space<smem>>
    %c127_i32_230 = arith.constant 127 : i32
    %683 = tpu.dynamic_rotate %669 by %c127_i32_230 dim 1 : vector<8x128xf32>, i32 -> vector<8x128xf32>
    %684 = vector.broadcast %682 : f32 to vector<8x128xf32>
    %685 = arith.mulf %684, %683 : vector<8x128xf32>
    %686 = arith.addf %681, %685 : vector<8x128xf32>
    %c57 = arith.constant 57 : index
    %687 = memref.load %arg16[%c57] : memref<80xf32, #tpu.memory_space<smem>>
    %c126_i32_231 = arith.constant 126 : i32
    %688 = tpu.dynamic_rotate %669 by %c126_i32_231 dim 1 : vector<8x128xf32>, i32 -> vector<8x128xf32>
    %689 = vector.broadcast %687 : f32 to vector<8x128xf32>
    %690 = arith.mulf %689, %688 : vector<8x128xf32>
    %691 = arith.addf %686, %690 : vector<8x128xf32>
    %c58 = arith.constant 58 : index
    %692 = memref.load %arg16[%c58] : memref<80xf32, #tpu.memory_space<smem>>
    %c125_i32_232 = arith.constant 125 : i32
    %693 = tpu.dynamic_rotate %669 by %c125_i32_232 dim 1 : vector<8x128xf32>, i32 -> vector<8x128xf32>
    %694 = vector.broadcast %692 : f32 to vector<8x128xf32>
    %695 = arith.mulf %694, %693 : vector<8x128xf32>
    %696 = arith.addf %691, %695 : vector<8x128xf32>
    %c59 = arith.constant 59 : index
    %697 = memref.load %arg16[%c59] : memref<80xf32, #tpu.memory_space<smem>>
    %c124_i32_233 = arith.constant 124 : i32
    %698 = tpu.dynamic_rotate %669 by %c124_i32_233 dim 1 : vector<8x128xf32>, i32 -> vector<8x128xf32>
    %699 = vector.broadcast %697 : f32 to vector<8x128xf32>
    %700 = arith.mulf %699, %698 : vector<8x128xf32>
    %701 = arith.addf %696, %700 : vector<8x128xf32>
    %c11_234 = arith.constant 11 : index
    %702 = memref.load %arg17[%c11_234] : memref<16xf32, #tpu.memory_space<smem>>
    %703 = vector.broadcast %702 : f32 to vector<8x128xf32>
    %704 = arith.addf %701, %703 : vector<8x128xf32>
    %cst_235 = arith.constant 0.000000e+00 : f32
    %705 = vector.broadcast %cst_235 : f32 to vector<8x128xf32>
    %706 = arith.cmpf oge, %704, %705 : vector<8x128xf32>
    %cst_236 = arith.constant 0.00999999977 : f32
    %707 = vector.broadcast %cst_236 : f32 to vector<8x128xf32>
    %708 = arith.mulf %707, %704 : vector<8x128xf32>
    %709 = arith.select %706, %704, %708 : vector<8x128xi1>, vector<8x128xf32>
    %710 = vector.broadcast %678 : vector<1x128xf32> to vector<8x128xf32>
    %711 = arith.mulf %709, %710 : vector<8x128xf32>
    %712 = arith.addf %711, %669 : vector<8x128xf32>
    %c22_237 = arith.constant 22 : index
    %c0_238 = arith.constant 0 : index
    %713 = vector.load %arg19[%c22_237, %c0_238] : memref<32x128xf32, #tpu.memory_space<vmem>>, vector<1x128xf32>
    %c23_239 = arith.constant 23 : index
    %c0_240 = arith.constant 0 : index
    %714 = vector.load %arg19[%c23_239, %c0_240] : memref<32x128xf32, #tpu.memory_space<vmem>>, vector<1x128xf32>
    %715 = vector.shape_cast %713 : vector<1x128xf32> to vector<1x128xf32>
    %716 = vector.broadcast %715 : vector<1x128xf32> to vector<8x128xf32>
    %717 = vector.shape_cast %714 : vector<1x128xf32> to vector<1x128xf32>
    %718 = vector.broadcast %717 : vector<1x128xf32> to vector<8x128xf32>
    %719 = arith.select %706, %716, %718 : vector<8x128xi1>, vector<8x128xf32>
    %720 = arith.addf %677, %719 : vector<8x128xf32>
    %c12_241 = arith.constant 12 : index
    %c0_242 = arith.constant 0 : index
    %721 = vector.load %arg18[%c12_241, %c0_242] : memref<16x128xf32, #tpu.memory_space<vmem>>, vector<1x128xf32>
    %c60 = arith.constant 60 : index
    %722 = memref.load %arg16[%c60] : memref<80xf32, #tpu.memory_space<smem>>
    %723 = vector.broadcast %722 : f32 to vector<8x128xf32>
    %724 = arith.mulf %723, %712 : vector<8x128xf32>
    %c61 = arith.constant 61 : index
    %725 = memref.load %arg16[%c61] : memref<80xf32, #tpu.memory_space<smem>>
    %c127_i32_243 = arith.constant 127 : i32
    %726 = tpu.dynamic_rotate %712 by %c127_i32_243 dim 1 : vector<8x128xf32>, i32 -> vector<8x128xf32>
    %727 = vector.broadcast %725 : f32 to vector<8x128xf32>
    %728 = arith.mulf %727, %726 : vector<8x128xf32>
    %729 = arith.addf %724, %728 : vector<8x128xf32>
    %c62 = arith.constant 62 : index
    %730 = memref.load %arg16[%c62] : memref<80xf32, #tpu.memory_space<smem>>
    %c126_i32_244 = arith.constant 126 : i32
    %731 = tpu.dynamic_rotate %712 by %c126_i32_244 dim 1 : vector<8x128xf32>, i32 -> vector<8x128xf32>
    %732 = vector.broadcast %730 : f32 to vector<8x128xf32>
    %733 = arith.mulf %732, %731 : vector<8x128xf32>
    %734 = arith.addf %729, %733 : vector<8x128xf32>
    %c63 = arith.constant 63 : index
    %735 = memref.load %arg16[%c63] : memref<80xf32, #tpu.memory_space<smem>>
    %c125_i32_245 = arith.constant 125 : i32
    %736 = tpu.dynamic_rotate %712 by %c125_i32_245 dim 1 : vector<8x128xf32>, i32 -> vector<8x128xf32>
    %737 = vector.broadcast %735 : f32 to vector<8x128xf32>
    %738 = arith.mulf %737, %736 : vector<8x128xf32>
    %739 = arith.addf %734, %738 : vector<8x128xf32>
    %c64 = arith.constant 64 : index
    %740 = memref.load %arg16[%c64] : memref<80xf32, #tpu.memory_space<smem>>
    %c124_i32_246 = arith.constant 124 : i32
    %741 = tpu.dynamic_rotate %712 by %c124_i32_246 dim 1 : vector<8x128xf32>, i32 -> vector<8x128xf32>
    %742 = vector.broadcast %740 : f32 to vector<8x128xf32>
    %743 = arith.mulf %742, %741 : vector<8x128xf32>
    %744 = arith.addf %739, %743 : vector<8x128xf32>
    %c12_247 = arith.constant 12 : index
    %745 = memref.load %arg17[%c12_247] : memref<16xf32, #tpu.memory_space<smem>>
    %746 = vector.broadcast %745 : f32 to vector<8x128xf32>
    %747 = arith.addf %744, %746 : vector<8x128xf32>
    %cst_248 = arith.constant 0.000000e+00 : f32
    %748 = vector.broadcast %cst_248 : f32 to vector<8x128xf32>
    %749 = arith.cmpf oge, %747, %748 : vector<8x128xf32>
    %cst_249 = arith.constant 0.00999999977 : f32
    %750 = vector.broadcast %cst_249 : f32 to vector<8x128xf32>
    %751 = arith.mulf %750, %747 : vector<8x128xf32>
    %752 = arith.select %749, %747, %751 : vector<8x128xi1>, vector<8x128xf32>
    %753 = vector.broadcast %721 : vector<1x128xf32> to vector<8x128xf32>
    %754 = arith.mulf %752, %753 : vector<8x128xf32>
    %755 = arith.addf %754, %712 : vector<8x128xf32>
    %c24_250 = arith.constant 24 : index
    %c0_251 = arith.constant 0 : index
    %756 = vector.load %arg19[%c24_250, %c0_251] : memref<32x128xf32, #tpu.memory_space<vmem>>, vector<1x128xf32>
    %c25_252 = arith.constant 25 : index
    %c0_253 = arith.constant 0 : index
    %757 = vector.load %arg19[%c25_252, %c0_253] : memref<32x128xf32, #tpu.memory_space<vmem>>, vector<1x128xf32>
    %758 = vector.shape_cast %756 : vector<1x128xf32> to vector<1x128xf32>
    %759 = vector.broadcast %758 : vector<1x128xf32> to vector<8x128xf32>
    %760 = vector.shape_cast %757 : vector<1x128xf32> to vector<1x128xf32>
    %761 = vector.broadcast %760 : vector<1x128xf32> to vector<8x128xf32>
    %762 = arith.select %749, %759, %761 : vector<8x128xi1>, vector<8x128xf32>
    %763 = arith.addf %720, %762 : vector<8x128xf32>
    %c13_254 = arith.constant 13 : index
    %c0_255 = arith.constant 0 : index
    %764 = vector.load %arg18[%c13_254, %c0_255] : memref<16x128xf32, #tpu.memory_space<vmem>>, vector<1x128xf32>
    %c65 = arith.constant 65 : index
    %765 = memref.load %arg16[%c65] : memref<80xf32, #tpu.memory_space<smem>>
    %766 = vector.broadcast %765 : f32 to vector<8x128xf32>
    %767 = arith.mulf %766, %755 : vector<8x128xf32>
    %c66 = arith.constant 66 : index
    %768 = memref.load %arg16[%c66] : memref<80xf32, #tpu.memory_space<smem>>
    %c127_i32_256 = arith.constant 127 : i32
    %769 = tpu.dynamic_rotate %755 by %c127_i32_256 dim 1 : vector<8x128xf32>, i32 -> vector<8x128xf32>
    %770 = vector.broadcast %768 : f32 to vector<8x128xf32>
    %771 = arith.mulf %770, %769 : vector<8x128xf32>
    %772 = arith.addf %767, %771 : vector<8x128xf32>
    %c67 = arith.constant 67 : index
    %773 = memref.load %arg16[%c67] : memref<80xf32, #tpu.memory_space<smem>>
    %c126_i32_257 = arith.constant 126 : i32
    %774 = tpu.dynamic_rotate %755 by %c126_i32_257 dim 1 : vector<8x128xf32>, i32 -> vector<8x128xf32>
    %775 = vector.broadcast %773 : f32 to vector<8x128xf32>
    %776 = arith.mulf %775, %774 : vector<8x128xf32>
    %777 = arith.addf %772, %776 : vector<8x128xf32>
    %c68 = arith.constant 68 : index
    %778 = memref.load %arg16[%c68] : memref<80xf32, #tpu.memory_space<smem>>
    %c125_i32_258 = arith.constant 125 : i32
    %779 = tpu.dynamic_rotate %755 by %c125_i32_258 dim 1 : vector<8x128xf32>, i32 -> vector<8x128xf32>
    %780 = vector.broadcast %778 : f32 to vector<8x128xf32>
    %781 = arith.mulf %780, %779 : vector<8x128xf32>
    %782 = arith.addf %777, %781 : vector<8x128xf32>
    %c69 = arith.constant 69 : index
    %783 = memref.load %arg16[%c69] : memref<80xf32, #tpu.memory_space<smem>>
    %c124_i32_259 = arith.constant 124 : i32
    %784 = tpu.dynamic_rotate %755 by %c124_i32_259 dim 1 : vector<8x128xf32>, i32 -> vector<8x128xf32>
    %785 = vector.broadcast %783 : f32 to vector<8x128xf32>
    %786 = arith.mulf %785, %784 : vector<8x128xf32>
    %787 = arith.addf %782, %786 : vector<8x128xf32>
    %c13_260 = arith.constant 13 : index
    %788 = memref.load %arg17[%c13_260] : memref<16xf32, #tpu.memory_space<smem>>
    %789 = vector.broadcast %788 : f32 to vector<8x128xf32>
    %790 = arith.addf %787, %789 : vector<8x128xf32>
    %cst_261 = arith.constant 0.000000e+00 : f32
    %791 = vector.broadcast %cst_261 : f32 to vector<8x128xf32>
    %792 = arith.cmpf oge, %790, %791 : vector<8x128xf32>
    %cst_262 = arith.constant 0.00999999977 : f32
    %793 = vector.broadcast %cst_262 : f32 to vector<8x128xf32>
    %794 = arith.mulf %793, %790 : vector<8x128xf32>
    %795 = arith.select %792, %790, %794 : vector<8x128xi1>, vector<8x128xf32>
    %796 = vector.broadcast %764 : vector<1x128xf32> to vector<8x128xf32>
    %797 = arith.mulf %795, %796 : vector<8x128xf32>
    %798 = arith.addf %797, %755 : vector<8x128xf32>
    %c26_263 = arith.constant 26 : index
    %c0_264 = arith.constant 0 : index
    %799 = vector.load %arg19[%c26_263, %c0_264] : memref<32x128xf32, #tpu.memory_space<vmem>>, vector<1x128xf32>
    %c27_265 = arith.constant 27 : index
    %c0_266 = arith.constant 0 : index
    %800 = vector.load %arg19[%c27_265, %c0_266] : memref<32x128xf32, #tpu.memory_space<vmem>>, vector<1x128xf32>
    %801 = vector.shape_cast %799 : vector<1x128xf32> to vector<1x128xf32>
    %802 = vector.broadcast %801 : vector<1x128xf32> to vector<8x128xf32>
    %803 = vector.shape_cast %800 : vector<1x128xf32> to vector<1x128xf32>
    %804 = vector.broadcast %803 : vector<1x128xf32> to vector<8x128xf32>
    %805 = arith.select %792, %802, %804 : vector<8x128xi1>, vector<8x128xf32>
    %806 = arith.addf %763, %805 : vector<8x128xf32>
    %c14_267 = arith.constant 14 : index
    %c0_268 = arith.constant 0 : index
    %807 = vector.load %arg18[%c14_267, %c0_268] : memref<16x128xf32, #tpu.memory_space<vmem>>, vector<1x128xf32>
    %c70 = arith.constant 70 : index
    %808 = memref.load %arg16[%c70] : memref<80xf32, #tpu.memory_space<smem>>
    %809 = vector.broadcast %808 : f32 to vector<8x128xf32>
    %810 = arith.mulf %809, %798 : vector<8x128xf32>
    %c71 = arith.constant 71 : index
    %811 = memref.load %arg16[%c71] : memref<80xf32, #tpu.memory_space<smem>>
    %c127_i32_269 = arith.constant 127 : i32
    %812 = tpu.dynamic_rotate %798 by %c127_i32_269 dim 1 : vector<8x128xf32>, i32 -> vector<8x128xf32>
    %813 = vector.broadcast %811 : f32 to vector<8x128xf32>
    %814 = arith.mulf %813, %812 : vector<8x128xf32>
    %815 = arith.addf %810, %814 : vector<8x128xf32>
    %c72 = arith.constant 72 : index
    %816 = memref.load %arg16[%c72] : memref<80xf32, #tpu.memory_space<smem>>
    %c126_i32_270 = arith.constant 126 : i32
    %817 = tpu.dynamic_rotate %798 by %c126_i32_270 dim 1 : vector<8x128xf32>, i32 -> vector<8x128xf32>
    %818 = vector.broadcast %816 : f32 to vector<8x128xf32>
    %819 = arith.mulf %818, %817 : vector<8x128xf32>
    %820 = arith.addf %815, %819 : vector<8x128xf32>
    %c73 = arith.constant 73 : index
    %821 = memref.load %arg16[%c73] : memref<80xf32, #tpu.memory_space<smem>>
    %c125_i32_271 = arith.constant 125 : i32
    %822 = tpu.dynamic_rotate %798 by %c125_i32_271 dim 1 : vector<8x128xf32>, i32 -> vector<8x128xf32>
    %823 = vector.broadcast %821 : f32 to vector<8x128xf32>
    %824 = arith.mulf %823, %822 : vector<8x128xf32>
    %825 = arith.addf %820, %824 : vector<8x128xf32>
    %c74 = arith.constant 74 : index
    %826 = memref.load %arg16[%c74] : memref<80xf32, #tpu.memory_space<smem>>
    %c124_i32_272 = arith.constant 124 : i32
    %827 = tpu.dynamic_rotate %798 by %c124_i32_272 dim 1 : vector<8x128xf32>, i32 -> vector<8x128xf32>
    %828 = vector.broadcast %826 : f32 to vector<8x128xf32>
    %829 = arith.mulf %828, %827 : vector<8x128xf32>
    %830 = arith.addf %825, %829 : vector<8x128xf32>
    %c14_273 = arith.constant 14 : index
    %831 = memref.load %arg17[%c14_273] : memref<16xf32, #tpu.memory_space<smem>>
    %832 = vector.broadcast %831 : f32 to vector<8x128xf32>
    %833 = arith.addf %830, %832 : vector<8x128xf32>
    %cst_274 = arith.constant 0.000000e+00 : f32
    %834 = vector.broadcast %cst_274 : f32 to vector<8x128xf32>
    %835 = arith.cmpf oge, %833, %834 : vector<8x128xf32>
    %cst_275 = arith.constant 0.00999999977 : f32
    %836 = vector.broadcast %cst_275 : f32 to vector<8x128xf32>
    %837 = arith.mulf %836, %833 : vector<8x128xf32>
    %838 = arith.select %835, %833, %837 : vector<8x128xi1>, vector<8x128xf32>
    %839 = vector.broadcast %807 : vector<1x128xf32> to vector<8x128xf32>
    %840 = arith.mulf %838, %839 : vector<8x128xf32>
    %841 = arith.addf %840, %798 : vector<8x128xf32>
    %c28_276 = arith.constant 28 : index
    %c0_277 = arith.constant 0 : index
    %842 = vector.load %arg19[%c28_276, %c0_277] : memref<32x128xf32, #tpu.memory_space<vmem>>, vector<1x128xf32>
    %c29_278 = arith.constant 29 : index
    %c0_279 = arith.constant 0 : index
    %843 = vector.load %arg19[%c29_278, %c0_279] : memref<32x128xf32, #tpu.memory_space<vmem>>, vector<1x128xf32>
    %844 = vector.shape_cast %842 : vector<1x128xf32> to vector<1x128xf32>
    %845 = vector.broadcast %844 : vector<1x128xf32> to vector<8x128xf32>
    %846 = vector.shape_cast %843 : vector<1x128xf32> to vector<1x128xf32>
    %847 = vector.broadcast %846 : vector<1x128xf32> to vector<8x128xf32>
    %848 = arith.select %835, %845, %847 : vector<8x128xi1>, vector<8x128xf32>
    %849 = arith.addf %806, %848 : vector<8x128xf32>
    %c15_280 = arith.constant 15 : index
    %c0_281 = arith.constant 0 : index
    %850 = vector.load %arg18[%c15_280, %c0_281] : memref<16x128xf32, #tpu.memory_space<vmem>>, vector<1x128xf32>
    %c75 = arith.constant 75 : index
    %851 = memref.load %arg16[%c75] : memref<80xf32, #tpu.memory_space<smem>>
    %852 = vector.broadcast %851 : f32 to vector<8x128xf32>
    %853 = arith.mulf %852, %841 : vector<8x128xf32>
    %c76 = arith.constant 76 : index
    %854 = memref.load %arg16[%c76] : memref<80xf32, #tpu.memory_space<smem>>
    %c127_i32_282 = arith.constant 127 : i32
    %855 = tpu.dynamic_rotate %841 by %c127_i32_282 dim 1 : vector<8x128xf32>, i32 -> vector<8x128xf32>
    %856 = vector.broadcast %854 : f32 to vector<8x128xf32>
    %857 = arith.mulf %856, %855 : vector<8x128xf32>
    %858 = arith.addf %853, %857 : vector<8x128xf32>
    %c77 = arith.constant 77 : index
    %859 = memref.load %arg16[%c77] : memref<80xf32, #tpu.memory_space<smem>>
    %c126_i32_283 = arith.constant 126 : i32
    %860 = tpu.dynamic_rotate %841 by %c126_i32_283 dim 1 : vector<8x128xf32>, i32 -> vector<8x128xf32>
    %861 = vector.broadcast %859 : f32 to vector<8x128xf32>
    %862 = arith.mulf %861, %860 : vector<8x128xf32>
    %863 = arith.addf %858, %862 : vector<8x128xf32>
    %c78 = arith.constant 78 : index
    %864 = memref.load %arg16[%c78] : memref<80xf32, #tpu.memory_space<smem>>
    %c125_i32_284 = arith.constant 125 : i32
    %865 = tpu.dynamic_rotate %841 by %c125_i32_284 dim 1 : vector<8x128xf32>, i32 -> vector<8x128xf32>
    %866 = vector.broadcast %864 : f32 to vector<8x128xf32>
    %867 = arith.mulf %866, %865 : vector<8x128xf32>
    %868 = arith.addf %863, %867 : vector<8x128xf32>
    %c79 = arith.constant 79 : index
    %869 = memref.load %arg16[%c79] : memref<80xf32, #tpu.memory_space<smem>>
    %c124_i32_285 = arith.constant 124 : i32
    %870 = tpu.dynamic_rotate %841 by %c124_i32_285 dim 1 : vector<8x128xf32>, i32 -> vector<8x128xf32>
    %871 = vector.broadcast %869 : f32 to vector<8x128xf32>
    %872 = arith.mulf %871, %870 : vector<8x128xf32>
    %873 = arith.addf %868, %872 : vector<8x128xf32>
    %c15_286 = arith.constant 15 : index
    %874 = memref.load %arg17[%c15_286] : memref<16xf32, #tpu.memory_space<smem>>
    %875 = vector.broadcast %874 : f32 to vector<8x128xf32>
    %876 = arith.addf %873, %875 : vector<8x128xf32>
    %cst_287 = arith.constant 0.000000e+00 : f32
    %877 = vector.broadcast %cst_287 : f32 to vector<8x128xf32>
    %878 = arith.cmpf oge, %876, %877 : vector<8x128xf32>
    %cst_288 = arith.constant 0.00999999977 : f32
    %879 = vector.broadcast %cst_288 : f32 to vector<8x128xf32>
    %880 = arith.mulf %879, %876 : vector<8x128xf32>
    %881 = arith.select %878, %876, %880 : vector<8x128xi1>, vector<8x128xf32>
    %882 = vector.broadcast %850 : vector<1x128xf32> to vector<8x128xf32>
    %883 = arith.mulf %881, %882 : vector<8x128xf32>
    %884 = arith.addf %883, %841 : vector<8x128xf32>
    %c30_289 = arith.constant 30 : index
    %c0_290 = arith.constant 0 : index
    %885 = vector.load %arg19[%c30_289, %c0_290] : memref<32x128xf32, #tpu.memory_space<vmem>>, vector<1x128xf32>
    %c31_291 = arith.constant 31 : index
    %c0_292 = arith.constant 0 : index
    %886 = vector.load %arg19[%c31_291, %c0_292] : memref<32x128xf32, #tpu.memory_space<vmem>>, vector<1x128xf32>
    %887 = vector.shape_cast %885 : vector<1x128xf32> to vector<1x128xf32>
    %888 = vector.broadcast %887 : vector<1x128xf32> to vector<8x128xf32>
    %889 = vector.shape_cast %886 : vector<1x128xf32> to vector<1x128xf32>
    %890 = vector.broadcast %889 : vector<1x128xf32> to vector<8x128xf32>
    %891 = arith.select %878, %888, %890 : vector<8x128xi1>, vector<8x128xf32>
    %892 = arith.addf %849, %891 : vector<8x128xf32>
    %cst_293 = arith.constant dense<0.000000e+00> : vector<8xf32>
    %893 = vector.multi_reduction <add>, %892, %cst_293 [1] : vector<8x128xf32> to vector<8xf32>
    %894 = vector.shape_cast %893 : vector<8xf32> to vector<8x1xf32>
    %895 = arith.truncf %884 : vector<8x128xf32> to vector<8x128xbf16>
    %c0_294 = arith.constant 0 : index
    %c0_295 = arith.constant 0 : index
    %896 = vector.load %arg10[%c0_294, %c0_295] : memref<128x128xbf16, #tpu.memory_space<vmem>>, vector<128x128xbf16>
    %cst_296 = arith.constant dense<0.000000e+00> : vector<8x128xf32>
    %897 = tpu.matmul %895, %896, %cst_296 {dimension_numbers = #tpu.dot_dimension_numbers<[1], [0], [0], [1], [0, 0, 1, 1], [], []>} : vector<8x128xbf16>, vector<128x128xbf16>, vector<8x128xf32> -> vector<8x128xf32>
    %cst_297 = arith.constant dense<0.000000e+00> : vector<128xf32>
    %898 = vector.multi_reduction <add>, %897, %cst_297 [0] : vector<8x128xf32> to vector<128xf32>
    %899 = vector.shape_cast %898 : vector<128xf32> to vector<1x128xf32>
    %cst_298 = arith.constant 1.250000e-01 : f32
    %900 = vector.broadcast %cst_298 : f32 to vector<1x128xf32>
    %901 = arith.mulf %899, %900 : vector<1x128xf32>
    %902 = arith.mulf %897, %897 : vector<8x128xf32>
    %cst_299 = arith.constant dense<0.000000e+00> : vector<128xf32>
    %903 = vector.multi_reduction <add>, %902, %cst_299 [0] : vector<8x128xf32> to vector<128xf32>
    %904 = vector.shape_cast %903 : vector<128xf32> to vector<1x128xf32>
    %cst_300 = arith.constant 1.250000e-01 : f32
    %905 = vector.broadcast %cst_300 : f32 to vector<1x128xf32>
    %906 = arith.mulf %904, %905 : vector<1x128xf32>
    %907 = arith.mulf %901, %901 : vector<1x128xf32>
    %908 = arith.subf %906, %907 : vector<1x128xf32>
    %cst_301 = arith.constant 0.000000e+00 : f32
    %909 = vector.broadcast %cst_301 : f32 to vector<1x128xf32>
    %910 = arith.maximumf %908, %909 : vector<1x128xf32>
    %c6_302 = arith.constant 6 : index
    %c0_303 = arith.constant 0 : index
    %911 = vector.load %arg2[%c6_302, %c0_303] : memref<10x384xf32, #tpu.memory_space<vmem>>, vector<1x128xf32>
    %c6_304 = arith.constant 6 : index
    %c0_305 = arith.constant 0 : index
    %912 = vector.load %arg3[%c6_304, %c0_305] : memref<10x384xf32, #tpu.memory_space<vmem>>, vector<1x128xf32>
    %913 = vector.broadcast %901 : vector<1x128xf32> to vector<8x128xf32>
    %914 = arith.subf %897, %913 : vector<8x128xf32>
    %cst_306 = arith.constant 9.99999974E-6 : f32
    %915 = vector.broadcast %cst_306 : f32 to vector<1x128xf32>
    %916 = arith.addf %910, %915 : vector<1x128xf32>
    %917 = math.rsqrt %916 : vector<1x128xf32>
    %918 = vector.broadcast %917 : vector<1x128xf32> to vector<8x128xf32>
    %919 = arith.mulf %914, %918 : vector<8x128xf32>
    %920 = vector.broadcast %911 : vector<1x128xf32> to vector<8x128xf32>
    %921 = arith.mulf %919, %920 : vector<8x128xf32>
    %922 = vector.broadcast %912 : vector<1x128xf32> to vector<8x128xf32>
    %923 = arith.addf %921, %922 : vector<8x128xf32>
    %924 = math.tanh %923 : vector<8x128xf32>
    %925 = arith.truncf %924 : vector<8x128xf32> to vector<8x128xbf16>
    %c0_307 = arith.constant 0 : index
    %c0_308 = arith.constant 0 : index
    %926 = vector.load %arg11[%c0_307, %c0_308] : memref<128x128xbf16, #tpu.memory_space<vmem>>, vector<128x128xbf16>
    %cst_309 = arith.constant dense<0.000000e+00> : vector<8x128xf32>
    %927 = tpu.matmul %925, %926, %cst_309 {dimension_numbers = #tpu.dot_dimension_numbers<[1], [0], [0], [1], [0, 0, 1, 1], [], []>} : vector<8x128xbf16>, vector<128x128xbf16>, vector<8x128xf32> -> vector<8x128xf32>
    %cst_310 = arith.constant dense<0.000000e+00> : vector<128xf32>
    %928 = vector.multi_reduction <add>, %927, %cst_310 [0] : vector<8x128xf32> to vector<128xf32>
    %929 = vector.shape_cast %928 : vector<128xf32> to vector<1x128xf32>
    %cst_311 = arith.constant 1.250000e-01 : f32
    %930 = vector.broadcast %cst_311 : f32 to vector<1x128xf32>
    %931 = arith.mulf %929, %930 : vector<1x128xf32>
    %932 = arith.mulf %927, %927 : vector<8x128xf32>
    %cst_312 = arith.constant dense<0.000000e+00> : vector<128xf32>
    %933 = vector.multi_reduction <add>, %932, %cst_312 [0] : vector<8x128xf32> to vector<128xf32>
    %934 = vector.shape_cast %933 : vector<128xf32> to vector<1x128xf32>
    %cst_313 = arith.constant 1.250000e-01 : f32
    %935 = vector.broadcast %cst_313 : f32 to vector<1x128xf32>
    %936 = arith.mulf %934, %935 : vector<1x128xf32>
    %937 = arith.mulf %931, %931 : vector<1x128xf32>
    %938 = arith.subf %936, %937 : vector<1x128xf32>
    %cst_314 = arith.constant 0.000000e+00 : f32
    %939 = vector.broadcast %cst_314 : f32 to vector<1x128xf32>
    %940 = arith.maximumf %938, %939 : vector<1x128xf32>
    %c7_315 = arith.constant 7 : index
    %c0_316 = arith.constant 0 : index
    %941 = vector.load %arg2[%c7_315, %c0_316] : memref<10x384xf32, #tpu.memory_space<vmem>>, vector<1x128xf32>
    %c7_317 = arith.constant 7 : index
    %c0_318 = arith.constant 0 : index
    %942 = vector.load %arg3[%c7_317, %c0_318] : memref<10x384xf32, #tpu.memory_space<vmem>>, vector<1x128xf32>
    %943 = vector.broadcast %931 : vector<1x128xf32> to vector<8x128xf32>
    %944 = arith.subf %927, %943 : vector<8x128xf32>
    %cst_319 = arith.constant 9.99999974E-6 : f32
    %945 = vector.broadcast %cst_319 : f32 to vector<1x128xf32>
    %946 = arith.addf %940, %945 : vector<1x128xf32>
    %947 = math.rsqrt %946 : vector<1x128xf32>
    %948 = vector.broadcast %947 : vector<1x128xf32> to vector<8x128xf32>
    %949 = arith.mulf %944, %948 : vector<8x128xf32>
    %950 = vector.broadcast %941 : vector<1x128xf32> to vector<8x128xf32>
    %951 = arith.mulf %949, %950 : vector<8x128xf32>
    %952 = vector.broadcast %942 : vector<1x128xf32> to vector<8x128xf32>
    %953 = arith.addf %951, %952 : vector<8x128xf32>
    %954 = math.tanh %953 : vector<8x128xf32>
    %955 = arith.truncf %954 : vector<8x128xf32> to vector<8x128xbf16>
    %c0_320 = arith.constant 0 : index
    %c0_321 = arith.constant 0 : index
    %956 = vector.load %arg12[%c0_320, %c0_321] : memref<128x256xbf16, #tpu.memory_space<vmem>>, vector<128x256xbf16>
    %cst_322 = arith.constant dense<0.000000e+00> : vector<8x256xf32>
    %957 = tpu.matmul %955, %956, %cst_322 {dimension_numbers = #tpu.dot_dimension_numbers<[1], [0], [0], [1], [0, 0, 1, 1], [], []>} : vector<8x128xbf16>, vector<128x256xbf16>, vector<8x256xf32> -> vector<8x256xf32>
    %cst_323 = arith.constant dense<0.000000e+00> : vector<256xf32>
    %958 = vector.multi_reduction <add>, %957, %cst_323 [0] : vector<8x256xf32> to vector<256xf32>
    %959 = vector.shape_cast %958 : vector<256xf32> to vector<1x256xf32>
    %cst_324 = arith.constant 1.250000e-01 : f32
    %960 = vector.broadcast %cst_324 : f32 to vector<1x256xf32>
    %961 = arith.mulf %959, %960 : vector<1x256xf32>
    %962 = arith.mulf %957, %957 : vector<8x256xf32>
    %cst_325 = arith.constant dense<0.000000e+00> : vector<256xf32>
    %963 = vector.multi_reduction <add>, %962, %cst_325 [0] : vector<8x256xf32> to vector<256xf32>
    %964 = vector.shape_cast %963 : vector<256xf32> to vector<1x256xf32>
    %cst_326 = arith.constant 1.250000e-01 : f32
    %965 = vector.broadcast %cst_326 : f32 to vector<1x256xf32>
    %966 = arith.mulf %964, %965 : vector<1x256xf32>
    %967 = arith.mulf %961, %961 : vector<1x256xf32>
    %968 = arith.subf %966, %967 : vector<1x256xf32>
    %cst_327 = arith.constant 0.000000e+00 : f32
    %969 = vector.broadcast %cst_327 : f32 to vector<1x256xf32>
    %970 = arith.maximumf %968, %969 : vector<1x256xf32>
    %c8_328 = arith.constant 8 : index
    %c0_329 = arith.constant 0 : index
    %971 = vector.load %arg2[%c8_328, %c0_329] : memref<10x384xf32, #tpu.memory_space<vmem>>, vector<1x256xf32>
    %c8_330 = arith.constant 8 : index
    %c0_331 = arith.constant 0 : index
    %972 = vector.load %arg3[%c8_330, %c0_331] : memref<10x384xf32, #tpu.memory_space<vmem>>, vector<1x256xf32>
    %973 = vector.broadcast %961 : vector<1x256xf32> to vector<8x256xf32>
    %974 = arith.subf %957, %973 : vector<8x256xf32>
    %cst_332 = arith.constant 9.99999974E-6 : f32
    %975 = vector.broadcast %cst_332 : f32 to vector<1x256xf32>
    %976 = arith.addf %970, %975 : vector<1x256xf32>
    %977 = math.rsqrt %976 : vector<1x256xf32>
    %978 = vector.broadcast %977 : vector<1x256xf32> to vector<8x256xf32>
    %979 = arith.mulf %974, %978 : vector<8x256xf32>
    %980 = vector.broadcast %971 : vector<1x256xf32> to vector<8x256xf32>
    %981 = arith.mulf %979, %980 : vector<8x256xf32>
    %982 = vector.broadcast %972 : vector<1x256xf32> to vector<8x256xf32>
    %983 = arith.addf %981, %982 : vector<8x256xf32>
    %984 = arith.truncf %477 : vector<8x256xf32> to vector<8x256xbf16>
    %c0_333 = arith.constant 0 : index
    %c0_334 = arith.constant 0 : index
    %985 = vector.load %arg13[%c0_333, %c0_334] : memref<256x256xbf16, #tpu.memory_space<vmem>>, vector<256x256xbf16>
    %cst_335 = arith.constant dense<0.000000e+00> : vector<8x256xf32>
    %986 = tpu.matmul %984, %985, %cst_335 {dimension_numbers = #tpu.dot_dimension_numbers<[1], [0], [0], [1], [0, 0, 1, 1], [], []>} : vector<8x256xbf16>, vector<256x256xbf16>, vector<8x256xf32> -> vector<8x256xf32>
    %cst_336 = arith.constant dense<0.000000e+00> : vector<256xf32>
    %987 = vector.multi_reduction <add>, %986, %cst_336 [0] : vector<8x256xf32> to vector<256xf32>
    %988 = vector.shape_cast %987 : vector<256xf32> to vector<1x256xf32>
    %cst_337 = arith.constant 1.250000e-01 : f32
    %989 = vector.broadcast %cst_337 : f32 to vector<1x256xf32>
    %990 = arith.mulf %988, %989 : vector<1x256xf32>
    %991 = arith.mulf %986, %986 : vector<8x256xf32>
    %cst_338 = arith.constant dense<0.000000e+00> : vector<256xf32>
    %992 = vector.multi_reduction <add>, %991, %cst_338 [0] : vector<8x256xf32> to vector<256xf32>
    %993 = vector.shape_cast %992 : vector<256xf32> to vector<1x256xf32>
    %cst_339 = arith.constant 1.250000e-01 : f32
    %994 = vector.broadcast %cst_339 : f32 to vector<1x256xf32>
    %995 = arith.mulf %993, %994 : vector<1x256xf32>
    %996 = arith.mulf %990, %990 : vector<1x256xf32>
    %997 = arith.subf %995, %996 : vector<1x256xf32>
    %cst_340 = arith.constant 0.000000e+00 : f32
    %998 = vector.broadcast %cst_340 : f32 to vector<1x256xf32>
    %999 = arith.maximumf %997, %998 : vector<1x256xf32>
    %c9_341 = arith.constant 9 : index
    %c0_342 = arith.constant 0 : index
    %1000 = vector.load %arg2[%c9_341, %c0_342] : memref<10x384xf32, #tpu.memory_space<vmem>>, vector<1x256xf32>
    %c9_343 = arith.constant 9 : index
    %c0_344 = arith.constant 0 : index
    %1001 = vector.load %arg3[%c9_343, %c0_344] : memref<10x384xf32, #tpu.memory_space<vmem>>, vector<1x256xf32>
    %1002 = vector.broadcast %990 : vector<1x256xf32> to vector<8x256xf32>
    %1003 = arith.subf %986, %1002 : vector<8x256xf32>
    %cst_345 = arith.constant 9.99999974E-6 : f32
    %1004 = vector.broadcast %cst_345 : f32 to vector<1x256xf32>
    %1005 = arith.addf %999, %1004 : vector<1x256xf32>
    %1006 = math.rsqrt %1005 : vector<1x256xf32>
    %1007 = vector.broadcast %1006 : vector<1x256xf32> to vector<8x256xf32>
    %1008 = arith.mulf %1003, %1007 : vector<8x256xf32>
    %1009 = vector.broadcast %1000 : vector<1x256xf32> to vector<8x256xf32>
    %1010 = arith.mulf %1008, %1009 : vector<8x256xf32>
    %1011 = vector.broadcast %1001 : vector<1x256xf32> to vector<8x256xf32>
    %1012 = arith.addf %1010, %1011 : vector<8x256xf32>
    %1013 = math.tanh %1012 : vector<8x256xf32>
    %1014 = arith.truncf %1013 : vector<8x256xf32> to vector<8x256xbf16>
    %c0_346 = arith.constant 0 : index
    %c0_347 = arith.constant 0 : index
    %1015 = vector.load %arg14[%c0_346, %c0_347] : memref<256x128xbf16, #tpu.memory_space<vmem>>, vector<256x128xbf16>
    %cst_348 = arith.constant dense<0.000000e+00> : vector<8x128xf32>
    %1016 = tpu.matmul %1014, %1015, %cst_348 {dimension_numbers = #tpu.dot_dimension_numbers<[1], [0], [0], [1], [0, 0, 1, 1], [], []>} : vector<8x256xbf16>, vector<256x128xbf16>, vector<8x128xf32> -> vector<8x128xf32>
    %c0_349 = arith.constant 0 : index
    %c0_350 = arith.constant 0 : index
    %1017 = vector.load %arg15[%c0_349, %c0_350] : memref<1x128xf32, #tpu.memory_space<vmem>>, vector<1x128xf32>
    %1018 = vector.broadcast %1017 : vector<1x128xf32> to vector<8x128xf32>
    %1019 = arith.addf %1016, %1018 : vector<8x128xf32>
    %c126_i32_351 = arith.constant 126 : i32
    %1020 = vector.broadcast %c126_i32_351 : i32 to vector<8x128xi32>
    %1021 = arith.cmpi eq, %0, %1020 : vector<8x128xi32>
    %c127_i32_352 = arith.constant 127 : i32
    %1022 = vector.broadcast %c127_i32_352 : i32 to vector<8x128xi32>
    %1023 = arith.cmpi eq, %0, %1022 : vector<8x128xi32>
    %1024 = vector.shape_cast %894 : vector<8x1xf32> to vector<8x1xf32>
    %1025 = vector.broadcast %1024 : vector<8x1xf32> to vector<8x128xf32>
    %1026 = arith.select %1023, %1025, %98 : vector<8x128xi1>, vector<8x128xf32>
    %1027 = vector.shape_cast %445 : vector<8x1xf32> to vector<8x1xf32>
    %1028 = vector.broadcast %1027 : vector<8x1xf32> to vector<8x128xf32>
    %1029 = arith.select %1021, %1028, %1026 : vector<8x128xi1>, vector<8x128xf32>
    %c0_353 = arith.constant 0 : index
    %c0_354 = arith.constant 0 : index
    %1030 = vector.load %arg20[%c0_353, %c0_354] : memref<8x1280xf32, #tpu.memory_space<vmem>>, vector<8x256xf32>
    tpu.vector_store %arg20[%c0_353, %c0_354], %90 {strides = array<i32>} : memref<8x1280xf32, #tpu.memory_space<vmem>>, vector<8x256xf32>,
    %c0_355 = arith.constant 0 : index
    %c256 = arith.constant 256 : index
    %1031 = vector.load %arg20[%c0_355, %c256] : memref<8x1280xf32, #tpu.memory_space<vmem>>, vector<8x128xf32>
    tpu.vector_store %arg20[%c0_355, %c256], %1029 {strides = array<i32>} : memref<8x1280xf32, #tpu.memory_space<vmem>>, vector<8x128xf32>,
    %c0_356 = arith.constant 0 : index
    %c384 = arith.constant 384 : index
    %1032 = vector.load %arg20[%c0_356, %c384] : memref<8x1280xf32, #tpu.memory_space<vmem>>, vector<8x128xf32>
    tpu.vector_store %arg20[%c0_356, %c384], %435 {strides = array<i32>} : memref<8x1280xf32, #tpu.memory_space<vmem>>, vector<8x128xf32>,
    %c0_357 = arith.constant 0 : index
    %c512 = arith.constant 512 : index
    %1033 = vector.load %arg20[%c0_357, %c512] : memref<8x1280xf32, #tpu.memory_space<vmem>>, vector<8x128xf32>
    tpu.vector_store %arg20[%c0_357, %c512], %536 {strides = array<i32>} : memref<8x1280xf32, #tpu.memory_space<vmem>>, vector<8x128xf32>,
    %c0_358 = arith.constant 0 : index
    %c640 = arith.constant 640 : index
    %1034 = vector.load %arg20[%c0_358, %c640] : memref<8x1280xf32, #tpu.memory_space<vmem>>, vector<8x128xf32>
    tpu.vector_store %arg20[%c0_358, %c640], %547 {strides = array<i32>} : memref<8x1280xf32, #tpu.memory_space<vmem>>, vector<8x128xf32>,
    %c0_359 = arith.constant 0 : index
    %c768 = arith.constant 768 : index
    %1035 = vector.load %arg20[%c0_359, %c768] : memref<8x1280xf32, #tpu.memory_space<vmem>>, vector<8x128xf32>
    tpu.vector_store %arg20[%c0_359, %c768], %884 {strides = array<i32>} : memref<8x1280xf32, #tpu.memory_space<vmem>>, vector<8x128xf32>,
    %c0_360 = arith.constant 0 : index
    %c896 = arith.constant 896 : index
    %1036 = vector.load %arg20[%c0_360, %c896] : memref<8x1280xf32, #tpu.memory_space<vmem>>, vector<8x256xf32>
    tpu.vector_store %arg20[%c0_360, %c896], %983 {strides = array<i32>} : memref<8x1280xf32, #tpu.memory_space<vmem>>, vector<8x256xf32>,
    %c0_361 = arith.constant 0 : index
    %c1152 = arith.constant 1152 : index
    %1037 = vector.load %arg20[%c0_361, %c1152] : memref<8x1280xf32, #tpu.memory_space<vmem>>, vector<8x128xf32>
    tpu.vector_store %arg20[%c0_361, %c1152], %1019 {strides = array<i32>} : memref<8x1280xf32, #tpu.memory_space<vmem>>, vector<8x128xf32>,
    return
  }
}

</mosaic_0001>

<llo_original>
// kernel: squeeze.18
$region0: #{squeeze.18}
  %s0 = inlined_call_operand.vmem [shape: f32[8], index: 0, kind: input, shape index: {}]
  %s1 = inlined_call_operand.hbm [shape: f32[2,4], index: 1, kind: output, shape index: {}]
  $region1: #{squeeze.18} parent=0
    #allocation0 [shape = 'u8[1024]{0}', space=vmem, size = 0x400, scoped, tag = 'operand span for operand 1']
    #allocation1 [shape = 's32[1]{0}', space=sflag, size = 0x4, scoped, tag = 'scoped memory for squeeze.18']
    #allocation2 [shape = 'u8[4096]{0}', space=vmem, size = 0x1000, scoped, tag = 'scoped mem for output reshape']
    #allocation3 [shape = 'u8[4096]{0}', space=vmem, size = 0x1000, scoped, tag = 'scoped mem for input reshape']
    %2 = vsyncpa [#allocation1], 0
    %s4 = sshllo.u32 0, 1
    %v5 = vld [vmem:[%s0] sm:%s4]
    %6 = vst [vmem:[#allocation3] sm:%s4] %v5
    %v7 = vld [vmem:[#allocation3] sm:$0x1]
    %vm8 = vcmask 31744
    %9 = vst.msk [vmem:[#allocation2] sm:$0x1] %vm8, %v7
    %v10 = vld [vmem:[#allocation3] sm:$0x1]
    %11 = vrot.lane.b32.xlu0 %v10, 124
    %v12 = vpop.permute.xlu0 %11
    %vm13 = vcmask 31744
    %s14 = scalar_lea.vmem [#allocation2], 1
    %15 = vst.msk [vmem:[%s14] sm:$0x1] %vm13, %v12
    %s17 = sshllo.u32 0, 2
    %v19 = vld [vmem:[#allocation2] sm:%s17]
    %s20 = sshllo.u32 0, 2
    %21 = vst [vmem:[#allocation0] sm:%s20] %v19
    %s23 = ssub.s32 32, 32
    %24 = vsyncadd [#allocation1], %s23
    %s26 = sshll.u32 [#allocation0], 4
    %s27 = int_to_ptr.vmem [resolvable:$true] %s26
    %29 = dma.vmem_to_hbm [thread:$0]  %s27, 32, %s1, [#allocation1]
    %30 = dma.done [#allocation1], 32
    %31 = vsyncpa [#allocation1], 1

// kernel: forward.3
$region0: #{forward.3}
  #allocation0 [shape = 'u32[]', space=smem, size = 0x4, offset = 0x4, fixed_abs, tag = 'smem constant byte address 0x4 - core index']
  #allocation1 [shape = 'u32[144,128]{1,0:T(1,128)}', space=vmem, size = 0x12000, scoped, tag = 'internal scratch']
  %s0 = inlined_call_operand.vmem [shape: f32[8,128], index: 0, kind: input, shape index: {}]
  %s1 = inlined_call_operand.vmem [shape: f32[8,256], index: 1, kind: input, shape index: {}]
  %s2 = inlined_call_operand.hbm [shape: f32[10,384], index: 2, kind: input, shape index: {}]
  %s3 = inlined_call_operand.hbm [shape: f32[10,384], index: 3, kind: input, shape index: {}]
  %s4 = inlined_call_operand.hbm [shape: bf16[128,256], index: 4, kind: input, shape index: {}]
  %s5 = inlined_call_operand.vmem [shape: bf16[256,256], index: 5, kind: input, shape index: {}]
  %s6 = inlined_call_operand.vmem [shape: bf16[256,256], index: 6, kind: input, shape index: {}]
  %s7 = inlined_call_operand.hbm [shape: bf16[128,384], index: 7, kind: input, shape index: {}]
  %s8 = inlined_call_operand.hbm [shape: bf16[128,128], index: 8, kind: input, shape index: {}]
  %s9 = inlined_call_operand.hbm [shape: bf16[128,128], index: 9, kind: input, shape index: {}]
  %s10 = inlined_call_operand.hbm [shape: bf16[128,128], index: 10, kind: input, shape index: {}]
  %s11 = inlined_call_operand.hbm [shape: bf16[128,128], index: 11, kind: input, shape index: {}]
  %s12 = inlined_call_operand.hbm [shape: bf16[128,256], index: 12, kind: input, shape index: {}]
  %s13 = inlined_call_operand.hbm [shape: bf16[256,256], index: 13, kind: input, shape index: {}]
  %s14 = inlined_call_operand.vmem [shape: bf16[256,128], index: 14, kind: input, shape index: {}]
  %s15 = inlined_call_operand.vmem [shape: f32[1,128], index: 15, kind: input, shape index: {}]
  %s16 = inlined_call_operand.vmem [shape: f32[80], index: 16, kind: input, shape index: {}]
  %s17 = inlined_call_operand.vmem [shape: f32[16], index: 17, kind: input, shape index: {}]
  %s18 = inlined_call_operand.hbm [shape: f32[16,128], index: 18, kind: input, shape index: {}]
  %s19 = inlined_call_operand.vmem [shape: f32[32,128], index: 19, kind: input, shape index: {}]
  %s20 = inlined_call_operand.vmem [shape: f32[8,1280], index: 20, kind: output, shape index: {}]
  %s21 = sld [smem:[#allocation0]]
  $region142: #{forward.3} parent=0
    _
  %s23 = ssub.s32 1, %s21
  %s24 = scalar_select 0, %s23, %s21
  $region1: #{forward.3} parent=0
    #allocation2 [shape = 'u8[24576]{0}', space=vmem, size = 0x6000, scoped, tag = 'input window, operand 2, single buffered']
    #allocation3 [shape = 's32[1]{0}', space=sflag, size = 0x4, scoped, tag = 'scoped memory for forward.3']
    #allocation4 [shape = 's32[1]{0}', space=sflag, size = 0x4, scoped, tag = 'scoped memory for forward.3']
    #allocation5 [shape = 'u8[24576]{0}', space=vmem, size = 0x6000, scoped, tag = 'input window, operand 3, single buffered']
    #allocation6 [shape = 's32[1]{0}', space=sflag, size = 0x4, scoped, tag = 'scoped memory for forward.3']
    #allocation7 [shape = 'u8[65536]{0}', space=vmem, size = 0x10000, scoped, tag = 'input window, operand 4, single buffered']
    #allocation8 [shape = 'u8[98304]{0}', space=vmem, size = 0x18000, scoped, tag = 'input window, operand 7, single buffered']
    #allocation9 [shape = 's32[1]{0}', space=sflag, size = 0x4, scoped, tag = 'scoped memory for forward.3']
    #allocation10 [shape = 'u8[32768]{0}', space=vmem, size = 0x8000, scoped, tag = 'input window, operand 8, single buffered']
    #allocation11 [shape = 'u8[32768]{0}', space=vmem, size = 0x8000, scoped, tag = 'input window, operand 9, single buffered']
    #allocation12 [shape = 's32[1]{0}', space=sflag, size = 0x4, scoped, tag = 'scoped memory for forward.3']
    #allocation13 [shape = 'u8[32768]{0}', space=vmem, size = 0x8000, scoped, tag = 'input window, operand 10, single buffered']
    #allocation14 [shape = 'u8[32768]{0}', space=vmem, size = 0x8000, scoped, tag = 'input window, operand 11, single buffered']
    #allocation15 [shape = 's32[1]{0}', space=sflag, size = 0x4, scoped, tag = 'scoped memory for forward.3']
    #allocation16 [shape = 'u8[65536]{0}', space=vmem, size = 0x10000, scoped, tag = 'input window, operand 12, single buffered']
    #allocation17 [shape = 'u8[131072]{0}', space=vmem, size = 0x20000, scoped, tag = 'input window, operand 13, single buffered']
    #allocation18 [shape = 's32[1]{0}', space=sflag, size = 0x4, scoped, tag = 'scoped memory for forward.3']
    #allocation19 [shape = 'u8[512]{0}', space=smem, size = 0x200, scoped, tag = 'input window, operand 16, single buffered']
    #allocation20 [shape = 'u8[512]{0}', space=smem, size = 0x200, scoped, tag = 'input window, operand 17, single buffered']
    #allocation21 [shape = 's32[1]{0}', space=sflag, size = 0x4, scoped, tag = 'scoped memory for forward.3']
    #allocation22 [shape = 'u8[8192]{0}', space=vmem, size = 0x2000, scoped, tag = 'input window, operand 18, single buffered']
    %25 = vsyncpa [#allocation3], 0
    %26 = vsyncpa [#allocation6], 0
    %27 = vsyncpa [#allocation9], 0
    %28 = vsyncpa [#allocation12], 0
    %29 = vsyncpa [#allocation15], 0
    %30 = vsyncpa [#allocation18], 0
    %31 = vsyncpa [#allocation4], 0
    %32 = vsyncpa [#allocation21], 0
    // Predicated region
    $region2: #{forward.3} parent=1 // pred_check
      _
    $region3: #{forward.3} parent=1 // pred_check_branch
      %34 = sbr.rel (0) target = $region5
    $region4: #{forward.3} parent=1 // pred_region
      _
    $region5: #{forward.3} parent=1 // pred_fallthru
      _
    // Predicated region
    $region6: #{forward.3} parent=1 // pred_check
      _
    $region7: #{forward.3} parent=1 // pred_check_branch
      %36 = sbr.rel (0) target = $region9
    $region8: #{forward.3} parent=1 // pred_region
      _
    $region9: #{forward.3} parent=1 // pred_fallthru
      _
    // Predicated region
    $region10: #{forward.3} parent=1 // pred_check
      _
    $region11: #{forward.3} parent=1 // pred_check_branch
      %38 = sbr.rel (0) target = $region13
    $region12: #{forward.3} parent=1 // pred_region
      %s40 = ssub.s32 768, 768
      %41 = vsyncadd [#allocation3], %s40
      %s42 = sshll.u32 [#allocation2], 4
      %s43 = int_to_ptr.vmem [resolvable:$true] %s42
      %48 = dma.hbm_to_vmem [thread:$0]  %s2, 768, %s43, [#allocation3], 384, 384, 24
    $region13: #{forward.3} parent=1 // pred_fallthru
      _
    // Predicated region
    $region14: #{forward.3} parent=1 // pred_check
      _
    $region15: #{forward.3} parent=1 // pred_check_branch
      %50 = sbr.rel (0) target = $region17
    $region16: #{forward.3} parent=1 // pred_region
      %s52 = ssub.s32 768, 768
      %53 = vsyncadd [#allocation6], %s52
      %s54 = sshll.u32 [#allocation5], 4
      %s55 = int_to_ptr.vmem [resolvable:$true] %s54
      %60 = dma.hbm_to_vmem [thread:$0]  %s3, 768, %s55, [#allocation6], 384, 384, 24
    $region17: #{forward.3} parent=1 // pred_fallthru
      _
    // Predicated region
    $region18: #{forward.3} parent=1 // pred_check
      _
    $region19: #{forward.3} parent=1 // pred_check_branch
      %62 = sbr.rel (0) target = $region21
    $region20: #{forward.3} parent=1 // pred_region
      %s64 = ssub.s32 2048, 2048
      %65 = vsyncadd [#allocation6], %s64
      %s66 = sshll.u32 [#allocation7], 4
      %s67 = int_to_ptr.vmem [resolvable:$true] %s66
      %72 = dma.hbm_to_vmem [thread:$0]  %s4, 2048, %s67, [#allocation6], 128, 128, 8
    $region21: #{forward.3} parent=1 // pred_fallthru
      _
    // Predicated region
    $region22: #{forward.3} parent=1 // pred_check
      _
    $region23: #{forward.3} parent=1 // pred_check_branch
      %74 = sbr.rel (0) target = $region25
    $region24: #{forward.3} parent=1 // pred_region
      _
    $region25: #{forward.3} parent=1 // pred_fallthru
      _
    // Predicated region
    $region26: #{forward.3} parent=1 // pred_check
      _
    $region27: #{forward.3} parent=1 // pred_check_branch
      %76 = sbr.rel (0) target = $region29
    $region28: #{forward.3} parent=1 // pred_region
      _
    $region29: #{forward.3} parent=1 // pred_fallthru
      _
    // Predicated region
    $region30: #{forward.3} parent=1 // pred_check
      _
    $region31: #{forward.3} parent=1 // pred_check_branch
      %78 = sbr.rel (0) target = $region33
    $region32: #{forward.3} parent=1 // pred_region
      %s80 = ssub.s32 3072, 3072
      %81 = vsyncadd [#allocation9], %s80
      %s82 = sshll.u32 [#allocation8], 4
      %s83 = int_to_ptr.vmem [resolvable:$true] %s82
      %88 = dma.hbm_to_vmem [thread:$0]  %s7, 3072, %s83, [#allocation9], 192, 192, 12
    $region33: #{forward.3} parent=1 // pred_fallthru
      _
    // Predicated region
    $region34: #{forward.3} parent=1 // pred_check
      _
    $region35: #{forward.3} parent=1 // pred_check_branch
      %90 = sbr.rel (0) target = $region37
    $region36: #{forward.3} parent=1 // pred_region
      %s92 = ssub.s32 1024, 1024
      %93 = vsyncadd [#allocation9], %s92
      %s94 = sshll.u32 [#allocation10], 4
      %s95 = int_to_ptr.vmem [resolvable:$true] %s94
      %100 = dma.hbm_to_vmem [thread:$0]  %s8, 1024, %s95, [#allocation9], 64, 64, 4
    $region37: #{forward.3} parent=1 // pred_fallthru
      _
    // Predicated region
    $region38: #{forward.3} parent=1 // pred_check
      _
    $region39: #{forward.3} parent=1 // pred_check_branch
      %102 = sbr.rel (0) target = $region41
    $region40: #{forward.3} parent=1 // pred_region
      %s104 = ssub.s32 1024, 1024
      %105 = vsyncadd [#allocation12], %s104
      %s106 = sshll.u32 [#allocation11], 4
      %s107 = int_to_ptr.vmem [resolvable:$true] %s106
      %112 = dma.hbm_to_vmem [thread:$0]  %s9, 1024, %s107, [#allocation12], 64, 64, 4
    $region41: #{forward.3} parent=1 // pred_fallthru
      _
    // Predicated region
    $region42: #{forward.3} parent=1 // pred_check
      _
    $region43: #{forward.3} parent=1 // pred_check_branch
      %114 = sbr.rel (0) target = $region45
    $region44: #{forward.3} parent=1 // pred_region
      %s116 = ssub.s32 1024, 1024
      %117 = vsyncadd [#allocation12], %s116
      %s118 = sshll.u32 [#allocation13], 4
      %s119 = int_to_ptr.vmem [resolvable:$true] %s118
      %124 = dma.hbm_to_vmem [thread:$0]  %s10, 1024, %s119, [#allocation12], 64, 64, 4
    $region45: #{forward.3} parent=1 // pred_fallthru
      _
    // Predicated region
    $region46: #{forward.3} parent=1 // pred_check
      _
    $region47: #{forward.3} parent=1 // pred_check_branch
      %126 = sbr.rel (0) target = $region49
    $region48: #{forward.3} parent=1 // pred_region
      %s128 = ssub.s32 1024, 1024
      %129 = vsyncadd [#allocation15], %s128
      %s130 = sshll.u32 [#allocation14], 4
      %s131 = int_to_ptr.vmem [resolvable:$true] %s130
      %136 = dma.hbm_to_vmem [thread:$0]  %s11, 1024, %s131, [#allocation15], 64, 64, 4
    $region49: #{forward.3} parent=1 // pred_fallthru
      _
    // Predicated region
    $region50: #{forward.3} parent=1 // pred_check
      _
    $region51: #{forward.3} parent=1 // pred_check_branch
      %138 = sbr.rel (0) target = $region53
    $region52: #{forward.3} parent=1 // pred_region
      %s140 = ssub.s32 2048, 2048
      %141 = vsyncadd [#allocation15], %s140
      %s142 = sshll.u32 [#allocation16], 4
      %s143 = int_to_ptr.vmem [resolvable:$true] %s142
      %148 = dma.hbm_to_vmem [thread:$0]  %s12, 2048, %s143, [#allocation15], 128, 128, 8
    $region53: #{forward.3} parent=1 // pred_fallthru
      _
    // Predicated region
    $region54: #{forward.3} parent=1 // pred_check
      _
    $region55: #{forward.3} parent=1 // pred_check_branch
      %150 = sbr.rel (0) target = $region57
    $region56: #{forward.3} parent=1 // pred_region
      %s152 = ssub.s32 4096, 4096
      %153 = vsyncadd [#allocation18], %s152
      %s154 = sshll.u32 [#allocation17], 4
      %s155 = int_to_ptr.vmem [resolvable:$true] %s154
      %160 = dma.hbm_to_vmem [thread:$0]  %s13, 4096, %s155, [#allocation18], 128, 128, 8
    $region57: #{forward.3} parent=1 // pred_fallthru
      _
    // Predicated region
    $region58: #{forward.3} parent=1 // pred_check
      _
    $region59: #{forward.3} parent=1 // pred_check_branch
      %162 = sbr.rel (0) target = $region61
    $region60: #{forward.3} parent=1 // pred_region
      _
    $region61: #{forward.3} parent=1 // pred_fallthru
      _
    // Predicated region
    $region62: #{forward.3} parent=1 // pred_check
      _
    $region63: #{forward.3} parent=1 // pred_check_branch
      %164 = sbr.rel (0) target = $region65
    $region64: #{forward.3} parent=1 // pred_region
      _
    $region65: #{forward.3} parent=1 // pred_fallthru
      _
    // Predicated region
    $region66: #{forward.3} parent=1 // pred_check
      _
    $region67: #{forward.3} parent=1 // pred_check_branch
      %166 = sbr.rel (0) target = $region69
    $region68: #{forward.3} parent=1 // pred_region
      %s168 = ssub.s32 16, 16
      %169 = vsyncadd [#allocation4], %s168
      %s171 = sshll.u32 %s16, 4
      %s172 = int_to_ptr.vmem [resolvable:$true] %s171
      %174 = dma.vmem_to_smem %s172, 16, [#allocation19], [#allocation4]
    $region69: #{forward.3} parent=1 // pred_fallthru
      _
    // Predicated region
    $region70: #{forward.3} parent=1 // pred_check
      _
    $region71: #{forward.3} parent=1 // pred_check_branch
      %176 = sbr.rel (0) target = $region73
    $region72: #{forward.3} parent=1 // pred_region
      %s178 = ssub.s32 16, 16
      %179 = vsyncadd [#allocation21], %s178
      %s181 = sshll.u32 %s17, 4
      %s182 = int_to_ptr.vmem [resolvable:$true] %s181
      %184 = dma.vmem_to_smem %s182, 16, [#allocation20], [#allocation21]
    $region73: #{forward.3} parent=1 // pred_fallthru
      _
    // Predicated region
    $region74: #{forward.3} parent=1 // pred_check
      _
    $region75: #{forward.3} parent=1 // pred_check_branch
      %186 = sbr.rel (0) target = $region77
    $region76: #{forward.3} parent=1 // pred_region
      %s188 = ssub.s32 256, 256
      %189 = vsyncadd [#allocation18], %s188
      %s190 = sshll.u32 [#allocation22], 4
      %s191 = int_to_ptr.vmem [resolvable:$true] %s190
      %196 = dma.hbm_to_vmem [thread:$0]  %s18, 256, %s191, [#allocation18], 128, 128, 8
    $region77: #{forward.3} parent=1 // pred_fallthru
      _
    // Predicated region
    $region78: #{forward.3} parent=1 // pred_check
      _
    $region79: #{forward.3} parent=1 // pred_check_branch
      %198 = sbr.rel (0) target = $region81
    $region80: #{forward.3} parent=1 // pred_region
      _
    $region81: #{forward.3} parent=1 // pred_fallthru
      _
    // Predicated region
    $region82: #{forward.3} parent=1 // pred_check
      _
    $region83: #{forward.3} parent=1 // pred_check_branch
      %200 = sbr.rel (0) target = $region85
    $region84: #{forward.3} parent=1 // pred_region
      %201 = dma.done [#allocation3], 768
    $region85: #{forward.3} parent=1 // pred_fallthru
      _
    // Predicated region
    $region86: #{forward.3} parent=1 // pred_check
      _
    $region87: #{forward.3} parent=1 // pred_check_branch
      %203 = sbr.rel (0) target = $region89
    $region88: #{forward.3} parent=1 // pred_region
      %204 = dma.done [#allocation6], 768
    $region89: #{forward.3} parent=1 // pred_fallthru
      _
    // Predicated region
    $region90: #{forward.3} parent=1 // pred_check
      _
    $region91: #{forward.3} parent=1 // pred_check_branch
      %206 = sbr.rel (0) target = $region93
    $region92: #{forward.3} parent=1 // pred_region
      %207 = dma.done [#allocation6], 2048
    $region93: #{forward.3} parent=1 // pred_fallthru
      _
    // Predicated region
    $region94: #{forward.3} parent=1 // pred_check
      _
    $region95: #{forward.3} parent=1 // pred_check_branch
      %209 = sbr.rel (0) target = $region97
    $region96: #{forward.3} parent=1 // pred_region
      %210 = dma.done [#allocation9], 3072
    $region97: #{forward.3} parent=1 // pred_fallthru
      _
    // Predicated region
    $region98: #{forward.3} parent=1 // pred_check
      _
    $region99: #{forward.3} parent=1 // pred_check_branch
      %212 = sbr.rel (0) target = $region101
    $region100: #{forward.3} parent=1 // pred_region
      %213 = dma.done [#allocation9], 1024
    $region101: #{forward.3} parent=1 // pred_fallthru
      _
    // Predicated region
    $region102: #{forward.3} parent=1 // pred_check
      _
    $region103: #{forward.3} parent=1 // pred_check_branch
      %215 = sbr.rel (0) target = $region105
    $region104: #{forward.3} parent=1 // pred_region
      %216 = dma.done [#allocation12], 1024
    $region105: #{forward.3} parent=1 // pred_fallthru
      _
    // Predicated region
    $region106: #{forward.3} parent=1 // pred_check
      _
    $region107: #{forward.3} parent=1 // pred_check_branch
      %218 = sbr.rel (0) target = $region109
    $region108: #{forward.3} parent=1 // pred_region
      %219 = dma.done [#allocation12], 1024
    $region109: #{forward.3} parent=1 // pred_fallthru
      _
    // Predicated region
    $region110: #{forward.3} parent=1 // pred_check
      _
    $region111: #{forward.3} parent=1 // pred_check_branch
      %221 = sbr.rel (0) target = $region113
    $region112: #{forward.3} parent=1 // pred_region
      %222 = dma.done [#allocation15], 1024
    $region113: #{forward.3} parent=1 // pred_fallthru
      _
    // Predicated region
    $region114: #{forward.3} parent=1 // pred_check
      _
    $region115: #{forward.3} parent=1 // pred_check_branch
      %224 = sbr.rel (0) target = $region117
    $region116: #{forward.3} parent=1 // pred_region
      %225 = dma.done [#allocation15], 2048
    $region117: #{forward.3} parent=1 // pred_fallthru
      _
    // Predicated region
    $region118: #{forward.3} parent=1 // pred_check
      _
    $region119: #{forward.3} parent=1 // pred_check_branch
      %227 = sbr.rel (0) target = $region121
    $region120: #{forward.3} parent=1 // pred_region
      %228 = dma.done [#allocation18], 4096
    $region121: #{forward.3} parent=1 // pred_fallthru
      _
    // Predicated region
    $region122: #{forward.3} parent=1 // pred_check
      _
    $region123: #{forward.3} parent=1 // pred_check_branch
      %230 = sbr.rel (0) target = $region125
    $region124: #{forward.3} parent=1 // pred_region
      %231 = dma.done [#allocation4], 16
    $region125: #{forward.3} parent=1 // pred_fallthru
      _
    // Predicated region
    $region126: #{forward.3} parent=1 // pred_check
      _
    $region127: #{forward.3} parent=1 // pred_check_branch
      %233 = sbr.rel (0) target = $region129
    $region128: #{forward.3} parent=1 // pred_region
      %234 = dma.done [#allocation21], 16
    $region129: #{forward.3} parent=1 // pred_fallthru
      _
    // Predicated region
    $region130: #{forward.3} parent=1 // pred_check
      _
    $region131: #{forward.3} parent=1 // pred_check_branch
      %236 = sbr.rel (0) target = $region133
    $region132: #{forward.3} parent=1 // pred_region
      %237 = dma.done [#allocation18], 256
    $region133: #{forward.3} parent=1 // pred_fallthru
      _
    %238 = sfence
    %v240 = vlaneseq
    %v241 = vand.u32 %v240, 127
    %v242 = vld [vmem:[%s0] sm:$0xff]
    %v243 = vpack.c.bf16 %v242, %v242
    %v244 = vld [vmem:[#allocation7] sm:$0xff]
    %v245 = vld [vmem:[#allocation7 + $0x8] sm:$0xff]
    %v246 = vld [vmem:[#allocation7 + $0x10] sm:$0xff]
    %v247 = vld [vmem:[#allocation7 + $0x18] sm:$0xff]
    %v248 = vld [vmem:[#allocation7 + $0x20] sm:$0xff]
    %v249 = vld [vmem:[#allocation7 + $0x28] sm:$0xff]
    %v250 = vld [vmem:[#allocation7 + $0x30] sm:$0xff]
    %v251 = vld [vmem:[#allocation7 + $0x38] sm:$0xff]
    %v252 = vld [vmem:[#allocation7 + $0x40] sm:$0xff]
    %v253 = vld [vmem:[#allocation7 + $0x48] sm:$0xff]
    %v254 = vld [vmem:[#allocation7 + $0x50] sm:$0xff]
    %v255 = vld [vmem:[#allocation7 + $0x58] sm:$0xff]
    %v256 = vld [vmem:[#allocation7 + $0x60] sm:$0xff]
    %v257 = vld [vmem:[#allocation7 + $0x68] sm:$0xff]
    %v258 = vld [vmem:[#allocation7 + $0x70] sm:$0xff]
    %v259 = vld [vmem:[#allocation7 + $0x78] sm:$0xff]
    %v276 = vunpack.c.l.b16 %v244
    %v277 = vunpack.c.h.b16 %v244
    %v278 = vunpack.c.l.b16 %v245
    %v279 = vunpack.c.h.b16 %v245
    %v280 = vunpack.c.l.b16 %v246
    %v281 = vunpack.c.h.b16 %v246
    %v282 = vunpack.c.l.b16 %v247
    %v283 = vunpack.c.h.b16 %v247
    %v284 = vunpack.c.l.b16 %v248
    %v285 = vunpack.c.h.b16 %v248
    %v286 = vunpack.c.l.b16 %v249
    %v287 = vunpack.c.h.b16 %v249
    %v288 = vunpack.c.l.b16 %v250
    %v289 = vunpack.c.h.b16 %v250
    %v290 = vunpack.c.l.b16 %v251
    %v291 = vunpack.c.h.b16 %v251
    %v292 = vunpack.c.l.b16 %v252
    %v293 = vunpack.c.h.b16 %v252
    %v294 = vunpack.c.l.b16 %v253
    %v295 = vunpack.c.h.b16 %v253
    %v296 = vunpack.c.l.b16 %v254
    %v297 = vunpack.c.h.b16 %v254
    %v298 = vunpack.c.l.b16 %v255
    %v299 = vunpack.c.h.b16 %v255
    %v300 = vunpack.c.l.b16 %v256
    %v301 = vunpack.c.h.b16 %v256
    %v302 = vunpack.c.l.b16 %v257
    %v303 = vunpack.c.h.b16 %v257
    %v304 = vunpack.c.l.b16 %v258
    %v305 = vunpack.c.h.b16 %v258
    %v306 = vunpack.c.l.b16 %v259
    %v307 = vunpack.c.h.b16 %v259
    %v308 = vpack.c.b16 %v278, %v276
    %v309 = vpack.c.b16 %v279, %v277
    %v310 = vpack.c.b16 %v282, %v280
    %v311 = vpack.c.b16 %v283, %v281
    %v312 = vpack.c.b16 %v286, %v284
    %v313 = vpack.c.b16 %v287, %v285
    %v314 = vpack.c.b16 %v290, %v288
    %v315 = vpack.c.b16 %v291, %v289
    %v316 = vpack.c.b16 %v294, %v292
    %v317 = vpack.c.b16 %v295, %v293
    %v318 = vpack.c.b16 %v298, %v296
    %v319 = vpack.c.b16 %v299, %v297
    %v320 = vpack.c.b16 %v302, %v300
    %v321 = vpack.c.b16 %v303, %v301
    %v322 = vpack.c.b16 %v306, %v304
    %v323 = vpack.c.b16 %v307, %v305
    %340 = vmatprep.subr.bf16.mxu0 %v309
    %341 = vmatpush1.bf16.msra.mxu0 %v308
    %342 = vmatprep.subr.bf16.mxu0 %v311
    %343 = vmatpush1.bf16.msra.mxu0 %v310
    %344 = vmatprep.subr.bf16.mxu0 %v313
    %345 = vmatpush1.bf16.msra.mxu0 %v312
    %346 = vmatprep.subr.bf16.mxu0 %v315
    %347 = vmatpush1.bf16.msra.mxu0 %v314
    %348 = vmatprep.subr.bf16.mxu0 %v317
    %349 = vmatpush1.bf16.msra.mxu0 %v316
    %350 = vmatprep.subr.bf16.mxu0 %v319
    %351 = vmatpush1.bf16.msra.mxu0 %v318
    %352 = vmatprep.subr.bf16.mxu0 %v321
    %353 = vmatpush1.bf16.msra.mxu0 %v320
    %354 = vmatprep.subr.bf16.mxu0 %v323
    %355 = vmatpush1.bf16.msra.mxu0 %v322
    %356 = vmatprep.subr.bf16.mxu0 0
    %357 = vmatpush1.bf16.msra.mxu0 0
    %358 = vmatprep.subr.bf16.mxu0 0
    %359 = vmatpush1.bf16.msra.mxu0 0
    %360 = vmatprep.subr.bf16.mxu0 0
    %361 = vmatpush1.bf16.msra.mxu0 0
    %362 = vmatprep.subr.bf16.mxu0 0
    %363 = vmatpush1.bf16.msra.mxu0 0
    %364 = vmatprep.subr.bf16.mxu0 0
    %365 = vmatpush1.bf16.msra.mxu0 0
    %366 = vmatprep.subr.bf16.mxu0 0
    %367 = vmatpush1.bf16.msra.mxu0 0
    %368 = vmatprep.subr.bf16.mxu0 0
    %369 = vmatpush1.bf16.msra.mxu0 0
    %370 = vmatprep.subr.bf16.mxu0 0
    %371 = vmatpush1.bf16.msra.mxu0 0
    %372 = vmatprep.mubr.bf16.mxu0 0
    %373 = vmatmul.mubr.bf16.gmra.mrb[0].mxu0 %v243
    %v374 = vpop.f32.mrb[0].mxu0
    %v375 = vadd.f32 0.0, %v374
    %v376 = vpop.f32.mrb[0].mxu0
    %v377 = vadd.f32 0.0, %v376
    %v378 = vpop.f32.mrb[0].mxu0
    %v379 = vpop.f32.mrb[0].mxu0
    %380 = vdwg.mxu0
    %v381 = vrot.slane %v375, 4
    %v382 = vadd.f32 %v375, %v381
    %v383 = vrot.slane %v382, 2
    %v384 = vadd.f32 %v382, %v383
    %v385 = vrot.slane %v384, 1
    %v386 = vadd.f32 %v384, %v385
    %v387 = vrot.slane %v377, 4
    %v388 = vadd.f32 %v377, %v387
    %v389 = vrot.slane %v388, 2
    %v390 = vadd.f32 %v388, %v389
    %v391 = vrot.slane %v390, 1
    %v392 = vadd.f32 %v390, %v391
    %v393 = vmul.f32 %v386, 0.125
    %v394 = vmul.f32 %v392, 0.125
    %v395 = vmul.f32 %v375, %v375
    %v396 = vmul.f32 %v377, %v377
    %v397 = vrot.slane %v395, 4
    %v398 = vadd.f32 %v395, %v397
    %v399 = vrot.slane %v398, 2
    %v400 = vadd.f32 %v398, %v399
    %v401 = vrot.slane %v400, 1
    %v402 = vadd.f32 %v400, %v401
    %v403 = vrot.slane %v396, 4
    %v404 = vadd.f32 %v396, %v403
    %v405 = vrot.slane %v404, 2
    %v406 = vadd.f32 %v404, %v405
    %v407 = vrot.slane %v406, 1
    %v408 = vadd.f32 %v406, %v407
    %v409 = vmul.f32 %v402, 0.125
    %v410 = vmul.f32 %v408, 0.125
    %v411 = vmul.f32 %v393, %v393
    %v412 = vmul.f32 %v394, %v394
    %v413 = vsub.f32 %v409, %v411
    %v414 = vsub.f32 %v410, %v412
    %v415 = vmax.f32 %v413, 0.0
    %v416 = vmax.f32 %v414, 0.0
    %v417 = vld [vmem:[#allocation2] ss:$8 sm:$0x3]
    %v418 = vld [vmem:[#allocation5] ss:$8 sm:$0x3]
    %v419 = vsub.f32 %v375, %v393
    %v420 = vsub.f32 %v377, %v394
    %v421 = vadd.f32 %v415, 1e-05
    %v422 = vadd.f32 %v416, 1e-05
    %v423 = vrsqrt.pop %v421
    %v424 = vrsqrt.pop %v422
    %v425 = vmul.f32 %v419, %v423
    %v426 = vmul.f32 %v420, %v424
    %v428 = vlaneseq
    %v429 = vshrl.u32 %v428, 7
    %v430 = vsub.s32 0, %v429
    %v431 = vrot.slane %v417, %v430
    %v432 = vlaneseq
    %v433 = vshrl.u32 %v432, 7
    %v434 = vsub.s32 1, %v433
    %v435 = vrot.slane %v417, %v434
    %v438 = vmul.f32 %v425, %v431
    %v439 = vmul.f32 %v426, %v435
    %v441 = vlaneseq
    %v442 = vshrl.u32 %v441, 7
    %v443 = vsub.s32 0, %v442
    %v444 = vrot.slane %v418, %v443
    %v445 = vlaneseq
    %v446 = vshrl.u32 %v445, 7
    %v447 = vsub.s32 1, %v446
    %v448 = vrot.slane %v418, %v447
    %v451 = vadd.f32 %v438, %v444
    %v452 = vadd.f32 %v439, %v448
    %v453 = vtanh.pop %v451
    %v454 = vtanh.pop %v452
    %v455 = vpack.c.bf16 %v453, %v453
    %v456 = vpack.c.bf16 %v454, %v454
    %v457 = vld [vmem:[%s5] sm:$0xff]
    %v458 = vld [vmem:[%s5 + $0x8] sm:$0xff]
    %v459 = vld [vmem:[%s5 + $0x10] sm:$0xff]
    %v460 = vld [vmem:[%s5 + $0x18] sm:$0xff]
    %v461 = vld [vmem:[%s5 + $0x20] sm:$0xff]
    %v462 = vld [vmem:[%s5 + $0x28] sm:$0xff]
    %v463 = vld [vmem:[%s5 + $0x30] sm:$0xff]
    %v464 = vld [vmem:[%s5 + $0x38] sm:$0xff]
    %v465 = vld [vmem:[%s5 + $0x40] sm:$0xff]
    %v466 = vld [vmem:[%s5 + $0x48] sm:$0xff]
    %v467 = vld [vmem:[%s5 + $0x50] sm:$0xff]
    %v468 = vld [vmem:[%s5 + $0x58] sm:$0xff]
    %v469 = vld [vmem:[%s5 + $0x60] sm:$0xff]
    %v470 = vld [vmem:[%s5 + $0x68] sm:$0xff]
    %v471 = vld [vmem:[%s5 + $0x70] sm:$0xff]
    %v472 = vld [vmem:[%s5 + $0x78] sm:$0xff]
    %v473 = vld [vmem:[%s5 + $0x80] sm:$0xff]
    %v474 = vld [vmem:[%s5 + $0x88] sm:$0xff]
    %v475 = vld [vmem:[%s5 + $0x90] sm:$0xff]
    %v476 = vld [vmem:[%s5 + $0x98] sm:$0xff]
    %v477 = vld [vmem:[%s5 + $0xa0] sm:$0xff]
    %v478 = vld [vmem:[%s5 + $0xa8] sm:$0xff]
    %v479 = vld [vmem:[%s5 + $0xb0] sm:$0xff]
    %v480 = vld [vmem:[%s5 + $0xb8] sm:$0xff]
    %v481 = vld [vmem:[%s5 + $0xc0] sm:$0xff]
    %v482 = vld [vmem:[%s5 + $0xc8] sm:$0xff]
    %v483 = vld [vmem:[%s5 + $0xd0] sm:$0xff]
    %v484 = vld [vmem:[%s5 + $0xd8] sm:$0xff]
    %v485 = vld [vmem:[%s5 + $0xe0] sm:$0xff]
    %v486 = vld [vmem:[%s5 + $0xe8] sm:$0xff]
    %v487 = vld [vmem:[%s5 + $0xf0] sm:$0xff]
    %v488 = vld [vmem:[%s5 + $0xf8] sm:$0xff]
    %v521 = vunpack.c.l.b16 %v457
    %v522 = vunpack.c.h.b16 %v457
    %v523 = vunpack.c.l.b16 %v458
    %v524 = vunpack.c.h.b16 %v458
    %v525 = vunpack.c.l.b16 %v459
    %v526 = vunpack.c.h.b16 %v459
    %v527 = vunpack.c.l.b16 %v460
    %v528 = vunpack.c.h.b16 %v460
    %v529 = vunpack.c.l.b16 %v461
    %v530 = vunpack.c.h.b16 %v461
    %v531 = vunpack.c.l.b16 %v462
    %v532 = vunpack.c.h.b16 %v462
    %v533 = vunpack.c.l.b16 %v463
    %v534 = vunpack.c.h.b16 %v463
    %v535 = vunpack.c.l.b16 %v464
    %v536 = vunpack.c.h.b16 %v464
    %v537 = vunpack.c.l.b16 %v465
    %v538 = vunpack.c.h.b16 %v465
    %v539 = vunpack.c.l.b16 %v466
    %v540 = vunpack.c.h.b16 %v466
    %v541 = vunpack.c.l.b16 %v467
    %v542 = vunpack.c.h.b16 %v467
    %v543 = vunpack.c.l.b16 %v468
    %v544 = vunpack.c.h.b16 %v468
    %v545 = vunpack.c.l.b16 %v469
    %v546 = vunpack.c.h.b16 %v469
    %v547 = vunpack.c.l.b16 %v470
    %v548 = vunpack.c.h.b16 %v470
    %v549 = vunpack.c.l.b16 %v471
    %v550 = vunpack.c.h.b16 %v471
    %v551 = vunpack.c.l.b16 %v472
    %v552 = vunpack.c.h.b16 %v472
    %v553 = vunpack.c.l.b16 %v473
    %v554 = vunpack.c.h.b16 %v473
    %v555 = vunpack.c.l.b16 %v474
    %v556 = vunpack.c.h.b16 %v474
    %v557 = vunpack.c.l.b16 %v475
    %v558 = vunpack.c.h.b16 %v475
    %v559 = vunpack.c.l.b16 %v476
    %v560 = vunpack.c.h.b16 %v476
    %v561 = vunpack.c.l.b16 %v477
    %v562 = vunpack.c.h.b16 %v477
    %v563 = vunpack.c.l.b16 %v478
    %v564 = vunpack.c.h.b16 %v478
    %v565 = vunpack.c.l.b16 %v479
    %v566 = vunpack.c.h.b16 %v479
    %v567 = vunpack.c.l.b16 %v480
    %v568 = vunpack.c.h.b16 %v480
    %v569 = vunpack.c.l.b16 %v481
    %v570 = vunpack.c.h.b16 %v481
    %v571 = vunpack.c.l.b16 %v482
    %v572 = vunpack.c.h.b16 %v482
    %v573 = vunpack.c.l.b16 %v483
    %v574 = vunpack.c.h.b16 %v483
    %v575 = vunpack.c.l.b16 %v484
    %v576 = vunpack.c.h.b16 %v484
    %v577 = vunpack.c.l.b16 %v485
    %v578 = vunpack.c.h.b16 %v485
    %v579 = vunpack.c.l.b16 %v486
    %v580 = vunpack.c.h.b16 %v486
    %v581 = vunpack.c.l.b16 %v487
    %v582 = vunpack.c.h.b16 %v487
    %v583 = vunpack.c.l.b16 %v488
    %v584 = vunpack.c.h.b16 %v488
    %v585 = vpack.c.b16 %v523, %v521
    %v586 = vpack.c.b16 %v524, %v522
    %v587 = vpack.c.b16 %v527, %v525
    %v588 = vpack.c.b16 %v528, %v526
    %v589 = vpack.c.b16 %v531, %v529
    %v590 = vpack.c.b16 %v532, %v530
    %v591 = vpack.c.b16 %v535, %v533
    %v592 = vpack.c.b16 %v536, %v534
    %v593 = vpack.c.b16 %v539, %v537
    %v594 = vpack.c.b16 %v540, %v538
    %v595 = vpack.c.b16 %v543, %v541
    %v596 = vpack.c.b16 %v544, %v542
    %v597 = vpack.c.b16 %v547, %v545
    %v598 = vpack.c.b16 %v548, %v546
    %v599 = vpack.c.b16 %v551, %v549
    %v600 = vpack.c.b16 %v552, %v550
    %v601 = vpack.c.b16 %v555, %v553
    %v602 = vpack.c.b16 %v556, %v554
    %v603 = vpack.c.b16 %v559, %v557
    %v604 = vpack.c.b16 %v560, %v558
    %v605 = vpack.c.b16 %v563, %v561
    %v606 = vpack.c.b16 %v564, %v562
    %v607 = vpack.c.b16 %v567, %v565
    %v608 = vpack.c.b16 %v568, %v566
    %v609 = vpack.c.b16 %v571, %v569
    %v610 = vpack.c.b16 %v572, %v570
    %v611 = vpack.c.b16 %v575, %v573
    %v612 = vpack.c.b16 %v576, %v574
    %v613 = vpack.c.b16 %v579, %v577
    %v614 = vpack.c.b16 %v580, %v578
    %v615 = vpack.c.b16 %v583, %v581
    %v616 = vpack.c.b16 %v584, %v582
    %649 = vmatprep.subr.bf16.mxu0 %v586
    %650 = vmatpush1.bf16.msra.mxu0 %v585
    %651 = vmatprep.subr.bf16.mxu0 %v588
    %652 = vmatpush1.bf16.msra.mxu0 %v587
    %653 = vmatprep.subr.bf16.mxu0 %v590
    %654 = vmatpush1.bf16.msra.mxu0 %v589
    %655 = vmatprep.subr.bf16.mxu0 %v592
    %656 = vmatpush1.bf16.msra.mxu0 %v591
    %657 = vmatprep.subr.bf16.mxu0 %v594
    %658 = vmatpush1.bf16.msra.mxu0 %v593
    %659 = vmatprep.subr.bf16.mxu0 %v596
    %660 = vmatpush1.bf16.msra.mxu0 %v595
    %661 = vmatprep.subr.bf16.mxu0 %v598
    %662 = vmatpush1.bf16.msra.mxu0 %v597
    %663 = vmatprep.subr.bf16.mxu0 %v600
    %664 = vmatpush1.bf16.msra.mxu0 %v599
    %665 = vmatprep.subr.bf16.mxu0 %v602
    %666 = vmatpush1.bf16.msra.mxu0 %v601
    %667 = vmatprep.subr.bf16.mxu0 %v604
    %668 = vmatpush1.bf16.msra.mxu0 %v603
    %669 = vmatprep.subr.bf16.mxu0 %v606
    %670 = vmatpush1.bf16.msra.mxu0 %v605
    %671 = vmatprep.subr.bf16.mxu0 %v608
    %672 = vmatpush1.bf16.msra.mxu0 %v607
    %673 = vmatprep.subr.bf16.mxu0 %v610
    %674 = vmatpush1.bf16.msra.mxu0 %v609
    %675 = vmatprep.subr.bf16.mxu0 %v612
    %676 = vmatpush1.bf16.msra.mxu0 %v611
    %677 = vmatprep.subr.bf16.mxu0 %v614
    %678 = vmatpush1.bf16.msra.mxu0 %v613
    %679 = vmatprep.subr.bf16.mxu0 %v616
    %680 = vmatpush1.bf16.msra.mxu0 %v615
    %681 = vmatprep.mubr.bf16.mxu0 %v456
    %682 = vmatmul.mubr.bf16.gmra.mrb[0].mxu0 %v455
    %v683 = vpop.f32.mrb[0].mxu0
    %v684 = vadd.f32 0.0, %v683
    %v685 = vpop.f32.mrb[0].mxu0
    %v686 = vadd.f32 0.0, %v685
    %v687 = vpop.f32.mrb[0].mxu0
    %v688 = vpop.f32.mrb[0].mxu0
    %689 = vdwg.mxu0
    %v690 = vrot.slane %v684, 4
    %v691 = vadd.f32 %v684, %v690
    %v692 = vrot.slane %v691, 2
    %v693 = vadd.f32 %v691, %v692
    %v694 = vrot.slane %v693, 1
    %v695 = vadd.f32 %v693, %v694
    %v696 = vrot.slane %v686, 4
    %v697 = vadd.f32 %v686, %v696
    %v698 = vrot.slane %v697, 2
    %v699 = vadd.f32 %v697, %v698
    %v700 = vrot.slane %v699, 1
    %v701 = vadd.f32 %v699, %v700
    %v702 = vmul.f32 %v695, 0.125
    %v703 = vmul.f32 %v701, 0.125
    %v704 = vmul.f32 %v684, %v684
    %v705 = vmul.f32 %v686, %v686
    %v706 = vrot.slane %v704, 4
    %v707 = vadd.f32 %v704, %v706
    %v708 = vrot.slane %v707, 2
    %v709 = vadd.f32 %v707, %v708
    %v710 = vrot.slane %v709, 1
    %v711 = vadd.f32 %v709, %v710
    %v712 = vrot.slane %v705, 4
    %v713 = vadd.f32 %v705, %v712
    %v714 = vrot.slane %v713, 2
    %v715 = vadd.f32 %v713, %v714
    %v716 = vrot.slane %v715, 1
    %v717 = vadd.f32 %v715, %v716
    %v718 = vmul.f32 %v711, 0.125
    %v719 = vmul.f32 %v717, 0.125
    %v720 = vmul.f32 %v702, %v702
    %v721 = vmul.f32 %v703, %v703
    %v722 = vsub.f32 %v718, %v720
    %v723 = vsub.f32 %v719, %v721
    %v724 = vmax.f32 %v722, 0.0
    %v725 = vmax.f32 %v723, 0.0
    %s726 = scalar_lea.vmem [#allocation2], 1
    %v727 = vld [vmem:[%s726] ss:$8 sm:$0x3]
    %s728 = scalar_lea.vmem [#allocation5], 1
    %v729 = vld [vmem:[%s728] ss:$8 sm:$0x3]
    %v730 = vsub.f32 %v684, %v702
    %v731 = vsub.f32 %v686, %v703
    %v732 = vadd.f32 %v724, 1e-05
    %v733 = vadd.f32 %v725, 1e-05
    %v734 = vrsqrt.pop %v732
    %v735 = vrsqrt.pop %v733
    %v736 = vmul.f32 %v730, %v734
    %v737 = vmul.f32 %v731, %v735
    %v739 = vlaneseq
    %v740 = vshrl.u32 %v739, 7
    %v741 = vsub.s32 0, %v740
    %v742 = vrot.slane %v727, %v741
    %v743 = vlaneseq
    %v744 = vshrl.u32 %v743, 7
    %v745 = vsub.s32 1, %v744
    %v746 = vrot.slane %v727, %v745
    %v749 = vmul.f32 %v736, %v742
    %v750 = vmul.f32 %v737, %v746
    %v752 = vlaneseq
    %v753 = vshrl.u32 %v752, 7
    %v754 = vsub.s32 0, %v753
    %v755 = vrot.slane %v729, %v754
    %v756 = vlaneseq
    %v757 = vshrl.u32 %v756, 7
    %v758 = vsub.s32 1, %v757
    %v759 = vrot.slane %v729, %v758
    %v762 = vadd.f32 %v749, %v755
    %v763 = vadd.f32 %v750, %v759
    %v764 = vtanh.pop %v762
    %v765 = vtanh.pop %v763
    %v766 = vpack.c.bf16 %v764, %v764
    %v767 = vpack.c.bf16 %v765, %v765
    %v768 = vld [vmem:[%s6] sm:$0xff]
    %v769 = vld [vmem:[%s6 + $0x8] sm:$0xff]
    %v770 = vld [vmem:[%s6 + $0x10] sm:$0xff]
    %v771 = vld [vmem:[%s6 + $0x18] sm:$0xff]
    %v772 = vld [vmem:[%s6 + $0x20] sm:$0xff]
    %v773 = vld [vmem:[%s6 + $0x28] sm:$0xff]
    %v774 = vld [vmem:[%s6 + $0x30] sm:$0xff]
    %v775 = vld [vmem:[%s6 + $0x38] sm:$0xff]
    %v776 = vld [vmem:[%s6 + $0x40] sm:$0xff]
    %v777 = vld [vmem:[%s6 + $0x48] sm:$0xff]
    %v778 = vld [vmem:[%s6 + $0x50] sm:$0xff]
    %v779 = vld [vmem:[%s6 + $0x58] sm:$0xff]
    %v780 = vld [vmem:[%s6 + $0x60] sm:$0xff]
    %v781 = vld [vmem:[%s6 + $0x68] sm:$0xff]
    %v782 = vld [vmem:[%s6 + $0x70] sm:$0xff]
    %v783 = vld [vmem:[%s6 + $0x78] sm:$0xff]
    %v784 = vld [vmem:[%s6 + $0x80] sm:$0xff]
    %v785 = vld [vmem:[%s6 + $0x88] sm:$0xff]
    %v786 = vld [vmem:[%s6 + $0x90] sm:$0xff]
    %v787 = vld [vmem:[%s6 + $0x98] sm:$0xff]
    %v788 = vld [vmem:[%s6 + $0xa0] sm:$0xff]
    %v789 = vld [vmem:[%s6 + $0xa8] sm:$0xff]
    %v790 = vld [vmem:[%s6 + $0xb0] sm:$0xff]
    %v791 = vld [vmem:[%s6 + $0xb8] sm:$0xff]
    %v792 = vld [vmem:[%s6 + $0xc0] sm:$0xff]
    %v793 = vld [vmem:[%s6 + $0xc8] sm:$0xff]
    %v794 = vld [vmem:[%s6 + $0xd0] sm:$0xff]
    %v795 = vld [vmem:[%s6 + $0xd8] sm:$0xff]
    %v796 = vld [vmem:[%s6 + $0xe0] sm:$0xff]
    %v797 = vld [vmem:[%s6 + $0xe8] sm:$0xff]
    %v798 = vld [vmem:[%s6 + $0xf0] sm:$0xff]
    %v799 = vld [vmem:[%s6 + $0xf8] sm:$0xff]
    %v832 = vunpack.c.l.b16 %v768
    %v833 = vunpack.c.h.b16 %v768
    %v834 = vunpack.c.l.b16 %v769
    %v835 = vunpack.c.h.b16 %v769
    %v836 = vunpack.c.l.b16 %v770
    %v837 = vunpack.c.h.b16 %v770
    %v838 = vunpack.c.l.b16 %v771
    %v839 = vunpack.c.h.b16 %v771
    %v840 = vunpack.c.l.b16 %v772
    %v841 = vunpack.c.h.b16 %v772
    %v842 = vunpack.c.l.b16 %v773
    %v843 = vunpack.c.h.b16 %v773
    %v844 = vunpack.c.l.b16 %v774
    %v845 = vunpack.c.h.b16 %v774
    %v846 = vunpack.c.l.b16 %v775
    %v847 = vunpack.c.h.b16 %v775
    %v848 = vunpack.c.l.b16 %v776
    %v849 = vunpack.c.h.b16 %v776
    %v850 = vunpack.c.l.b16 %v777
    %v851 = vunpack.c.h.b16 %v777
    %v852 = vunpack.c.l.b16 %v778
    %v853 = vunpack.c.h.b16 %v778
    %v854 = vunpack.c.l.b16 %v779
    %v855 = vunpack.c.h.b16 %v779
    %v856 = vunpack.c.l.b16 %v780
    %v857 = vunpack.c.h.b16 %v780
    %v858 = vunpack.c.l.b16 %v781
    %v859 = vunpack.c.h.b16 %v781
    %v860 = vunpack.c.l.b16 %v782
    %v861 = vunpack.c.h.b16 %v782
    %v862 = vunpack.c.l.b16 %v783
    %v863 = vunpack.c.h.b16 %v783
    %v864 = vunpack.c.l.b16 %v784
    %v865 = vunpack.c.h.b16 %v784
    %v866 = vunpack.c.l.b16 %v785
    %v867 = vunpack.c.h.b16 %v785
    %v868 = vunpack.c.l.b16 %v786
    %v869 = vunpack.c.h.b16 %v786
    %v870 = vunpack.c.l.b16 %v787
    %v871 = vunpack.c.h.b16 %v787
    %v872 = vunpack.c.l.b16 %v788
    %v873 = vunpack.c.h.b16 %v788
    %v874 = vunpack.c.l.b16 %v789
    %v875 = vunpack.c.h.b16 %v789
    %v876 = vunpack.c.l.b16 %v790
    %v877 = vunpack.c.h.b16 %v790
    %v878 = vunpack.c.l.b16 %v791
    %v879 = vunpack.c.h.b16 %v791
    %v880 = vunpack.c.l.b16 %v792
    %v881 = vunpack.c.h.b16 %v792
    %v882 = vunpack.c.l.b16 %v793
    %v883 = vunpack.c.h.b16 %v793
    %v884 = vunpack.c.l.b16 %v794
    %v885 = vunpack.c.h.b16 %v794
    %v886 = vunpack.c.l.b16 %v795
    %v887 = vunpack.c.h.b16 %v795
    %v888 = vunpack.c.l.b16 %v796
    %v889 = vunpack.c.h.b16 %v796
    %v890 = vunpack.c.l.b16 %v797
    %v891 = vunpack.c.h.b16 %v797
    %v892 = vunpack.c.l.b16 %v798
    %v893 = vunpack.c.h.b16 %v798
    %v894 = vunpack.c.l.b16 %v799
    %v895 = vunpack.c.h.b16 %v799
    %v896 = vpack.c.b16 %v834, %v832
    %v897 = vpack.c.b16 %v835, %v833
    %v898 = vpack.c.b16 %v838, %v836
    %v899 = vpack.c.b16 %v839, %v837
    %v900 = vpack.c.b16 %v842, %v840
    %v901 = vpack.c.b16 %v843, %v841
    %v902 = vpack.c.b16 %v846, %v844
    %v903 = vpack.c.b16 %v847, %v845
    %v904 = vpack.c.b16 %v850, %v848
    %v905 = vpack.c.b16 %v851, %v849
    %v906 = vpack.c.b16 %v854, %v852
    %v907 = vpack.c.b16 %v855, %v853
    %v908 = vpack.c.b16 %v858, %v856
    %v909 = vpack.c.b16 %v859, %v857
    %v910 = vpack.c.b16 %v862, %v860
    %v911 = vpack.c.b16 %v863, %v861
    %v912 = vpack.c.b16 %v866, %v864
    %v913 = vpack.c.b16 %v867, %v865
    %v914 = vpack.c.b16 %v870, %v868
    %v915 = vpack.c.b16 %v871, %v869
    %v916 = vpack.c.b16 %v874, %v872
    %v917 = vpack.c.b16 %v875, %v873
    %v918 = vpack.c.b16 %v878, %v876
    %v919 = vpack.c.b16 %v879, %v877
    %v920 = vpack.c.b16 %v882, %v880
    %v921 = vpack.c.b16 %v883, %v881
    %v922 = vpack.c.b16 %v886, %v884
    %v923 = vpack.c.b16 %v887, %v885
    %v924 = vpack.c.b16 %v890, %v888
    %v925 = vpack.c.b16 %v891, %v889
    %v926 = vpack.c.b16 %v894, %v892
    %v927 = vpack.c.b16 %v895, %v893
    %960 = vmatprep.subr.bf16.mxu0 %v897
    %961 = vmatpush1.bf16.msra.mxu0 %v896
    %962 = vmatprep.subr.bf16.mxu0 %v899
    %963 = vmatpush1.bf16.msra.mxu0 %v898
    %964 = vmatprep.subr.bf16.mxu0 %v901
    %965 = vmatpush1.bf16.msra.mxu0 %v900
    %966 = vmatprep.subr.bf16.mxu0 %v903
    %967 = vmatpush1.bf16.msra.mxu0 %v902
    %968 = vmatprep.subr.bf16.mxu0 %v905
    %969 = vmatpush1.bf16.msra.mxu0 %v904
    %970 = vmatprep.subr.bf16.mxu0 %v907
    %971 = vmatpush1.bf16.msra.mxu0 %v906
    %972 = vmatprep.subr.bf16.mxu0 %v909
    %973 = vmatpush1.bf16.msra.mxu0 %v908
    %974 = vmatprep.subr.bf16.mxu0 %v911
    %975 = vmatpush1.bf16.msra.mxu0 %v910
    %976 = vmatprep.subr.bf16.mxu0 %v913
    %977 = vmatpush1.bf16.msra.mxu0 %v912
    %978 = vmatprep.subr.bf16.mxu0 %v915
    %979 = vmatpush1.bf16.msra.mxu0 %v914
    %980 = vmatprep.subr.bf16.mxu0 %v917
    %981 = vmatpush1.bf16.msra.mxu0 %v916
    %982 = vmatprep.subr.bf16.mxu0 %v919
    %983 = vmatpush1.bf16.msra.mxu0 %v918
    %984 = vmatprep.subr.bf16.mxu0 %v921
    %985 = vmatpush1.bf16.msra.mxu0 %v920
    %986 = vmatprep.subr.bf16.mxu0 %v923
    %987 = vmatpush1.bf16.msra.mxu0 %v922
    %988 = vmatprep.subr.bf16.mxu0 %v925
    %989 = vmatpush1.bf16.msra.mxu0 %v924
    %990 = vmatprep.subr.bf16.mxu0 %v927
    %991 = vmatpush1.bf16.msra.mxu0 %v926
    %992 = vmatprep.mubr.bf16.mxu0 %v767
    %993 = vmatmul.mubr.bf16.gmra.mrb[0].mxu0 %v766
    %v994 = vpop.f32.mrb[0].mxu0
    %v995 = vadd.f32 0.0, %v994
    %v996 = vpop.f32.mrb[0].mxu0
    %v997 = vadd.f32 0.0, %v996
    %v998 = vpop.f32.mrb[0].mxu0
    %v999 = vpop.f32.mrb[0].mxu0
    %1000 = vdwg.mxu0
    %v1001 = vrot.slane %v995, 4
    %v1002 = vadd.f32 %v995, %v1001
    %v1003 = vrot.slane %v1002, 2
    %v1004 = vadd.f32 %v1002, %v1003
    %v1005 = vrot.slane %v1004, 1
    %v1006 = vadd.f32 %v1004, %v1005
    %v1007 = vrot.slane %v997, 4
    %v1008 = vadd.f32 %v997, %v1007
    %v1009 = vrot.slane %v1008, 2
    %v1010 = vadd.f32 %v1008, %v1009
    %v1011 = vrot.slane %v1010, 1
    %v1012 = vadd.f32 %v1010, %v1011
    %v1013 = vmul.f32 %v1006, 0.125
    %v1014 = vmul.f32 %v1012, 0.125
    %v1015 = vmul.f32 %v995, %v995
    %v1016 = vmul.f32 %v997, %v997
    %v1017 = vrot.slane %v1015, 4
    %v1018 = vadd.f32 %v1015, %v1017
    %v1019 = vrot.slane %v1018, 2
    %v1020 = vadd.f32 %v1018, %v1019
    %v1021 = vrot.slane %v1020, 1
    %v1022 = vadd.f32 %v1020, %v1021
    %v1023 = vrot.slane %v1016, 4
    %v1024 = vadd.f32 %v1016, %v1023
    %v1025 = vrot.slane %v1024, 2
    %v1026 = vadd.f32 %v1024, %v1025
    %v1027 = vrot.slane %v1026, 1
    %v1028 = vadd.f32 %v1026, %v1027
    %v1029 = vmul.f32 %v1022, 0.125
    %v1030 = vmul.f32 %v1028, 0.125
    %v1031 = vmul.f32 %v1013, %v1013
    %v1032 = vmul.f32 %v1014, %v1014
    %v1033 = vsub.f32 %v1029, %v1031
    %v1034 = vsub.f32 %v1030, %v1032
    %v1035 = vmax.f32 %v1033, 0.0
    %v1036 = vmax.f32 %v1034, 0.0
    %s1037 = scalar_lea.vmem [#allocation2], 2
    %v1038 = vld [vmem:[%s1037] ss:$8 sm:$0x3]
    %s1039 = scalar_lea.vmem [#allocation5], 2
    %v1040 = vld [vmem:[%s1039] ss:$8 sm:$0x3]
    %v1041 = vsub.f32 %v995, %v1013
    %v1042 = vsub.f32 %v997, %v1014
    %v1043 = vadd.f32 %v1035, 1e-05
    %v1044 = vadd.f32 %v1036, 1e-05
    %v1045 = vrsqrt.pop %v1043
    %v1046 = vrsqrt.pop %v1044
    %v1047 = vmul.f32 %v1041, %v1045
    %v1048 = vmul.f32 %v1042, %v1046
    %v1050 = vlaneseq
    %v1051 = vshrl.u32 %v1050, 7
    %v1052 = vsub.s32 0, %v1051
    %v1053 = vrot.slane %v1038, %v1052
    %v1054 = vlaneseq
    %v1055 = vshrl.u32 %v1054, 7
    %v1056 = vsub.s32 1, %v1055
    %v1057 = vrot.slane %v1038, %v1056
    %v1060 = vmul.f32 %v1047, %v1053
    %v1061 = vmul.f32 %v1048, %v1057
    %v1063 = vlaneseq
    %v1064 = vshrl.u32 %v1063, 7
    %v1065 = vsub.s32 0, %v1064
    %v1066 = vrot.slane %v1040, %v1065
    %v1067 = vlaneseq
    %v1068 = vshrl.u32 %v1067, 7
    %v1069 = vsub.s32 1, %v1068
    %v1070 = vrot.slane %v1040, %v1069
    %v1073 = vadd.f32 %v1060, %v1066
    %v1074 = vadd.f32 %v1061, %v1070
    %v1075 = vld [vmem:[%s1] sm:$0xff]
    %v1076 = vmul.f32 %v1074, 0.5
    %v1077 = vmul.f32 %v1076, 1.442695
    %v1078 = vpow.pop %v1077
    %v1079 = vmul.f32 %v1075, %v1078
    %v1080 = vadd.f32 %v1079, %v1073
    %v1081 = vld [vmem:[#allocation22] sm:$0x1]
    %s1082 = sld [smem:[#allocation19]]
    %v1083 = vstv %s1082
    %v1084 = vmul.f32 %v1083, %v1080
    %s1085 = sld [smem:[#allocation19 + $0x1]]
    %1086 = vrot.lane.b32.xlu0 %v1080, 127
    %v1087 = vpop.permute.xlu0 %1086
    %v1088 = vstv %s1085
    %v1089 = vmul.f32 %v1088, %v1087
    %v1090 = vadd.f32 %v1084, %v1089
    %s1091 = sld [smem:[#allocation19 + $0x2]]
    %1092 = vrot.lane.b32.xlu0 %v1080, 126
    %v1093 = vpop.permute.xlu0 %1092
    %v1094 = vstv %s1091
    %v1095 = vmul.f32 %v1094, %v1093
    %v1096 = vadd.f32 %v1090, %v1095
    %s1097 = sld [smem:[#allocation19 + $0x3]]
    %1098 = vrot.lane.b32.xlu0 %v1080, 125
    %v1099 = vpop.permute.xlu0 %1098
    %v1100 = vstv %s1097
    %v1101 = vmul.f32 %v1100, %v1099
    %v1102 = vadd.f32 %v1096, %v1101
    %s1103 = sld [smem:[#allocation19 + $0x4]]
    %1104 = vrot.lane.b32.xlu0 %v1080, 124
    %v1105 = vpop.permute.xlu0 %1104
    %v1106 = vstv %s1103
    %v1107 = vmul.f32 %v1106, %v1105
    %v1108 = vadd.f32 %v1102, %v1107
    %s1109 = sld [smem:[#allocation20]]
    %v1110 = vstv %s1109
    %v1111 = vadd.f32 %v1108, %v1110
    %vm1112 = vcmp.ge.f32.partialorder %v1111, 0.0
    %v1113 = vmul.f32 %v1111, 0.01
    %v1114 = vsel %vm1112, %v1111, %v1113
    %v1115 = vlaneseq
    %v1116 = vshrl.u32 %v1115, 7
    %v1117 = vsub.s32 0, %v1116
    %v1118 = vrot.slane %v1081, %v1117
    %v1119 = vmul.f32 %v1114, %v1118
    %v1120 = vadd.f32 %v1119, %v1080
    %v1121 = vld [vmem:[%s19] sm:$0x1]
    %v1122 = vld [vmem:[%s19 + $0x1] sm:$0x1]
    %v1123 = vlaneseq
    %v1124 = vshrl.u32 %v1123, 7
    %v1125 = vsub.s32 0, %v1124
    %v1126 = vrot.slane %v1121, %v1125
    %v1127 = vlaneseq
    %v1128 = vshrl.u32 %v1127, 7
    %v1129 = vsub.s32 0, %v1128
    %v1130 = vrot.slane %v1122, %v1129
    %v1131 = vsel %vm1112, %v1126, %v1130
    %v1132 = vadd.f32 %v1131, 0.0
    %v1133 = vld [vmem:[#allocation22 + $0x1] sm:$0x1]
    %s1134 = sld [smem:[#allocation19 + $0x5]]
    %v1135 = vstv %s1134
    %v1136 = vmul.f32 %v1135, %v1120
    %s1137 = sld [smem:[#allocation19 + $0x6]]
    %1138 = vrot.lane.b32.xlu0 %v1120, 127
    %v1139 = vpop.permute.xlu0 %1138
    %v1140 = vstv %s1137
    %v1141 = vmul.f32 %v1140, %v1139
    %v1142 = vadd.f32 %v1136, %v1141
    %s1143 = sld [smem:[#allocation19 + $0x7]]
    %1144 = vrot.lane.b32.xlu0 %v1120, 126
    %v1145 = vpop.permute.xlu0 %1144
    %v1146 = vstv %s1143
    %v1147 = vmul.f32 %v1146, %v1145
    %v1148 = vadd.f32 %v1142, %v1147
    %s1149 = sld [smem:[#allocation19 + $0x8]]
    %1150 = vrot.lane.b32.xlu0 %v1120, 125
    %v1151 = vpop.permute.xlu0 %1150
    %v1152 = vstv %s1149
    %v1153 = vmul.f32 %v1152, %v1151
    %v1154 = vadd.f32 %v1148, %v1153
    %s1155 = sld [smem:[#allocation19 + $0x9]]
    %1156 = vrot.lane.b32.xlu0 %v1120, 124
    %v1157 = vpop.permute.xlu0 %1156
    %v1158 = vstv %s1155
    %v1159 = vmul.f32 %v1158, %v1157
    %v1160 = vadd.f32 %v1154, %v1159
    %s1161 = sld [smem:[#allocation20 + $0x1]]
    %v1162 = vstv %s1161
    %v1163 = vadd.f32 %v1160, %v1162
    %vm1164 = vcmp.ge.f32.partialorder %v1163, 0.0
    %v1165 = vmul.f32 %v1163, 0.01
    %v1166 = vsel %vm1164, %v1163, %v1165
    %v1167 = vlaneseq
    %v1168 = vshrl.u32 %v1167, 7
    %v1169 = vsub.s32 0, %v1168
    %v1170 = vrot.slane %v1133, %v1169
    %v1171 = vmul.f32 %v1166, %v1170
    %v1172 = vadd.f32 %v1171, %v1120
    %v1173 = vld [vmem:[%s19 + $0x2] sm:$0x1]
    %v1174 = vld [vmem:[%s19 + $0x3] sm:$0x1]
    %v1175 = vlaneseq
    %v1176 = vshrl.u32 %v1175, 7
    %v1177 = vsub.s32 0, %v1176
    %v1178 = vrot.slane %v1173, %v1177
    %v1179 = vlaneseq
    %v1180 = vshrl.u32 %v1179, 7
    %v1181 = vsub.s32 0, %v1180
    %v1182 = vrot.slane %v1174, %v1181
    %v1183 = vsel %vm1164, %v1178, %v1182
    %v1184 = vadd.f32 %v1132, %v1183
    %v1185 = vld [vmem:[#allocation22 + $0x2] sm:$0x1]
    %s1186 = sld [smem:[#allocation19 + $0xa]]
    %v1187 = vstv %s1186
    %v1188 = vmul.f32 %v1187, %v1172
    %s1189 = sld [smem:[#allocation19 + $0xb]]
    %1190 = vrot.lane.b32.xlu0 %v1172, 127
    %v1191 = vpop.permute.xlu0 %1190
    %v1192 = vstv %s1189
    %v1193 = vmul.f32 %v1192, %v1191
    %v1194 = vadd.f32 %v1188, %v1193
    %s1195 = sld [smem:[#allocation19 + $0xc]]
    %1196 = vrot.lane.b32.xlu0 %v1172, 126
    %v1197 = vpop.permute.xlu0 %1196
    %v1198 = vstv %s1195
    %v1199 = vmul.f32 %v1198, %v1197
    %v1200 = vadd.f32 %v1194, %v1199
    %s1201 = sld [smem:[#allocation19 + $0xd]]
    %1202 = vrot.lane.b32.xlu0 %v1172, 125
    %v1203 = vpop.permute.xlu0 %1202
    %v1204 = vstv %s1201
    %v1205 = vmul.f32 %v1204, %v1203
    %v1206 = vadd.f32 %v1200, %v1205
    %s1207 = sld [smem:[#allocation19 + $0xe]]
    %1208 = vrot.lane.b32.xlu0 %v1172, 124
    %v1209 = vpop.permute.xlu0 %1208
    %v1210 = vstv %s1207
    %v1211 = vmul.f32 %v1210, %v1209
    %v1212 = vadd.f32 %v1206, %v1211
    %s1213 = sld [smem:[#allocation20 + $0x2]]
    %v1214 = vstv %s1213
    %v1215 = vadd.f32 %v1212, %v1214
    %vm1216 = vcmp.ge.f32.partialorder %v1215, 0.0
    %v1217 = vmul.f32 %v1215, 0.01
    %v1218 = vsel %vm1216, %v1215, %v1217
    %v1219 = vlaneseq
    %v1220 = vshrl.u32 %v1219, 7
    %v1221 = vsub.s32 0, %v1220
    %v1222 = vrot.slane %v1185, %v1221
    %v1223 = vmul.f32 %v1218, %v1222
    %v1224 = vadd.f32 %v1223, %v1172
    %v1225 = vld [vmem:[%s19 + $0x4] sm:$0x1]
    %v1226 = vld [vmem:[%s19 + $0x5] sm:$0x1]
    %v1227 = vlaneseq
    %v1228 = vshrl.u32 %v1227, 7
    %v1229 = vsub.s32 0, %v1228
    %v1230 = vrot.slane %v1225, %v1229
    %v1231 = vlaneseq
    %v1232 = vshrl.u32 %v1231, 7
    %v1233 = vsub.s32 0, %v1232
    %v1234 = vrot.slane %v1226, %v1233
    %v1235 = vsel %vm1216, %v1230, %v1234
    %v1236 = vadd.f32 %v1184, %v1235
    %v1237 = vld [vmem:[#allocation22 + $0x3] sm:$0x1]
    %s1238 = sld [smem:[#allocation19 + $0xf]]
    %v1239 = vstv %s1238
    %v1240 = vmul.f32 %v1239, %v1224
    %s1241 = sld [smem:[#allocation19 + $0x10]]
    %1242 = vrot.lane.b32.xlu0 %v1224, 127
    %v1243 = vpop.permute.xlu0 %1242
    %v1244 = vstv %s1241
    %v1245 = vmul.f32 %v1244, %v1243
    %v1246 = vadd.f32 %v1240, %v1245
    %s1247 = sld [smem:[#allocation19 + $0x11]]
    %1248 = vrot.lane.b32.xlu0 %v1224, 126
    %v1249 = vpop.permute.xlu0 %1248
    %v1250 = vstv %s1247
    %v1251 = vmul.f32 %v1250, %v1249
    %v1252 = vadd.f32 %v1246, %v1251
    %s1253 = sld [smem:[#allocation19 + $0x12]]
    %1254 = vrot.lane.b32.xlu0 %v1224, 125
    %v1255 = vpop.permute.xlu0 %1254
    %v1256 = vstv %s1253
    %v1257 = vmul.f32 %v1256, %v1255
    %v1258 = vadd.f32 %v1252, %v1257
    %s1259 = sld [smem:[#allocation19 + $0x13]]
    %1260 = vrot.lane.b32.xlu0 %v1224, 124
    %v1261 = vpop.permute.xlu0 %1260
    %v1262 = vstv %s1259
    %v1263 = vmul.f32 %v1262, %v1261
    %v1264 = vadd.f32 %v1258, %v1263
    %s1265 = sld [smem:[#allocation20 + $0x3]]
    %v1266 = vstv %s1265
    %v1267 = vadd.f32 %v1264, %v1266
    %vm1268 = vcmp.ge.f32.partialorder %v1267, 0.0
    %v1269 = vmul.f32 %v1267, 0.01
    %v1270 = vsel %vm1268, %v1267, %v1269
    %v1271 = vlaneseq
    %v1272 = vshrl.u32 %v1271, 7
    %v1273 = vsub.s32 0, %v1272
    %v1274 = vrot.slane %v1237, %v1273
    %v1275 = vmul.f32 %v1270, %v1274
    %v1276 = vadd.f32 %v1275, %v1224
    %v1277 = vld [vmem:[%s19 + $0x6] sm:$0x1]
    %v1278 = vld [vmem:[%s19 + $0x7] sm:$0x1]
    %v1279 = vlaneseq
    %v1280 = vshrl.u32 %v1279, 7
    %v1281 = vsub.s32 0, %v1280
    %v1282 = vrot.slane %v1277, %v1281
    %v1283 = vlaneseq
    %v1284 = vshrl.u32 %v1283, 7
    %v1285 = vsub.s32 0, %v1284
    %v1286 = vrot.slane %v1278, %v1285
    %v1287 = vsel %vm1268, %v1282, %v1286
    %v1288 = vadd.f32 %v1236, %v1287
    %v1289 = vld [vmem:[#allocation22 + $0x4] sm:$0x1]
    %s1290 = sld [smem:[#allocation19 + $0x14]]
    %v1291 = vstv %s1290
    %v1292 = vmul.f32 %v1291, %v1276
    %s1293 = sld [smem:[#allocation19 + $0x15]]
    %1294 = vrot.lane.b32.xlu0 %v1276, 127
    %v1295 = vpop.permute.xlu0 %1294
    %v1296 = vstv %s1293
    %v1297 = vmul.f32 %v1296, %v1295
    %v1298 = vadd.f32 %v1292, %v1297
    %s1299 = sld [smem:[#allocation19 + $0x16]]
    %1300 = vrot.lane.b32.xlu0 %v1276, 126
    %v1301 = vpop.permute.xlu0 %1300
    %v1302 = vstv %s1299
    %v1303 = vmul.f32 %v1302, %v1301
    %v1304 = vadd.f32 %v1298, %v1303
    %s1305 = sld [smem:[#allocation19 + $0x17]]
    %1306 = vrot.lane.b32.xlu0 %v1276, 125
    %v1307 = vpop.permute.xlu0 %1306
    %v1308 = vstv %s1305
    %v1309 = vmul.f32 %v1308, %v1307
    %v1310 = vadd.f32 %v1304, %v1309
    %s1311 = sld [smem:[#allocation19 + $0x18]]
    %1312 = vrot.lane.b32.xlu0 %v1276, 124
    %v1313 = vpop.permute.xlu0 %1312
    %v1314 = vstv %s1311
    %v1315 = vmul.f32 %v1314, %v1313
    %v1316 = vadd.f32 %v1310, %v1315
    %s1317 = sld [smem:[#allocation20 + $0x4]]
    %v1318 = vstv %s1317
    %v1319 = vadd.f32 %v1316, %v1318
    %vm1320 = vcmp.ge.f32.partialorder %v1319, 0.0
    %v1321 = vmul.f32 %v1319, 0.01
    %v1322 = vsel %vm1320, %v1319, %v1321
    %v1323 = vlaneseq
    %v1324 = vshrl.u32 %v1323, 7
    %v1325 = vsub.s32 0, %v1324
    %v1326 = vrot.slane %v1289, %v1325
    %v1327 = vmul.f32 %v1322, %v1326
    %v1328 = vadd.f32 %v1327, %v1276
    %v1329 = vld [vmem:[%s19 + $0x8] sm:$0x1]
    %v1330 = vld [vmem:[%s19 + $0x9] sm:$0x1]
    %v1331 = vlaneseq
    %v1332 = vshrl.u32 %v1331, 7
    %v1333 = vsub.s32 0, %v1332
    %v1334 = vrot.slane %v1329, %v1333
    %v1335 = vlaneseq
    %v1336 = vshrl.u32 %v1335, 7
    %v1337 = vsub.s32 0, %v1336
    %v1338 = vrot.slane %v1330, %v1337
    %v1339 = vsel %vm1320, %v1334, %v1338
    %v1340 = vadd.f32 %v1288, %v1339
    %v1341 = vld [vmem:[#allocation22 + $0x5] sm:$0x1]
    %s1342 = sld [smem:[#allocation19 + $0x19]]
    %v1343 = vstv %s1342
    %v1344 = vmul.f32 %v1343, %v1328
    %s1345 = sld [smem:[#allocation19 + $0x1a]]
    %1346 = vrot.lane.b32.xlu0 %v1328, 127
    %v1347 = vpop.permute.xlu0 %1346
    %v1348 = vstv %s1345
    %v1349 = vmul.f32 %v1348, %v1347
    %v1350 = vadd.f32 %v1344, %v1349
    %s1351 = sld [smem:[#allocation19 + $0x1b]]
    %1352 = vrot.lane.b32.xlu0 %v1328, 126
    %v1353 = vpop.permute.xlu0 %1352
    %v1354 = vstv %s1351
    %v1355 = vmul.f32 %v1354, %v1353
    %v1356 = vadd.f32 %v1350, %v1355
    %s1357 = sld [smem:[#allocation19 + $0x1c]]
    %1358 = vrot.lane.b32.xlu0 %v1328, 125
    %v1359 = vpop.permute.xlu0 %1358
    %v1360 = vstv %s1357
    %v1361 = vmul.f32 %v1360, %v1359
    %v1362 = vadd.f32 %v1356, %v1361
    %s1363 = sld [smem:[#allocation19 + $0x1d]]
    %1364 = vrot.lane.b32.xlu0 %v1328, 124
    %v1365 = vpop.permute.xlu0 %1364
    %v1366 = vstv %s1363
    %v1367 = vmul.f32 %v1366, %v1365
    %v1368 = vadd.f32 %v1362, %v1367
    %s1369 = sld [smem:[#allocation20 + $0x5]]
    %v1370 = vstv %s1369
    %v1371 = vadd.f32 %v1368, %v1370
    %vm1372 = vcmp.ge.f32.partialorder %v1371, 0.0
    %v1373 = vmul.f32 %v1371, 0.01
    %v1374 = vsel %vm1372, %v1371, %v1373
    %v1375 = vlaneseq
    %v1376 = vshrl.u32 %v1375, 7
    %v1377 = vsub.s32 0, %v1376
    %v1378 = vrot.slane %v1341, %v1377
    %v1379 = vmul.f32 %v1374, %v1378
    %v1380 = vadd.f32 %v1379, %v1328
    %v1381 = vld [vmem:[%s19 + $0xa] sm:$0x1]
    %v1382 = vld [vmem:[%s19 + $0xb] sm:$0x1]
    %v1383 = vlaneseq
    %v1384 = vshrl.u32 %v1383, 7
    %v1385 = vsub.s32 0, %v1384
    %v1386 = vrot.slane %v1381, %v1385
    %v1387 = vlaneseq
    %v1388 = vshrl.u32 %v1387, 7
    %v1389 = vsub.s32 0, %v1388
    %v1390 = vrot.slane %v1382, %v1389
    %v1391 = vsel %vm1372, %v1386, %v1390
    %v1392 = vadd.f32 %v1340, %v1391
    %v1393 = vld [vmem:[#allocation22 + $0x6] sm:$0x1]
    %s1394 = sld [smem:[#allocation19 + $0x1e]]
    %v1395 = vstv %s1394
    %v1396 = vmul.f32 %v1395, %v1380
    %s1397 = sld [smem:[#allocation19 + $0x1f]]
    %1398 = vrot.lane.b32.xlu0 %v1380, 127
    %v1399 = vpop.permute.xlu0 %1398
    %v1400 = vstv %s1397
    %v1401 = vmul.f32 %v1400, %v1399
    %v1402 = vadd.f32 %v1396, %v1401
    %s1403 = sld [smem:[#allocation19 + $0x20]]
    %1404 = vrot.lane.b32.xlu0 %v1380, 126
    %v1405 = vpop.permute.xlu0 %1404
    %v1406 = vstv %s1403
    %v1407 = vmul.f32 %v1406, %v1405
    %v1408 = vadd.f32 %v1402, %v1407
    %s1409 = sld [smem:[#allocation19 + $0x21]]
    %1410 = vrot.lane.b32.xlu0 %v1380, 125
    %v1411 = vpop.permute.xlu0 %1410
    %v1412 = vstv %s1409
    %v1413 = vmul.f32 %v1412, %v1411
    %v1414 = vadd.f32 %v1408, %v1413
    %s1415 = sld [smem:[#allocation19 + $0x22]]
    %1416 = vrot.lane.b32.xlu0 %v1380, 124
    %v1417 = vpop.permute.xlu0 %1416
    %v1418 = vstv %s1415
    %v1419 = vmul.f32 %v1418, %v1417
    %v1420 = vadd.f32 %v1414, %v1419
    %s1421 = sld [smem:[#allocation20 + $0x6]]
    %v1422 = vstv %s1421
    %v1423 = vadd.f32 %v1420, %v1422
    %vm1424 = vcmp.ge.f32.partialorder %v1423, 0.0
    %v1425 = vmul.f32 %v1423, 0.01
    %v1426 = vsel %vm1424, %v1423, %v1425
    %v1427 = vlaneseq
    %v1428 = vshrl.u32 %v1427, 7
    %v1429 = vsub.s32 0, %v1428
    %v1430 = vrot.slane %v1393, %v1429
    %v1431 = vmul.f32 %v1426, %v1430
    %v1432 = vadd.f32 %v1431, %v1380
    %v1433 = vld [vmem:[%s19 + $0xc] sm:$0x1]
    %v1434 = vld [vmem:[%s19 + $0xd] sm:$0x1]
    %v1435 = vlaneseq
    %v1436 = vshrl.u32 %v1435, 7
    %v1437 = vsub.s32 0, %v1436
    %v1438 = vrot.slane %v1433, %v1437
    %v1439 = vlaneseq
    %v1440 = vshrl.u32 %v1439, 7
    %v1441 = vsub.s32 0, %v1440
    %v1442 = vrot.slane %v1434, %v1441
    %v1443 = vsel %vm1424, %v1438, %v1442
    %v1444 = vadd.f32 %v1392, %v1443
    %v1445 = vld [vmem:[#allocation22 + $0x7] sm:$0x1]
    %s1446 = sld [smem:[#allocation19 + $0x23]]
    %v1447 = vstv %s1446
    %v1448 = vmul.f32 %v1447, %v1432
    %s1449 = sld [smem:[#allocation19 + $0x24]]
    %1450 = vrot.lane.b32.xlu0 %v1432, 127
    %v1451 = vpop.permute.xlu0 %1450
    %v1452 = vstv %s1449
    %v1453 = vmul.f32 %v1452, %v1451
    %v1454 = vadd.f32 %v1448, %v1453
    %s1455 = sld [smem:[#allocation19 + $0x25]]
    %1456 = vrot.lane.b32.xlu0 %v1432, 126
    %v1457 = vpop.permute.xlu0 %1456
    %v1458 = vstv %s1455
    %v1459 = vmul.f32 %v1458, %v1457
    %v1460 = vadd.f32 %v1454, %v1459
    %s1461 = sld [smem:[#allocation19 + $0x26]]
    %1462 = vrot.lane.b32.xlu0 %v1432, 125
    %v1463 = vpop.permute.xlu0 %1462
    %v1464 = vstv %s1461
    %v1465 = vmul.f32 %v1464, %v1463
    %v1466 = vadd.f32 %v1460, %v1465
    %s1467 = sld [smem:[#allocation19 + $0x27]]
    %1468 = vrot.lane.b32.xlu0 %v1432, 124
    %v1469 = vpop.permute.xlu0 %1468
    %v1470 = vstv %s1467
    %v1471 = vmul.f32 %v1470, %v1469
    %v1472 = vadd.f32 %v1466, %v1471
    %s1473 = sld [smem:[#allocation20 + $0x7]]
    %v1474 = vstv %s1473
    %v1475 = vadd.f32 %v1472, %v1474
    %vm1476 = vcmp.ge.f32.partialorder %v1475, 0.0
    %v1477 = vmul.f32 %v1475, 0.01
    %v1478 = vsel %vm1476, %v1475, %v1477
    %v1479 = vlaneseq
    %v1480 = vshrl.u32 %v1479, 7
    %v1481 = vsub.s32 0, %v1480
    %v1482 = vrot.slane %v1445, %v1481
    %v1483 = vmul.f32 %v1478, %v1482
    %v1484 = vadd.f32 %v1483, %v1432
    %v1485 = vld [vmem:[%s19 + $0xe] sm:$0x1]
    %v1486 = vld [vmem:[%s19 + $0xf] sm:$0x1]
    %v1487 = vlaneseq
    %v1488 = vshrl.u32 %v1487, 7
    %v1489 = vsub.s32 0, %v1488
    %v1490 = vrot.slane %v1485, %v1489
    %v1491 = vlaneseq
    %v1492 = vshrl.u32 %v1491, 7
    %v1493 = vsub.s32 0, %v1492
    %v1494 = vrot.slane %v1486, %v1493
    %v1495 = vsel %vm1476, %v1490, %v1494
    %v1496 = vadd.f32 %v1444, %v1495
    %1497 = vadd.xlane.f32.xlu0 %v1496
    %v1498 = vpop.xlane.xlu0 %1497
    %v1499 = vpack.c.bf16 %v1484, %v1484
    %v1500 = vld [vmem:[#allocation8] sm:$0xff]
    %v1501 = vld [vmem:[#allocation8 + $0x8] sm:$0xf]
    %v1502 = vld [vmem:[#allocation8 + $0xc] sm:$0xff]
    %v1503 = vld [vmem:[#allocation8 + $0x14] sm:$0xf]
    %v1504 = vld [vmem:[#allocation8 + $0x18] sm:$0xff]
    %v1505 = vld [vmem:[#allocation8 + $0x20] sm:$0xf]
    %v1506 = vld [vmem:[#allocation8 + $0x24] sm:$0xff]
    %v1507 = vld [vmem:[#allocation8 + $0x2c] sm:$0xf]
    %v1508 = vld [vmem:[#allocation8 + $0x30] sm:$0xff]
    %v1509 = vld [vmem:[#allocation8 + $0x38] sm:$0xf]
    %v1510 = vld [vmem:[#allocation8 + $0x3c] sm:$0xff]
    %v1511 = vld [vmem:[#allocation8 + $0x44] sm:$0xf]
    %v1512 = vld [vmem:[#allocation8 + $0x48] sm:$0xff]
    %v1513 = vld [vmem:[#allocation8 + $0x50] sm:$0xf]
    %v1514 = vld [vmem:[#allocation8 + $0x54] sm:$0xff]
    %v1515 = vld [vmem:[#allocation8 + $0x5c] sm:$0xf]
    %v1516 = vld [vmem:[#allocation8 + $0x60] sm:$0xff]
    %v1517 = vld [vmem:[#allocation8 + $0x68] sm:$0xf]
    %v1518 = vld [vmem:[#allocation8 + $0x6c] sm:$0xff]
    %v1519 = vld [vmem:[#allocation8 + $0x74] sm:$0xf]
    %v1520 = vld [vmem:[#allocation8 + $0x78] sm:$0xff]
    %v1521 = vld [vmem:[#allocation8 + $0x80] sm:$0xf]
    %v1522 = vld [vmem:[#allocation8 + $0x84] sm:$0xff]
    %v1523 = vld [vmem:[#allocation8 + $0x8c] sm:$0xf]
    %v1524 = vld [vmem:[#allocation8 + $0x90] sm:$0xff]
    %v1525 = vld [vmem:[#allocation8 + $0x98] sm:$0xf]
    %v1526 = vld [vmem:[#allocation8 + $0x9c] sm:$0xff]
    %v1527 = vld [vmem:[#allocation8 + $0xa4] sm:$0xf]
    %v1528 = vld [vmem:[#allocation8 + $0xa8] sm:$0xff]
    %v1529 = vld [vmem:[#allocation8 + $0xb0] sm:$0xf]
    %v1530 = vld [vmem:[#allocation8 + $0xb4] sm:$0xff]
    %v1531 = vld [vmem:[#allocation8 + $0xbc] sm:$0xf]
    %v1564 = vunpack.c.l.b16 %v1500
    %v1565 = vunpack.c.h.b16 %v1500
    %v1566 = vunpack.c.l.b16 %v1501
    %v1567 = vunpack.c.l.b16 %v1502
    %v1568 = vunpack.c.h.b16 %v1502
    %v1569 = vunpack.c.l.b16 %v1503
    %v1570 = vunpack.c.l.b16 %v1504
    %v1571 = vunpack.c.h.b16 %v1504
    %v1572 = vunpack.c.l.b16 %v1505
    %v1573 = vunpack.c.l.b16 %v1506
    %v1574 = vunpack.c.h.b16 %v1506
    %v1575 = vunpack.c.l.b16 %v1507
    %v1576 = vunpack.c.l.b16 %v1508
    %v1577 = vunpack.c.h.b16 %v1508
    %v1578 = vunpack.c.l.b16 %v1509
    %v1579 = vunpack.c.l.b16 %v1510
    %v1580 = vunpack.c.h.b16 %v1510
    %v1581 = vunpack.c.l.b16 %v1511
    %v1582 = vunpack.c.l.b16 %v1512
    %v1583 = vunpack.c.h.b16 %v1512
    %v1584 = vunpack.c.l.b16 %v1513
    %v1585 = vunpack.c.l.b16 %v1514
    %v1586 = vunpack.c.h.b16 %v1514
    %v1587 = vunpack.c.l.b16 %v1515
    %v1588 = vunpack.c.l.b16 %v1516
    %v1589 = vunpack.c.h.b16 %v1516
    %v1590 = vunpack.c.l.b16 %v1517
    %v1591 = vunpack.c.l.b16 %v1518
    %v1592 = vunpack.c.h.b16 %v1518
    %v1593 = vunpack.c.l.b16 %v1519
    %v1594 = vunpack.c.l.b16 %v1520
    %v1595 = vunpack.c.h.b16 %v1520
    %v1596 = vunpack.c.l.b16 %v1521
    %v1597 = vunpack.c.l.b16 %v1522
    %v1598 = vunpack.c.h.b16 %v1522
    %v1599 = vunpack.c.l.b16 %v1523
    %v1600 = vunpack.c.l.b16 %v1524
    %v1601 = vunpack.c.h.b16 %v1524
    %v1602 = vunpack.c.l.b16 %v1525
    %v1603 = vunpack.c.l.b16 %v1526
    %v1604 = vunpack.c.h.b16 %v1526
    %v1605 = vunpack.c.l.b16 %v1527
    %v1606 = vunpack.c.l.b16 %v1528
    %v1607 = vunpack.c.h.b16 %v1528
    %v1608 = vunpack.c.l.b16 %v1529
    %v1609 = vunpack.c.l.b16 %v1530
    %v1610 = vunpack.c.h.b16 %v1530
    %v1611 = vunpack.c.l.b16 %v1531
    %v1612 = vpack.c.b16 %v1567, %v1564
    %v1613 = vpack.c.b16 %v1568, %v1565
    %v1614 = vpack.c.b16 %v1569, %v1566
    %v1615 = vpack.c.b16 %v1573, %v1570
    %v1616 = vpack.c.b16 %v1574, %v1571
    %v1617 = vpack.c.b16 %v1575, %v1572
    %v1618 = vpack.c.b16 %v1579, %v1576
    %v1619 = vpack.c.b16 %v1580, %v1577
    %v1620 = vpack.c.b16 %v1581, %v1578
    %v1621 = vpack.c.b16 %v1585, %v1582
    %v1622 = vpack.c.b16 %v1586, %v1583
    %v1623 = vpack.c.b16 %v1587, %v1584
    %v1624 = vpack.c.b16 %v1591, %v1588
    %v1625 = vpack.c.b16 %v1592, %v1589
    %v1626 = vpack.c.b16 %v1593, %v1590
    %v1627 = vpack.c.b16 %v1597, %v1594
    %v1628 = vpack.c.b16 %v1598, %v1595
    %v1629 = vpack.c.b16 %v1599, %v1596
    %v1630 = vpack.c.b16 %v1603, %v1600
    %v1631 = vpack.c.b16 %v1604, %v1601
    %v1632 = vpack.c.b16 %v1605, %v1602
    %v1633 = vpack.c.b16 %v1609, %v1606
    %v1634 = vpack.c.b16 %v1610, %v1607
    %v1635 = vpack.c.b16 %v1611, %v1608
    %1660 = vmatprep.subr.bf16.mxu0 %v1613
    %1661 = vmatpush1.bf16.msra.mxu0 %v1612
    %1662 = vmatprep.subr.bf16.mxu0 %v1616
    %1663 = vmatpush1.bf16.msra.mxu0 %v1615
    %1664 = vmatprep.subr.bf16.mxu0 %v1619
    %1665 = vmatpush1.bf16.msra.mxu0 %v1618
    %1666 = vmatprep.subr.bf16.mxu0 %v1622
    %1667 = vmatpush1.bf16.msra.mxu0 %v1621
    %1668 = vmatprep.subr.bf16.mxu0 %v1625
    %1669 = vmatpush1.bf16.msra.mxu0 %v1624
    %1670 = vmatprep.subr.bf16.mxu0 %v1628
    %1671 = vmatpush1.bf16.msra.mxu0 %v1627
    %1672 = vmatprep.subr.bf16.mxu0 %v1631
    %1673 = vmatpush1.bf16.msra.mxu0 %v1630
    %1674 = vmatprep.subr.bf16.mxu0 %v1634
    %1675 = vmatpush1.bf16.msra.mxu0 %v1633
    %1676 = vmatprep.subr.bf16.mxu0 0
    %1677 = vmatpush1.bf16.msra.mxu0 0
    %1678 = vmatprep.subr.bf16.mxu0 0
    %1679 = vmatpush1.bf16.msra.mxu0 0
    %1680 = vmatprep.subr.bf16.mxu0 0
    %1681 = vmatpush1.bf16.msra.mxu0 0
    %1682 = vmatprep.subr.bf16.mxu0 0
    %1683 = vmatpush1.bf16.msra.mxu0 0
    %1684 = vmatprep.subr.bf16.mxu0 0
    %1685 = vmatpush1.bf16.msra.mxu0 0
    %1686 = vmatprep.subr.bf16.mxu0 0
    %1687 = vmatpush1.bf16.msra.mxu0 0
    %1688 = vmatprep.subr.bf16.mxu0 0
    %1689 = vmatpush1.bf16.msra.mxu0 0
    %1690 = vmatprep.subr.bf16.mxu0 0
    %1691 = vmatpush1.bf16.msra.mxu0 0
    %1692 = vmatprep.mubr.bf16.mxu0 0
    %1693 = vmatmul.mubr.bf16.gmra.mrb[0].mxu0 %v1499
    %v1694 = vpop.f32.mrb[0].mxu0
    %v1695 = vadd.f32 0.0, %v1694
    %v1696 = vpop.f32.mrb[0].mxu0
    %v1697 = vadd.f32 0.0, %v1696
    %v1698 = vpop.f32.mrb[0].mxu0
    %v1699 = vpop.f32.mrb[0].mxu0
    %1700 = vdwg.mxu0
    %1701 = vmatprep.subr.bf16.mxu0 0
    %1702 = vmatpush1.bf16.msra.mxu0 %v1614
    %1703 = vmatprep.subr.bf16.mxu0 0
    %1704 = vmatpush1.bf16.msra.mxu0 %v1617
    %1705 = vmatprep.subr.bf16.mxu0 0
    %1706 = vmatpush1.bf16.msra.mxu0 %v1620
    %1707 = vmatprep.subr.bf16.mxu0 0
    %1708 = vmatpush1.bf16.msra.mxu0 %v1623
    %1709 = vmatprep.subr.bf16.mxu0 0
    %1710 = vmatpush1.bf16.msra.mxu0 %v1626
    %1711 = vmatprep.subr.bf16.mxu0 0
    %1712 = vmatpush1.bf16.msra.mxu0 %v1629
    %1713 = vmatprep.subr.bf16.mxu0 0
    %1714 = vmatpush1.bf16.msra.mxu0 %v1632
    %1715 = vmatprep.subr.bf16.mxu0 0
    %1716 = vmatpush1.bf16.msra.mxu0 %v1635
    %1717 = vmatprep.subr.bf16.mxu0 0
    %1718 = vmatpush1.bf16.msra.mxu0 0
    %1719 = vmatprep.subr.bf16.mxu0 0
    %1720 = vmatpush1.bf16.msra.mxu0 0
    %1721 = vmatprep.subr.bf16.mxu0 0
    %1722 = vmatpush1.bf16.msra.mxu0 0
    %1723 = vmatprep.subr.bf16.mxu0 0
    %1724 = vmatpush1.bf16.msra.mxu0 0
    %1725 = vmatprep.subr.bf16.mxu0 0
    %1726 = vmatpush1.bf16.msra.mxu0 0
    %1727 = vmatprep.subr.bf16.mxu0 0
    %1728 = vmatpush1.bf16.msra.mxu0 0
    %1729 = vmatprep.subr.bf16.mxu0 0
    %1730 = vmatpush1.bf16.msra.mxu0 0
    %1731 = vmatprep.subr.bf16.mxu0 0
    %1732 = vmatpush1.bf16.msra.mxu0 0
    %1733 = vmatprep.mubr.bf16.mxu0 0
    %1734 = vmatmul.mubr.bf16.gmra.mrb[0].mxu0 %v1499
    %v1735 = vpop.f32.mrb[0].mxu0
    %v1736 = vadd.f32 0.0, %v1735
    %v1737 = vpop.f32.mrb[0].mxu0
    %v1738 = vpop.f32.mrb[0].mxu0
    %v1739 = vpop.f32.mrb[0].mxu0
    %1740 = vdwg.mxu0
    %v1741 = vrot.slane %v1695, 4
    %v1742 = vadd.f32 %v1695, %v1741
    %v1743 = vrot.slane %v1742, 2
    %v1744 = vadd.f32 %v1742, %v1743
    %v1745 = vrot.slane %v1744, 1
    %v1746 = vadd.f32 %v1744, %v1745
    %v1747 = vrot.slane %v1697, 4
    %v1748 = vadd.f32 %v1697, %v1747
    %v1749 = vrot.slane %v1748, 2
    %v1750 = vadd.f32 %v1748, %v1749
    %v1751 = vrot.slane %v1750, 1
    %v1752 = vadd.f32 %v1750, %v1751
    %v1753 = vrot.slane %v1736, 4
    %v1754 = vadd.f32 %v1736, %v1753
    %v1755 = vrot.slane %v1754, 2
    %v1756 = vadd.f32 %v1754, %v1755
    %v1757 = vrot.slane %v1756, 1
    %v1758 = vadd.f32 %v1756, %v1757
    %v1759 = vmul.f32 %v1746, 0.125
    %v1760 = vmul.f32 %v1752, 0.125
    %v1761 = vmul.f32 %v1758, 0.125
    %v1762 = vmul.f32 %v1695, %v1695
    %v1763 = vmul.f32 %v1697, %v1697
    %v1764 = vmul.f32 %v1736, %v1736
    %v1765 = vrot.slane %v1762, 4
    %v1766 = vadd.f32 %v1762, %v1765
    %v1767 = vrot.slane %v1766, 2
    %v1768 = vadd.f32 %v1766, %v1767
    %v1769 = vrot.slane %v1768, 1
    %v1770 = vadd.f32 %v1768, %v1769
    %v1771 = vrot.slane %v1763, 4
    %v1772 = vadd.f32 %v1763, %v1771
    %v1773 = vrot.slane %v1772, 2
    %v1774 = vadd.f32 %v1772, %v1773
    %v1775 = vrot.slane %v1774, 1
    %v1776 = vadd.f32 %v1774, %v1775
    %v1777 = vrot.slane %v1764, 4
    %v1778 = vadd.f32 %v1764, %v1777
    %v1779 = vrot.slane %v1778, 2
    %v1780 = vadd.f32 %v1778, %v1779
    %v1781 = vrot.slane %v1780, 1
    %v1782 = vadd.f32 %v1780, %v1781
    %v1783 = vmul.f32 %v1770, 0.125
    %v1784 = vmul.f32 %v1776, 0.125
    %v1785 = vmul.f32 %v1782, 0.125
    %v1786 = vmul.f32 %v1759, %v1759
    %v1787 = vmul.f32 %v1760, %v1760
    %v1788 = vmul.f32 %v1761, %v1761
    %v1789 = vsub.f32 %v1783, %v1786
    %v1790 = vsub.f32 %v1784, %v1787
    %v1791 = vsub.f32 %v1785, %v1788
    %v1792 = vmax.f32 %v1789, 0.0
    %v1793 = vmax.f32 %v1790, 0.0
    %v1794 = vmax.f32 %v1791, 0.0
    %s1795 = scalar_lea.vmem [#allocation2], 3
    %v1796 = vld [vmem:[%s1795] ss:$8 sm:$0x7]
    %s1797 = scalar_lea.vmem [#allocation5], 3
    %v1798 = vld [vmem:[%s1797] ss:$8 sm:$0x7]
    %v1799 = vsub.f32 %v1695, %v1759
    %v1800 = vsub.f32 %v1697, %v1760
    %v1801 = vsub.f32 %v1736, %v1761
    %v1802 = vadd.f32 %v1792, 1e-05
    %v1803 = vadd.f32 %v1793, 1e-05
    %v1804 = vadd.f32 %v1794, 1e-05
    %v1805 = vrsqrt.pop %v1802
    %v1806 = vrsqrt.pop %v1803
    %v1807 = vrsqrt.pop %v1804
    %v1808 = vmul.f32 %v1799, %v1805
    %v1809 = vmul.f32 %v1800, %v1806
    %v1810 = vmul.f32 %v1801, %v1807
    %v1812 = vlaneseq
    %v1813 = vshrl.u32 %v1812, 7
    %v1814 = vsub.s32 0, %v1813
    %v1815 = vrot.slane %v1796, %v1814
    %v1816 = vlaneseq
    %v1817 = vshrl.u32 %v1816, 7
    %v1818 = vsub.s32 1, %v1817
    %v1819 = vrot.slane %v1796, %v1818
    %v1820 = vlaneseq
    %v1821 = vshrl.u32 %v1820, 7
    %v1822 = vsub.s32 2, %v1821
    %v1823 = vrot.slane %v1796, %v1822
    %v1827 = vmul.f32 %v1808, %v1815
    %v1828 = vmul.f32 %v1809, %v1819
    %v1829 = vmul.f32 %v1810, %v1823
    %v1831 = vlaneseq
    %v1832 = vshrl.u32 %v1831, 7
    %v1833 = vsub.s32 0, %v1832
    %v1834 = vrot.slane %v1798, %v1833
    %v1835 = vlaneseq
    %v1836 = vshrl.u32 %v1835, 7
    %v1837 = vsub.s32 1, %v1836
    %v1838 = vrot.slane %v1798, %v1837
    %v1839 = vlaneseq
    %v1840 = vshrl.u32 %v1839, 7
    %v1841 = vsub.s32 2, %v1840
    %v1842 = vrot.slane %v1798, %v1841
    %v1846 = vadd.f32 %v1827, %v1834
    %v1847 = vadd.f32 %v1828, %v1838
    %v1848 = vadd.f32 %v1829, %v1842
    %v1849 = vtanh.pop %v1846
    %v1850 = vtanh.pop %v1847
    %v1851 = vtanh.pop %v1848
    %v1852 = vpack.c.bf16 %v1849, %v1849
    %v1853 = vld [vmem:[#allocation10] sm:$0xf]
    %v1854 = vld [vmem:[#allocation10 + $0x4] sm:$0xf]
    %v1855 = vld [vmem:[#allocation10 + $0x8] sm:$0xf]
    %v1856 = vld [vmem:[#allocation10 + $0xc] sm:$0xf]
    %v1857 = vld [vmem:[#allocation10 + $0x10] sm:$0xf]
    %v1858 = vld [vmem:[#allocation10 + $0x14] sm:$0xf]
    %v1859 = vld [vmem:[#allocation10 + $0x18] sm:$0xf]
    %v1860 = vld [vmem:[#allocation10 + $0x1c] sm:$0xf]
    %v1861 = vld [vmem:[#allocation10 + $0x20] sm:$0xf]
    %v1862 = vld [vmem:[#allocation10 + $0x24] sm:$0xf]
    %v1863 = vld [vmem:[#allocation10 + $0x28] sm:$0xf]
    %v1864 = vld [vmem:[#allocation10 + $0x2c] sm:$0xf]
    %v1865 = vld [vmem:[#allocation10 + $0x30] sm:$0xf]
    %v1866 = vld [vmem:[#allocation10 + $0x34] sm:$0xf]
    %v1867 = vld [vmem:[#allocation10 + $0x38] sm:$0xf]
    %v1868 = vld [vmem:[#allocation10 + $0x3c] sm:$0xf]
    %v1885 = vunpack.c.l.b16 %v1853
    %v1886 = vunpack.c.l.b16 %v1854
    %v1887 = vunpack.c.l.b16 %v1855
    %v1888 = vunpack.c.l.b16 %v1856
    %v1889 = vunpack.c.l.b16 %v1857
    %v1890 = vunpack.c.l.b16 %v1858
    %v1891 = vunpack.c.l.b16 %v1859
    %v1892 = vunpack.c.l.b16 %v1860
    %v1893 = vunpack.c.l.b16 %v1861
    %v1894 = vunpack.c.l.b16 %v1862
    %v1895 = vunpack.c.l.b16 %v1863
    %v1896 = vunpack.c.l.b16 %v1864
    %v1897 = vunpack.c.l.b16 %v1865
    %v1898 = vunpack.c.l.b16 %v1866
    %v1899 = vunpack.c.l.b16 %v1867
    %v1900 = vunpack.c.l.b16 %v1868
    %v1901 = vpack.c.b16 %v1886, %v1885
    %v1902 = vpack.c.b16 %v1888, %v1887
    %v1903 = vpack.c.b16 %v1890, %v1889
    %v1904 = vpack.c.b16 %v1892, %v1891
    %v1905 = vpack.c.b16 %v1894, %v1893
    %v1906 = vpack.c.b16 %v1896, %v1895
    %v1907 = vpack.c.b16 %v1898, %v1897
    %v1908 = vpack.c.b16 %v1900, %v1899
    %1917 = vmatprep.subr.bf16.mxu0 0
    %1918 = vmatpush1.bf16.msra.mxu0 %v1901
    %1919 = vmatprep.subr.bf16.mxu0 0
    %1920 = vmatpush1.bf16.msra.mxu0 %v1902
    %1921 = vmatprep.subr.bf16.mxu0 0
    %1922 = vmatpush1.bf16.msra.mxu0 %v1903
    %1923 = vmatprep.subr.bf16.mxu0 0
    %1924 = vmatpush1.bf16.msra.mxu0 %v1904
    %1925 = vmatprep.subr.bf16.mxu0 0
    %1926 = vmatpush1.bf16.msra.mxu0 %v1905
    %1927 = vmatprep.subr.bf16.mxu0 0
    %1928 = vmatpush1.bf16.msra.mxu0 %v1906
    %1929 = vmatprep.subr.bf16.mxu0 0
    %1930 = vmatpush1.bf16.msra.mxu0 %v1907
    %1931 = vmatprep.subr.bf16.mxu0 0
    %1932 = vmatpush1.bf16.msra.mxu0 %v1908
    %1933 = vmatprep.subr.bf16.mxu0 0
    %1934 = vmatpush1.bf16.msra.mxu0 0
    %1935 = vmatprep.subr.bf16.mxu0 0
    %1936 = vmatpush1.bf16.msra.mxu0 0
    %1937 = vmatprep.subr.bf16.mxu0 0
    %1938 = vmatpush1.bf16.msra.mxu0 0
    %1939 = vmatprep.subr.bf16.mxu0 0
    %1940 = vmatpush1.bf16.msra.mxu0 0
    %1941 = vmatprep.subr.bf16.mxu0 0
    %1942 = vmatpush1.bf16.msra.mxu0 0
    %1943 = vmatprep.subr.bf16.mxu0 0
    %1944 = vmatpush1.bf16.msra.mxu0 0
    %1945 = vmatprep.subr.bf16.mxu0 0
    %1946 = vmatpush1.bf16.msra.mxu0 0
    %1947 = vmatprep.subr.bf16.mxu0 0
    %1948 = vmatpush1.bf16.msra.mxu0 0
    %1949 = vmatprep.mubr.bf16.mxu0 0
    %1950 = vmatmul.mubr.bf16.gmra.mrb[0].mxu0 %v1852
    %v1951 = vpop.f32.mrb[0].mxu0
    %v1952 = vadd.f32 0.0, %v1951
    %v1953 = vpop.f32.mrb[0].mxu0
    %v1954 = vpop.f32.mrb[0].mxu0
    %v1955 = vpop.f32.mrb[0].mxu0
    %1956 = vdwg.mxu0
    %v1957 = vrot.slane %v1952, 4
    %v1958 = vadd.f32 %v1952, %v1957
    %v1959 = vrot.slane %v1958, 2
    %v1960 = vadd.f32 %v1958, %v1959
    %v1961 = vrot.slane %v1960, 1
    %v1962 = vadd.f32 %v1960, %v1961
    %v1963 = vmul.f32 %v1962, 0.125
    %v1964 = vmul.f32 %v1952, %v1952
    %v1965 = vrot.slane %v1964, 4
    %v1966 = vadd.f32 %v1964, %v1965
    %v1967 = vrot.slane %v1966, 2
    %v1968 = vadd.f32 %v1966, %v1967
    %v1969 = vrot.slane %v1968, 1
    %v1970 = vadd.f32 %v1968, %v1969
    %v1971 = vmul.f32 %v1970, 0.125
    %v1972 = vmul.f32 %v1963, %v1963
    %v1973 = vsub.f32 %v1971, %v1972
    %v1974 = vmax.f32 %v1973, 0.0
    %v1975 = vld [vmem:[#allocation2 + $0x4] ss:$0 sm:$0xff]
    %v1976 = vld [vmem:[#allocation5 + $0x4] ss:$0 sm:$0xff]
    %v1977 = vsub.f32 %v1952, %v1963
    %v1978 = vadd.f32 %v1974, 1e-05
    %v1979 = vrsqrt.pop %v1978
    %v1980 = vmul.f32 %v1977, %v1979
    %v1981 = vmul.f32 %v1980, %v1975
    %v1982 = vadd.f32 %v1981, %v1976
    %v1983 = vtanh.pop %v1982
    %v1984 = vpack.c.bf16 %v1983, %v1983
    %v1985 = vld [vmem:[#allocation11] sm:$0xf]
    %v1986 = vld [vmem:[#allocation11 + $0x4] sm:$0xf]
    %v1987 = vld [vmem:[#allocation11 + $0x8] sm:$0xf]
    %v1988 = vld [vmem:[#allocation11 + $0xc] sm:$0xf]
    %v1989 = vld [vmem:[#allocation11 + $0x10] sm:$0xf]
    %v1990 = vld [vmem:[#allocation11 + $0x14] sm:$0xf]
    %v1991 = vld [vmem:[#allocation11 + $0x18] sm:$0xf]
    %v1992 = vld [vmem:[#allocation11 + $0x1c] sm:$0xf]
    %v1993 = vld [vmem:[#allocation11 + $0x20] sm:$0xf]
    %v1994 = vld [vmem:[#allocation11 + $0x24] sm:$0xf]
    %v1995 = vld [vmem:[#allocation11 + $0x28] sm:$0xf]
    %v1996 = vld [vmem:[#allocation11 + $0x2c] sm:$0xf]
    %v1997 = vld [vmem:[#allocation11 + $0x30] sm:$0xf]
    %v1998 = vld [vmem:[#allocation11 + $0x34] sm:$0xf]
    %v1999 = vld [vmem:[#allocation11 + $0x38] sm:$0xf]
    %v2000 = vld [vmem:[#allocation11 + $0x3c] sm:$0xf]
    %v2017 = vunpack.c.l.b16 %v1985
    %v2018 = vunpack.c.l.b16 %v1986
    %v2019 = vunpack.c.l.b16 %v1987
    %v2020 = vunpack.c.l.b16 %v1988
    %v2021 = vunpack.c.l.b16 %v1989
    %v2022 = vunpack.c.l.b16 %v1990
    %v2023 = vunpack.c.l.b16 %v1991
    %v2024 = vunpack.c.l.b16 %v1992
    %v2025 = vunpack.c.l.b16 %v1993
    %v2026 = vunpack.c.l.b16 %v1994
    %v2027 = vunpack.c.l.b16 %v1995
    %v2028 = vunpack.c.l.b16 %v1996
    %v2029 = vunpack.c.l.b16 %v1997
    %v2030 = vunpack.c.l.b16 %v1998
    %v2031 = vunpack.c.l.b16 %v1999
    %v2032 = vunpack.c.l.b16 %v2000
    %v2033 = vpack.c.b16 %v2018, %v2017
    %v2034 = vpack.c.b16 %v2020, %v2019
    %v2035 = vpack.c.b16 %v2022, %v2021
    %v2036 = vpack.c.b16 %v2024, %v2023
    %v2037 = vpack.c.b16 %v2026, %v2025
    %v2038 = vpack.c.b16 %v2028, %v2027
    %v2039 = vpack.c.b16 %v2030, %v2029
    %v2040 = vpack.c.b16 %v2032, %v2031
    %2049 = vmatprep.subr.bf16.mxu0 0
    %2050 = vmatpush1.bf16.msra.mxu0 %v2033
    %2051 = vmatprep.subr.bf16.mxu0 0
    %2052 = vmatpush1.bf16.msra.mxu0 %v2034
    %2053 = vmatprep.subr.bf16.mxu0 0
    %2054 = vmatpush1.bf16.msra.mxu0 %v2035
    %2055 = vmatprep.subr.bf16.mxu0 0
    %2056 = vmatpush1.bf16.msra.mxu0 %v2036
    %2057 = vmatprep.subr.bf16.mxu0 0
    %2058 = vmatpush1.bf16.msra.mxu0 %v2037
    %2059 = vmatprep.subr.bf16.mxu0 0
    %2060 = vmatpush1.bf16.msra.mxu0 %v2038
    %2061 = vmatprep.subr.bf16.mxu0 0
    %2062 = vmatpush1.bf16.msra.mxu0 %v2039
    %2063 = vmatprep.subr.bf16.mxu0 0
    %2064 = vmatpush1.bf16.msra.mxu0 %v2040
    %2065 = vmatprep.subr.bf16.mxu0 0
    %2066 = vmatpush1.bf16.msra.mxu0 0
    %2067 = vmatprep.subr.bf16.mxu0 0
    %2068 = vmatpush1.bf16.msra.mxu0 0
    %2069 = vmatprep.subr.bf16.mxu0 0
    %2070 = vmatpush1.bf16.msra.mxu0 0
    %2071 = vmatprep.subr.bf16.mxu0 0
    %2072 = vmatpush1.bf16.msra.mxu0 0
    %2073 = vmatprep.subr.bf16.mxu0 0
    %2074 = vmatpush1.bf16.msra.mxu0 0
    %2075 = vmatprep.subr.bf16.mxu0 0
    %2076 = vmatpush1.bf16.msra.mxu0 0
    %2077 = vmatprep.subr.bf16.mxu0 0
    %2078 = vmatpush1.bf16.msra.mxu0 0
    %2079 = vmatprep.subr.bf16.mxu0 0
    %2080 = vmatpush1.bf16.msra.mxu0 0
    %2081 = vmatprep.mubr.bf16.mxu0 0
    %2082 = vmatmul.mubr.bf16.gmra.mrb[0].mxu0 %v1984
    %v2083 = vpop.f32.mrb[0].mxu0
    %v2084 = vadd.f32 0.0, %v2083
    %v2085 = vpop.f32.mrb[0].mxu0
    %v2086 = vpop.f32.mrb[0].mxu0
    %v2087 = vpop.f32.mrb[0].mxu0
    %2088 = vdwg.mxu0
    %v2089 = vrot.slane %v2084, 4
    %v2090 = vadd.f32 %v2084, %v2089
    %v2091 = vrot.slane %v2090, 2
    %v2092 = vadd.f32 %v2090, %v2091
    %v2093 = vrot.slane %v2092, 1
    %v2094 = vadd.f32 %v2092, %v2093
    %v2095 = vmul.f32 %v2094, 0.125
    %v2096 = vmul.f32 %v2084, %v2084
    %v2097 = vrot.slane %v2096, 4
    %v2098 = vadd.f32 %v2096, %v2097
    %v2099 = vrot.slane %v2098, 2
    %v2100 = vadd.f32 %v2098, %v2099
    %v2101 = vrot.slane %v2100, 1
    %v2102 = vadd.f32 %v2100, %v2101
    %v2103 = vmul.f32 %v2102, 0.125
    %v2104 = vmul.f32 %v2095, %v2095
    %v2105 = vsub.f32 %v2103, %v2104
    %v2106 = vmax.f32 %v2105, 0.0
    %v2107 = vld [vmem:[#allocation2 + $0x5] ss:$0 sm:$0xff]
    %v2108 = vld [vmem:[#allocation5 + $0x5] ss:$0 sm:$0xff]
    %v2109 = vsub.f32 %v2084, %v2095
    %v2110 = vadd.f32 %v2106, 1e-05
    %v2111 = vrsqrt.pop %v2110
    %v2112 = vmul.f32 %v2109, %v2111
    %v2113 = vmul.f32 %v2112, %v2107
    %v2114 = vadd.f32 %v2113, %v2108
    %2115 = vrot.lane.b32.xlu0 %v2114, 64
    %v2116 = vpop.permute.xlu0 %2115
    %vm2117 = vcmp.lt.s32.totalorder %v241, 64
    %v2118 = vld [vmem:[%s1 + $0x8] sm:$0xff]
    %v2119 = vmul.f32 %v2116, 0.5
    %v2120 = vmul.f32 %v2119, 1.442695
    %v2121 = vpow.pop %v2120
    %v2122 = vmul.f32 %v2118, %v2121
    %v2123 = vadd.f32 %v2122, %v2114
    %v2124 = vsel %vm2117, %v2123, 0.0
    %v2125 = vld [vmem:[#allocation22 + $0x8] sm:$0x1]
    %s2126 = sld [smem:[#allocation19 + $0x28]]
    %v2127 = vstv %s2126
    %v2128 = vmul.f32 %v2127, %v2124
    %s2129 = sld [smem:[#allocation19 + $0x29]]
    %2130 = vrot.lane.b32.xlu0 %v2124, 127
    %v2131 = vpop.permute.xlu0 %2130
    %v2132 = vstv %s2129
    %v2133 = vmul.f32 %v2132, %v2131
    %v2134 = vadd.f32 %v2128, %v2133
    %s2135 = sld [smem:[#allocation19 + $0x2a]]
    %2136 = vrot.lane.b32.xlu0 %v2124, 126
    %v2137 = vpop.permute.xlu0 %2136
    %v2138 = vstv %s2135
    %v2139 = vmul.f32 %v2138, %v2137
    %v2140 = vadd.f32 %v2134, %v2139
    %s2141 = sld [smem:[#allocation19 + $0x2b]]
    %2142 = vrot.lane.b32.xlu0 %v2124, 125
    %v2143 = vpop.permute.xlu0 %2142
    %v2144 = vstv %s2141
    %v2145 = vmul.f32 %v2144, %v2143
    %v2146 = vadd.f32 %v2140, %v2145
    %s2147 = sld [smem:[#allocation19 + $0x2c]]
    %2148 = vrot.lane.b32.xlu0 %v2124, 124
    %v2149 = vpop.permute.xlu0 %2148
    %v2150 = vstv %s2147
    %v2151 = vmul.f32 %v2150, %v2149
    %v2152 = vadd.f32 %v2146, %v2151
    %s2153 = sld [smem:[#allocation20 + $0x8]]
    %v2154 = vstv %s2153
    %v2155 = vadd.f32 %v2152, %v2154
    %vm2156 = vcmp.ge.f32.partialorder %v2155, 0.0
    %v2157 = vmul.f32 %v2155, 0.01
    %v2158 = vsel %vm2156, %v2155, %v2157
    %v2159 = vlaneseq
    %v2160 = vshrl.u32 %v2159, 7
    %v2161 = vsub.s32 0, %v2160
    %v2162 = vrot.slane %v2125, %v2161
    %v2163 = vmul.f32 %v2158, %v2162
    %v2164 = vadd.f32 %v2163, %v2124
    %v2165 = vld [vmem:[%s19 + $0x10] sm:$0x1]
    %v2166 = vld [vmem:[%s19 + $0x11] sm:$0x1]
    %v2167 = vlaneseq
    %v2168 = vshrl.u32 %v2167, 7
    %v2169 = vsub.s32 0, %v2168
    %v2170 = vrot.slane %v2165, %v2169
    %v2171 = vlaneseq
    %v2172 = vshrl.u32 %v2171, 7
    %v2173 = vsub.s32 0, %v2172
    %v2174 = vrot.slane %v2166, %v2173
    %v2175 = vsel %vm2156, %v2170, %v2174
    %v2176 = vadd.f32 %v2175, 0.0
    %v2177 = vld [vmem:[#allocation22 + $0x9] sm:$0x1]
    %s2178 = sld [smem:[#allocation19 + $0x2d]]
    %v2179 = vstv %s2178
    %v2180 = vmul.f32 %v2179, %v2164
    %s2181 = sld [smem:[#allocation19 + $0x2e]]
    %2182 = vrot.lane.b32.xlu0 %v2164, 127
    %v2183 = vpop.permute.xlu0 %2182
    %v2184 = vstv %s2181
    %v2185 = vmul.f32 %v2184, %v2183
    %v2186 = vadd.f32 %v2180, %v2185
    %s2187 = sld [smem:[#allocation19 + $0x2f]]
    %2188 = vrot.lane.b32.xlu0 %v2164, 126
    %v2189 = vpop.permute.xlu0 %2188
    %v2190 = vstv %s2187
    %v2191 = vmul.f32 %v2190, %v2189
    %v2192 = vadd.f32 %v2186, %v2191
    %s2193 = sld [smem:[#allocation19 + $0x30]]
    %2194 = vrot.lane.b32.xlu0 %v2164, 125
    %v2195 = vpop.permute.xlu0 %2194
    %v2196 = vstv %s2193
    %v2197 = vmul.f32 %v2196, %v2195
    %v2198 = vadd.f32 %v2192, %v2197
    %s2199 = sld [smem:[#allocation19 + $0x31]]
    %2200 = vrot.lane.b32.xlu0 %v2164, 124
    %v2201 = vpop.permute.xlu0 %2200
    %v2202 = vstv %s2199
    %v2203 = vmul.f32 %v2202, %v2201
    %v2204 = vadd.f32 %v2198, %v2203
    %s2205 = sld [smem:[#allocation20 + $0x9]]
    %v2206 = vstv %s2205
    %v2207 = vadd.f32 %v2204, %v2206
    %vm2208 = vcmp.ge.f32.partialorder %v2207, 0.0
    %v2209 = vmul.f32 %v2207, 0.01
    %v2210 = vsel %vm2208, %v2207, %v2209
    %v2211 = vlaneseq
    %v2212 = vshrl.u32 %v2211, 7
    %v2213 = vsub.s32 0, %v2212
    %v2214 = vrot.slane %v2177, %v2213
    %v2215 = vmul.f32 %v2210, %v2214
    %v2216 = vadd.f32 %v2215, %v2164
    %v2217 = vld [vmem:[%s19 + $0x12] sm:$0x1]
    %v2218 = vld [vmem:[%s19 + $0x13] sm:$0x1]
    %v2219 = vlaneseq
    %v2220 = vshrl.u32 %v2219, 7
    %v2221 = vsub.s32 0, %v2220
    %v2222 = vrot.slane %v2217, %v2221
    %v2223 = vlaneseq
    %v2224 = vshrl.u32 %v2223, 7
    %v2225 = vsub.s32 0, %v2224
    %v2226 = vrot.slane %v2218, %v2225
    %v2227 = vsel %vm2208, %v2222, %v2226
    %v2228 = vadd.f32 %v2176, %v2227
    %v2229 = vld [vmem:[#allocation22 + $0xa] sm:$0x1]
    %s2230 = sld [smem:[#allocation19 + $0x32]]
    %v2231 = vstv %s2230
    %v2232 = vmul.f32 %v2231, %v2216
    %s2233 = sld [smem:[#allocation19 + $0x33]]
    %2234 = vrot.lane.b32.xlu0 %v2216, 127
    %v2235 = vpop.permute.xlu0 %2234
    %v2236 = vstv %s2233
    %v2237 = vmul.f32 %v2236, %v2235
    %v2238 = vadd.f32 %v2232, %v2237
    %s2239 = sld [smem:[#allocation19 + $0x34]]
    %2240 = vrot.lane.b32.xlu0 %v2216, 126
    %v2241 = vpop.permute.xlu0 %2240
    %v2242 = vstv %s2239
    %v2243 = vmul.f32 %v2242, %v2241
    %v2244 = vadd.f32 %v2238, %v2243
    %s2245 = sld [smem:[#allocation19 + $0x35]]
    %2246 = vrot.lane.b32.xlu0 %v2216, 125
    %v2247 = vpop.permute.xlu0 %2246
    %v2248 = vstv %s2245
    %v2249 = vmul.f32 %v2248, %v2247
    %v2250 = vadd.f32 %v2244, %v2249
    %s2251 = sld [smem:[#allocation19 + $0x36]]
    %2252 = vrot.lane.b32.xlu0 %v2216, 124
    %v2253 = vpop.permute.xlu0 %2252
    %v2254 = vstv %s2251
    %v2255 = vmul.f32 %v2254, %v2253
    %v2256 = vadd.f32 %v2250, %v2255
    %s2257 = sld [smem:[#allocation20 + $0xa]]
    %v2258 = vstv %s2257
    %v2259 = vadd.f32 %v2256, %v2258
    %vm2260 = vcmp.ge.f32.partialorder %v2259, 0.0
    %v2261 = vmul.f32 %v2259, 0.01
    %v2262 = vsel %vm2260, %v2259, %v2261
    %v2263 = vlaneseq
    %v2264 = vshrl.u32 %v2263, 7
    %v2265 = vsub.s32 0, %v2264
    %v2266 = vrot.slane %v2229, %v2265
    %v2267 = vmul.f32 %v2262, %v2266
    %v2268 = vadd.f32 %v2267, %v2216
    %v2269 = vld [vmem:[%s19 + $0x14] sm:$0x1]
    %v2270 = vld [vmem:[%s19 + $0x15] sm:$0x1]
    %v2271 = vlaneseq
    %v2272 = vshrl.u32 %v2271, 7
    %v2273 = vsub.s32 0, %v2272
    %v2274 = vrot.slane %v2269, %v2273
    %v2275 = vlaneseq
    %v2276 = vshrl.u32 %v2275, 7
    %v2277 = vsub.s32 0, %v2276
    %v2278 = vrot.slane %v2270, %v2277
    %v2279 = vsel %vm2260, %v2274, %v2278
    %v2280 = vadd.f32 %v2228, %v2279
    %v2281 = vld [vmem:[#allocation22 + $0xb] sm:$0x1]
    %s2282 = sld [smem:[#allocation19 + $0x37]]
    %v2283 = vstv %s2282
    %v2284 = vmul.f32 %v2283, %v2268
    %s2285 = sld [smem:[#allocation19 + $0x38]]
    %2286 = vrot.lane.b32.xlu0 %v2268, 127
    %v2287 = vpop.permute.xlu0 %2286
    %v2288 = vstv %s2285
    %v2289 = vmul.f32 %v2288, %v2287
    %v2290 = vadd.f32 %v2284, %v2289
    %s2291 = sld [smem:[#allocation19 + $0x39]]
    %2292 = vrot.lane.b32.xlu0 %v2268, 126
    %v2293 = vpop.permute.xlu0 %2292
    %v2294 = vstv %s2291
    %v2295 = vmul.f32 %v2294, %v2293
    %v2296 = vadd.f32 %v2290, %v2295
    %s2297 = sld [smem:[#allocation19 + $0x3a]]
    %2298 = vrot.lane.b32.xlu0 %v2268, 125
    %v2299 = vpop.permute.xlu0 %2298
    %v2300 = vstv %s2297
    %v2301 = vmul.f32 %v2300, %v2299
    %v2302 = vadd.f32 %v2296, %v2301
    %s2303 = sld [smem:[#allocation19 + $0x3b]]
    %2304 = vrot.lane.b32.xlu0 %v2268, 124
    %v2305 = vpop.permute.xlu0 %2304
    %v2306 = vstv %s2303
    %v2307 = vmul.f32 %v2306, %v2305
    %v2308 = vadd.f32 %v2302, %v2307
    %s2309 = sld [smem:[#allocation20 + $0xb]]
    %v2310 = vstv %s2309
    %v2311 = vadd.f32 %v2308, %v2310
    %vm2312 = vcmp.ge.f32.partialorder %v2311, 0.0
    %v2313 = vmul.f32 %v2311, 0.01
    %v2314 = vsel %vm2312, %v2311, %v2313
    %v2315 = vlaneseq
    %v2316 = vshrl.u32 %v2315, 7
    %v2317 = vsub.s32 0, %v2316
    %v2318 = vrot.slane %v2281, %v2317
    %v2319 = vmul.f32 %v2314, %v2318
    %v2320 = vadd.f32 %v2319, %v2268
    %v2321 = vld [vmem:[%s19 + $0x16] sm:$0x1]
    %v2322 = vld [vmem:[%s19 + $0x17] sm:$0x1]
    %v2323 = vlaneseq
    %v2324 = vshrl.u32 %v2323, 7
    %v2325 = vsub.s32 0, %v2324
    %v2326 = vrot.slane %v2321, %v2325
    %v2327 = vlaneseq
    %v2328 = vshrl.u32 %v2327, 7
    %v2329 = vsub.s32 0, %v2328
    %v2330 = vrot.slane %v2322, %v2329
    %v2331 = vsel %vm2312, %v2326, %v2330
    %v2332 = vadd.f32 %v2280, %v2331
    %v2333 = vld [vmem:[#allocation22 + $0xc] sm:$0x1]
    %s2334 = sld [smem:[#allocation19 + $0x3c]]
    %v2335 = vstv %s2334
    %v2336 = vmul.f32 %v2335, %v2320
    %s2337 = sld [smem:[#allocation19 + $0x3d]]
    %2338 = vrot.lane.b32.xlu0 %v2320, 127
    %v2339 = vpop.permute.xlu0 %2338
    %v2340 = vstv %s2337
    %v2341 = vmul.f32 %v2340, %v2339
    %v2342 = vadd.f32 %v2336, %v2341
    %s2343 = sld [smem:[#allocation19 + $0x3e]]
    %2344 = vrot.lane.b32.xlu0 %v2320, 126
    %v2345 = vpop.permute.xlu0 %2344
    %v2346 = vstv %s2343
    %v2347 = vmul.f32 %v2346, %v2345
    %v2348 = vadd.f32 %v2342, %v2347
    %s2349 = sld [smem:[#allocation19 + $0x3f]]
    %2350 = vrot.lane.b32.xlu0 %v2320, 125
    %v2351 = vpop.permute.xlu0 %2350
    %v2352 = vstv %s2349
    %v2353 = vmul.f32 %v2352, %v2351
    %v2354 = vadd.f32 %v2348, %v2353
    %s2355 = sld [smem:[#allocation19 + $0x40]]
    %2356 = vrot.lane.b32.xlu0 %v2320, 124
    %v2357 = vpop.permute.xlu0 %2356
    %v2358 = vstv %s2355
    %v2359 = vmul.f32 %v2358, %v2357
    %v2360 = vadd.f32 %v2354, %v2359
    %s2361 = sld [smem:[#allocation20 + $0xc]]
    %v2362 = vstv %s2361
    %v2363 = vadd.f32 %v2360, %v2362
    %vm2364 = vcmp.ge.f32.partialorder %v2363, 0.0
    %v2365 = vmul.f32 %v2363, 0.01
    %v2366 = vsel %vm2364, %v2363, %v2365
    %v2367 = vlaneseq
    %v2368 = vshrl.u32 %v2367, 7
    %v2369 = vsub.s32 0, %v2368
    %v2370 = vrot.slane %v2333, %v2369
    %v2371 = vmul.f32 %v2366, %v2370
    %v2372 = vadd.f32 %v2371, %v2320
    %v2373 = vld [vmem:[%s19 + $0x18] sm:$0x1]
    %v2374 = vld [vmem:[%s19 + $0x19] sm:$0x1]
    %v2375 = vlaneseq
    %v2376 = vshrl.u32 %v2375, 7
    %v2377 = vsub.s32 0, %v2376
    %v2378 = vrot.slane %v2373, %v2377
    %v2379 = vlaneseq
    %v2380 = vshrl.u32 %v2379, 7
    %v2381 = vsub.s32 0, %v2380
    %v2382 = vrot.slane %v2374, %v2381
    %v2383 = vsel %vm2364, %v2378, %v2382
    %v2384 = vadd.f32 %v2332, %v2383
    %v2385 = vld [vmem:[#allocation22 + $0xd] sm:$0x1]
    %s2386 = sld [smem:[#allocation19 + $0x41]]
    %v2387 = vstv %s2386
    %v2388 = vmul.f32 %v2387, %v2372
    %s2389 = sld [smem:[#allocation19 + $0x42]]
    %2390 = vrot.lane.b32.xlu0 %v2372, 127
    %v2391 = vpop.permute.xlu0 %2390
    %v2392 = vstv %s2389
    %v2393 = vmul.f32 %v2392, %v2391
    %v2394 = vadd.f32 %v2388, %v2393
    %s2395 = sld [smem:[#allocation19 + $0x43]]
    %2396 = vrot.lane.b32.xlu0 %v2372, 126
    %v2397 = vpop.permute.xlu0 %2396
    %v2398 = vstv %s2395
    %v2399 = vmul.f32 %v2398, %v2397
    %v2400 = vadd.f32 %v2394, %v2399
    %s2401 = sld [smem:[#allocation19 + $0x44]]
    %2402 = vrot.lane.b32.xlu0 %v2372, 125
    %v2403 = vpop.permute.xlu0 %2402
    %v2404 = vstv %s2401
    %v2405 = vmul.f32 %v2404, %v2403
    %v2406 = vadd.f32 %v2400, %v2405
    %s2407 = sld [smem:[#allocation19 + $0x45]]
    %2408 = vrot.lane.b32.xlu0 %v2372, 124
    %v2409 = vpop.permute.xlu0 %2408
    %v2410 = vstv %s2407
    %v2411 = vmul.f32 %v2410, %v2409
    %v2412 = vadd.f32 %v2406, %v2411
    %s2413 = sld [smem:[#allocation20 + $0xd]]
    %v2414 = vstv %s2413
    %v2415 = vadd.f32 %v2412, %v2414
    %vm2416 = vcmp.ge.f32.partialorder %v2415, 0.0
    %v2417 = vmul.f32 %v2415, 0.01
    %v2418 = vsel %vm2416, %v2415, %v2417
    %v2419 = vlaneseq
    %v2420 = vshrl.u32 %v2419, 7
    %v2421 = vsub.s32 0, %v2420
    %v2422 = vrot.slane %v2385, %v2421
    %v2423 = vmul.f32 %v2418, %v2422
    %v2424 = vadd.f32 %v2423, %v2372
    %v2425 = vld [vmem:[%s19 + $0x1a] sm:$0x1]
    %v2426 = vld [vmem:[%s19 + $0x1b] sm:$0x1]
    %v2427 = vlaneseq
    %v2428 = vshrl.u32 %v2427, 7
    %v2429 = vsub.s32 0, %v2428
    %v2430 = vrot.slane %v2425, %v2429
    %v2431 = vlaneseq
    %v2432 = vshrl.u32 %v2431, 7
    %v2433 = vsub.s32 0, %v2432
    %v2434 = vrot.slane %v2426, %v2433
    %v2435 = vsel %vm2416, %v2430, %v2434
    %v2436 = vadd.f32 %v2384, %v2435
    %v2437 = vld [vmem:[#allocation22 + $0xe] sm:$0x1]
    %s2438 = sld [smem:[#allocation19 + $0x46]]
    %v2439 = vstv %s2438
    %v2440 = vmul.f32 %v2439, %v2424
    %s2441 = sld [smem:[#allocation19 + $0x47]]
    %2442 = vrot.lane.b32.xlu0 %v2424, 127
    %v2443 = vpop.permute.xlu0 %2442
    %v2444 = vstv %s2441
    %v2445 = vmul.f32 %v2444, %v2443
    %v2446 = vadd.f32 %v2440, %v2445
    %s2447 = sld [smem:[#allocation19 + $0x48]]
    %2448 = vrot.lane.b32.xlu0 %v2424, 126
    %v2449 = vpop.permute.xlu0 %2448
    %v2450 = vstv %s2447
    %v2451 = vmul.f32 %v2450, %v2449
    %v2452 = vadd.f32 %v2446, %v2451
    %s2453 = sld [smem:[#allocation19 + $0x49]]
    %2454 = vrot.lane.b32.xlu0 %v2424, 125
    %v2455 = vpop.permute.xlu0 %2454
    %v2456 = vstv %s2453
    %v2457 = vmul.f32 %v2456, %v2455
    %v2458 = vadd.f32 %v2452, %v2457
    %s2459 = sld [smem:[#allocation19 + $0x4a]]
    %2460 = vrot.lane.b32.xlu0 %v2424, 124
    %v2461 = vpop.permute.xlu0 %2460
    %v2462 = vstv %s2459
    %v2463 = vmul.f32 %v2462, %v2461
    %v2464 = vadd.f32 %v2458, %v2463
    %s2465 = sld [smem:[#allocation20 + $0xe]]
    %v2466 = vstv %s2465
    %v2467 = vadd.f32 %v2464, %v2466
    %vm2468 = vcmp.ge.f32.partialorder %v2467, 0.0
    %v2469 = vmul.f32 %v2467, 0.01
    %v2470 = vsel %vm2468, %v2467, %v2469
    %v2471 = vlaneseq
    %v2472 = vshrl.u32 %v2471, 7
    %v2473 = vsub.s32 0, %v2472
    %v2474 = vrot.slane %v2437, %v2473
    %v2475 = vmul.f32 %v2470, %v2474
    %v2476 = vadd.f32 %v2475, %v2424
    %v2477 = vld [vmem:[%s19 + $0x1c] sm:$0x1]
    %v2478 = vld [vmem:[%s19 + $0x1d] sm:$0x1]
    %v2479 = vlaneseq
    %v2480 = vshrl.u32 %v2479, 7
    %v2481 = vsub.s32 0, %v2480
    %v2482 = vrot.slane %v2477, %v2481
    %v2483 = vlaneseq
    %v2484 = vshrl.u32 %v2483, 7
    %v2485 = vsub.s32 0, %v2484
    %v2486 = vrot.slane %v2478, %v2485
    %v2487 = vsel %vm2468, %v2482, %v2486
    %v2488 = vadd.f32 %v2436, %v2487
    %v2489 = vld [vmem:[#allocation22 + $0xf] sm:$0x1]
    %s2490 = sld [smem:[#allocation19 + $0x4b]]
    %v2491 = vstv %s2490
    %v2492 = vmul.f32 %v2491, %v2476
    %s2493 = sld [smem:[#allocation19 + $0x4c]]
    %2494 = vrot.lane.b32.xlu0 %v2476, 127
    %v2495 = vpop.permute.xlu0 %2494
    %v2496 = vstv %s2493
    %v2497 = vmul.f32 %v2496, %v2495
    %v2498 = vadd.f32 %v2492, %v2497
    %s2499 = sld [smem:[#allocation19 + $0x4d]]
    %2500 = vrot.lane.b32.xlu0 %v2476, 126
    %v2501 = vpop.permute.xlu0 %2500
    %v2502 = vstv %s2499
    %v2503 = vmul.f32 %v2502, %v2501
    %v2504 = vadd.f32 %v2498, %v2503
    %s2505 = sld [smem:[#allocation19 + $0x4e]]
    %2506 = vrot.lane.b32.xlu0 %v2476, 125
    %v2507 = vpop.permute.xlu0 %2506
    %v2508 = vstv %s2505
    %v2509 = vmul.f32 %v2508, %v2507
    %v2510 = vadd.f32 %v2504, %v2509
    %s2511 = sld [smem:[#allocation19 + $0x4f]]
    %2512 = vrot.lane.b32.xlu0 %v2476, 124
    %v2513 = vpop.permute.xlu0 %2512
    %v2514 = vstv %s2511
    %v2515 = vmul.f32 %v2514, %v2513
    %v2516 = vadd.f32 %v2510, %v2515
    %s2517 = sld [smem:[#allocation20 + $0xf]]
    %v2518 = vstv %s2517
    %v2519 = vadd.f32 %v2516, %v2518
    %vm2520 = vcmp.ge.f32.partialorder %v2519, 0.0
    %v2521 = vmul.f32 %v2519, 0.01
    %v2522 = vsel %vm2520, %v2519, %v2521
    %v2523 = vlaneseq
    %v2524 = vshrl.u32 %v2523, 7
    %v2525 = vsub.s32 0, %v2524
    %v2526 = vrot.slane %v2489, %v2525
    %v2527 = vmul.f32 %v2522, %v2526
    %v2528 = vadd.f32 %v2527, %v2476
    %v2529 = vld [vmem:[%s19 + $0x1e] sm:$0x1]
    %v2530 = vld [vmem:[%s19 + $0x1f] sm:$0x1]
    %v2531 = vlaneseq
    %v2532 = vshrl.u32 %v2531, 7
    %v2533 = vsub.s32 0, %v2532
    %v2534 = vrot.slane %v2529, %v2533
    %v2535 = vlaneseq
    %v2536 = vshrl.u32 %v2535, 7
    %v2537 = vsub.s32 0, %v2536
    %v2538 = vrot.slane %v2530, %v2537
    %v2539 = vsel %vm2520, %v2534, %v2538
    %v2540 = vadd.f32 %v2488, %v2539
    %2541 = vadd.xlane.f32.xlu0 %v2540
    %v2542 = vpop.xlane.xlu0 %2541
    %v2543 = vpack.c.bf16 %v2528, %v2528
    %v2544 = vld [vmem:[#allocation13] sm:$0xf]
    %v2545 = vld [vmem:[#allocation13 + $0x4] sm:$0xf]
    %v2546 = vld [vmem:[#allocation13 + $0x8] sm:$0xf]
    %v2547 = vld [vmem:[#allocation13 + $0xc] sm:$0xf]
    %v2548 = vld [vmem:[#allocation13 + $0x10] sm:$0xf]
    %v2549 = vld [vmem:[#allocation13 + $0x14] sm:$0xf]
    %v2550 = vld [vmem:[#allocation13 + $0x18] sm:$0xf]
    %v2551 = vld [vmem:[#allocation13 + $0x1c] sm:$0xf]
    %v2552 = vld [vmem:[#allocation13 + $0x20] sm:$0xf]
    %v2553 = vld [vmem:[#allocation13 + $0x24] sm:$0xf]
    %v2554 = vld [vmem:[#allocation13 + $0x28] sm:$0xf]
    %v2555 = vld [vmem:[#allocation13 + $0x2c] sm:$0xf]
    %v2556 = vld [vmem:[#allocation13 + $0x30] sm:$0xf]
    %v2557 = vld [vmem:[#allocation13 + $0x34] sm:$0xf]
    %v2558 = vld [vmem:[#allocation13 + $0x38] sm:$0xf]
    %v2559 = vld [vmem:[#allocation13 + $0x3c] sm:$0xf]
    %v2576 = vunpack.c.l.b16 %v2544
    %v2577 = vunpack.c.l.b16 %v2545
    %v2578 = vunpack.c.l.b16 %v2546
    %v2579 = vunpack.c.l.b16 %v2547
    %v2580 = vunpack.c.l.b16 %v2548
    %v2581 = vunpack.c.l.b16 %v2549
    %v2582 = vunpack.c.l.b16 %v2550
    %v2583 = vunpack.c.l.b16 %v2551
    %v2584 = vunpack.c.l.b16 %v2552
    %v2585 = vunpack.c.l.b16 %v2553
    %v2586 = vunpack.c.l.b16 %v2554
    %v2587 = vunpack.c.l.b16 %v2555
    %v2588 = vunpack.c.l.b16 %v2556
    %v2589 = vunpack.c.l.b16 %v2557
    %v2590 = vunpack.c.l.b16 %v2558
    %v2591 = vunpack.c.l.b16 %v2559
    %v2592 = vpack.c.b16 %v2577, %v2576
    %v2593 = vpack.c.b16 %v2579, %v2578
    %v2594 = vpack.c.b16 %v2581, %v2580
    %v2595 = vpack.c.b16 %v2583, %v2582
    %v2596 = vpack.c.b16 %v2585, %v2584
    %v2597 = vpack.c.b16 %v2587, %v2586
    %v2598 = vpack.c.b16 %v2589, %v2588
    %v2599 = vpack.c.b16 %v2591, %v2590
    %2608 = vmatprep.subr.bf16.mxu0 0
    %2609 = vmatpush1.bf16.msra.mxu0 %v2592
    %2610 = vmatprep.subr.bf16.mxu0 0
    %2611 = vmatpush1.bf16.msra.mxu0 %v2593
    %2612 = vmatprep.subr.bf16.mxu0 0
    %2613 = vmatpush1.bf16.msra.mxu0 %v2594
    %2614 = vmatprep.subr.bf16.mxu0 0
    %2615 = vmatpush1.bf16.msra.mxu0 %v2595
    %2616 = vmatprep.subr.bf16.mxu0 0
    %2617 = vmatpush1.bf16.msra.mxu0 %v2596
    %2618 = vmatprep.subr.bf16.mxu0 0
    %2619 = vmatpush1.bf16.msra.mxu0 %v2597
    %2620 = vmatprep.subr.bf16.mxu0 0
    %2621 = vmatpush1.bf16.msra.mxu0 %v2598
    %2622 = vmatprep.subr.bf16.mxu0 0
    %2623 = vmatpush1.bf16.msra.mxu0 %v2599
    %2624 = vmatprep.subr.bf16.mxu0 0
    %2625 = vmatpush1.bf16.msra.mxu0 0
    %2626 = vmatprep.subr.bf16.mxu0 0
    %2627 = vmatpush1.bf16.msra.mxu0 0
    %2628 = vmatprep.subr.bf16.mxu0 0
    %2629 = vmatpush1.bf16.msra.mxu0 0
    %2630 = vmatprep.subr.bf16.mxu0 0
    %2631 = vmatpush1.bf16.msra.mxu0 0
    %2632 = vmatprep.subr.bf16.mxu0 0
    %2633 = vmatpush1.bf16.msra.mxu0 0
    %2634 = vmatprep.subr.bf16.mxu0 0
    %2635 = vmatpush1.bf16.msra.mxu0 0
    %2636 = vmatprep.subr.bf16.mxu0 0
    %2637 = vmatpush1.bf16.msra.mxu0 0
    %2638 = vmatprep.subr.bf16.mxu0 0
    %2639 = vmatpush1.bf16.msra.mxu0 0
    %2640 = vmatprep.mubr.bf16.mxu0 0
    %2641 = vmatmul.mubr.bf16.gmra.mrb[0].mxu0 %v2543
    %v2642 = vpop.f32.mrb[0].mxu0
    %v2643 = vadd.f32 0.0, %v2642
    %v2644 = vpop.f32.mrb[0].mxu0
    %v2645 = vpop.f32.mrb[0].mxu0
    %v2646 = vpop.f32.mrb[0].mxu0
    %2647 = vdwg.mxu0
    %v2648 = vrot.slane %v2643, 4
    %v2649 = vadd.f32 %v2643, %v2648
    %v2650 = vrot.slane %v2649, 2
    %v2651 = vadd.f32 %v2649, %v2650
    %v2652 = vrot.slane %v2651, 1
    %v2653 = vadd.f32 %v2651, %v2652
    %v2654 = vmul.f32 %v2653, 0.125
    %v2655 = vmul.f32 %v2643, %v2643
    %v2656 = vrot.slane %v2655, 4
    %v2657 = vadd.f32 %v2655, %v2656
    %v2658 = vrot.slane %v2657, 2
    %v2659 = vadd.f32 %v2657, %v2658
    %v2660 = vrot.slane %v2659, 1
    %v2661 = vadd.f32 %v2659, %v2660
    %v2662 = vmul.f32 %v2661, 0.125
    %v2663 = vmul.f32 %v2654, %v2654
    %v2664 = vsub.f32 %v2662, %v2663
    %v2665 = vmax.f32 %v2664, 0.0
    %v2666 = vld [vmem:[#allocation2 + $0x6] ss:$0 sm:$0xff]
    %v2667 = vld [vmem:[#allocation5 + $0x6] ss:$0 sm:$0xff]
    %v2668 = vsub.f32 %v2643, %v2654
    %v2669 = vadd.f32 %v2665, 1e-05
    %v2670 = vrsqrt.pop %v2669
    %v2671 = vmul.f32 %v2668, %v2670
    %v2672 = vmul.f32 %v2671, %v2666
    %v2673 = vadd.f32 %v2672, %v2667
    %v2674 = vtanh.pop %v2673
    %v2675 = vpack.c.bf16 %v2674, %v2674
    %v2676 = vld [vmem:[#allocation14] sm:$0xf]
    %v2677 = vld [vmem:[#allocation14 + $0x4] sm:$0xf]
    %v2678 = vld [vmem:[#allocation14 + $0x8] sm:$0xf]
    %v2679 = vld [vmem:[#allocation14 + $0xc] sm:$0xf]
    %v2680 = vld [vmem:[#allocation14 + $0x10] sm:$0xf]
    %v2681 = vld [vmem:[#allocation14 + $0x14] sm:$0xf]
    %v2682 = vld [vmem:[#allocation14 + $0x18] sm:$0xf]
    %v2683 = vld [vmem:[#allocation14 + $0x1c] sm:$0xf]
    %v2684 = vld [vmem:[#allocation14 + $0x20] sm:$0xf]
    %v2685 = vld [vmem:[#allocation14 + $0x24] sm:$0xf]
    %v2686 = vld [vmem:[#allocation14 + $0x28] sm:$0xf]
    %v2687 = vld [vmem:[#allocation14 + $0x2c] sm:$0xf]
    %v2688 = vld [vmem:[#allocation14 + $0x30] sm:$0xf]
    %v2689 = vld [vmem:[#allocation14 + $0x34] sm:$0xf]
    %v2690 = vld [vmem:[#allocation14 + $0x38] sm:$0xf]
    %v2691 = vld [vmem:[#allocation14 + $0x3c] sm:$0xf]
    %v2708 = vunpack.c.l.b16 %v2676
    %v2709 = vunpack.c.l.b16 %v2677
    %v2710 = vunpack.c.l.b16 %v2678
    %v2711 = vunpack.c.l.b16 %v2679
    %v2712 = vunpack.c.l.b16 %v2680
    %v2713 = vunpack.c.l.b16 %v2681
    %v2714 = vunpack.c.l.b16 %v2682
    %v2715 = vunpack.c.l.b16 %v2683
    %v2716 = vunpack.c.l.b16 %v2684
    %v2717 = vunpack.c.l.b16 %v2685
    %v2718 = vunpack.c.l.b16 %v2686
    %v2719 = vunpack.c.l.b16 %v2687
    %v2720 = vunpack.c.l.b16 %v2688
    %v2721 = vunpack.c.l.b16 %v2689
    %v2722 = vunpack.c.l.b16 %v2690
    %v2723 = vunpack.c.l.b16 %v2691
    %v2724 = vpack.c.b16 %v2709, %v2708
    %v2725 = vpack.c.b16 %v2711, %v2710
    %v2726 = vpack.c.b16 %v2713, %v2712
    %v2727 = vpack.c.b16 %v2715, %v2714
    %v2728 = vpack.c.b16 %v2717, %v2716
    %v2729 = vpack.c.b16 %v2719, %v2718
    %v2730 = vpack.c.b16 %v2721, %v2720
    %v2731 = vpack.c.b16 %v2723, %v2722
    %2740 = vmatprep.subr.bf16.mxu0 0
    %2741 = vmatpush1.bf16.msra.mxu0 %v2724
    %2742 = vmatprep.subr.bf16.mxu0 0
    %2743 = vmatpush1.bf16.msra.mxu0 %v2725
    %2744 = vmatprep.subr.bf16.mxu0 0
    %2745 = vmatpush1.bf16.msra.mxu0 %v2726
    %2746 = vmatprep.subr.bf16.mxu0 0
    %2747 = vmatpush1.bf16.msra.mxu0 %v2727
    %2748 = vmatprep.subr.bf16.mxu0 0
    %2749 = vmatpush1.bf16.msra.mxu0 %v2728
    %2750 = vmatprep.subr.bf16.mxu0 0
    %2751 = vmatpush1.bf16.msra.mxu0 %v2729
    %2752 = vmatprep.subr.bf16.mxu0 0
    %2753 = vmatpush1.bf16.msra.mxu0 %v2730
    %2754 = vmatprep.subr.bf16.mxu0 0
    %2755 = vmatpush1.bf16.msra.mxu0 %v2731
    %2756 = vmatprep.subr.bf16.mxu0 0
    %2757 = vmatpush1.bf16.msra.mxu0 0
    %2758 = vmatprep.subr.bf16.mxu0 0
    %2759 = vmatpush1.bf16.msra.mxu0 0
    %2760 = vmatprep.subr.bf16.mxu0 0
    %2761 = vmatpush1.bf16.msra.mxu0 0
    %2762 = vmatprep.subr.bf16.mxu0 0
    %2763 = vmatpush1.bf16.msra.mxu0 0
    %2764 = vmatprep.subr.bf16.mxu0 0
    %2765 = vmatpush1.bf16.msra.mxu0 0
    %2766 = vmatprep.subr.bf16.mxu0 0
    %2767 = vmatpush1.bf16.msra.mxu0 0
    %2768 = vmatprep.subr.bf16.mxu0 0
    %2769 = vmatpush1.bf16.msra.mxu0 0
    %2770 = vmatprep.subr.bf16.mxu0 0
    %2771 = vmatpush1.bf16.msra.mxu0 0
    %2772 = vmatprep.mubr.bf16.mxu0 0
    %2773 = vmatmul.mubr.bf16.gmra.mrb[0].mxu0 %v2675
    %v2774 = vpop.f32.mrb[0].mxu0
    %v2775 = vadd.f32 0.0, %v2774
    %v2776 = vpop.f32.mrb[0].mxu0
    %v2777 = vpop.f32.mrb[0].mxu0
    %v2778 = vpop.f32.mrb[0].mxu0
    %2779 = vdwg.mxu0
    %v2780 = vrot.slane %v2775, 4
    %v2781 = vadd.f32 %v2775, %v2780
    %v2782 = vrot.slane %v2781, 2
    %v2783 = vadd.f32 %v2781, %v2782
    %v2784 = vrot.slane %v2783, 1
    %v2785 = vadd.f32 %v2783, %v2784
    %v2786 = vmul.f32 %v2785, 0.125
    %v2787 = vmul.f32 %v2775, %v2775
    %v2788 = vrot.slane %v2787, 4
    %v2789 = vadd.f32 %v2787, %v2788
    %v2790 = vrot.slane %v2789, 2
    %v2791 = vadd.f32 %v2789, %v2790
    %v2792 = vrot.slane %v2791, 1
    %v2793 = vadd.f32 %v2791, %v2792
    %v2794 = vmul.f32 %v2793, 0.125
    %v2795 = vmul.f32 %v2786, %v2786
    %v2796 = vsub.f32 %v2794, %v2795
    %v2797 = vmax.f32 %v2796, 0.0
    %v2798 = vld [vmem:[#allocation2 + $0x7] ss:$0 sm:$0xff]
    %v2799 = vld [vmem:[#allocation5 + $0x7] ss:$0 sm:$0xff]
    %v2800 = vsub.f32 %v2775, %v2786
    %v2801 = vadd.f32 %v2797, 1e-05
    %v2802 = vrsqrt.pop %v2801
    %v2803 = vmul.f32 %v2800, %v2802
    %v2804 = vmul.f32 %v2803, %v2798
    %v2805 = vadd.f32 %v2804, %v2799
    %v2806 = vtanh.pop %v2805
    %v2807 = vpack.c.bf16 %v2806, %v2806
    %v2808 = vld [vmem:[#allocation16] sm:$0xff]
    %v2809 = vld [vmem:[#allocation16 + $0x8] sm:$0xff]
    %v2810 = vld [vmem:[#allocation16 + $0x10] sm:$0xff]
    %v2811 = vld [vmem:[#allocation16 + $0x18] sm:$0xff]
    %v2812 = vld [vmem:[#allocation16 + $0x20] sm:$0xff]
    %v2813 = vld [vmem:[#allocation16 + $0x28] sm:$0xff]
    %v2814 = vld [vmem:[#allocation16 + $0x30] sm:$0xff]
    %v2815 = vld [vmem:[#allocation16 + $0x38] sm:$0xff]
    %v2816 = vld [vmem:[#allocation16 + $0x40] sm:$0xff]
    %v2817 = vld [vmem:[#allocation16 + $0x48] sm:$0xff]
    %v2818 = vld [vmem:[#allocation16 + $0x50] sm:$0xff]
    %v2819 = vld [vmem:[#allocation16 + $0x58] sm:$0xff]
    %v2820 = vld [vmem:[#allocation16 + $0x60] sm:$0xff]
    %v2821 = vld [vmem:[#allocation16 + $0x68] sm:$0xff]
    %v2822 = vld [vmem:[#allocation16 + $0x70] sm:$0xff]
    %v2823 = vld [vmem:[#allocation16 + $0x78] sm:$0xff]
    %v2840 = vunpack.c.l.b16 %v2808
    %v2841 = vunpack.c.h.b16 %v2808
    %v2842 = vunpack.c.l.b16 %v2809
    %v2843 = vunpack.c.h.b16 %v2809
    %v2844 = vunpack.c.l.b16 %v2810
    %v2845 = vunpack.c.h.b16 %v2810
    %v2846 = vunpack.c.l.b16 %v2811
    %v2847 = vunpack.c.h.b16 %v2811
    %v2848 = vunpack.c.l.b16 %v2812
    %v2849 = vunpack.c.h.b16 %v2812
    %v2850 = vunpack.c.l.b16 %v2813
    %v2851 = vunpack.c.h.b16 %v2813
    %v2852 = vunpack.c.l.b16 %v2814
    %v2853 = vunpack.c.h.b16 %v2814
    %v2854 = vunpack.c.l.b16 %v2815
    %v2855 = vunpack.c.h.b16 %v2815
    %v2856 = vunpack.c.l.b16 %v2816
    %v2857 = vunpack.c.h.b16 %v2816
    %v2858 = vunpack.c.l.b16 %v2817
    %v2859 = vunpack.c.h.b16 %v2817
    %v2860 = vunpack.c.l.b16 %v2818
    %v2861 = vunpack.c.h.b16 %v2818
    %v2862 = vunpack.c.l.b16 %v2819
    %v2863 = vunpack.c.h.b16 %v2819
    %v2864 = vunpack.c.l.b16 %v2820
    %v2865 = vunpack.c.h.b16 %v2820
    %v2866 = vunpack.c.l.b16 %v2821
    %v2867 = vunpack.c.h.b16 %v2821
    %v2868 = vunpack.c.l.b16 %v2822
    %v2869 = vunpack.c.h.b16 %v2822
    %v2870 = vunpack.c.l.b16 %v2823
    %v2871 = vunpack.c.h.b16 %v2823
    %v2872 = vpack.c.b16 %v2842, %v2840
    %v2873 = vpack.c.b16 %v2843, %v2841
    %v2874 = vpack.c.b16 %v2846, %v2844
    %v2875 = vpack.c.b16 %v2847, %v2845
    %v2876 = vpack.c.b16 %v2850, %v2848
    %v2877 = vpack.c.b16 %v2851, %v2849
    %v2878 = vpack.c.b16 %v2854, %v2852
    %v2879 = vpack.c.b16 %v2855, %v2853
    %v2880 = vpack.c.b16 %v2858, %v2856
    %v2881 = vpack.c.b16 %v2859, %v2857
    %v2882 = vpack.c.b16 %v2862, %v2860
    %v2883 = vpack.c.b16 %v2863, %v2861
    %v2884 = vpack.c.b16 %v2866, %v2864
    %v2885 = vpack.c.b16 %v2867, %v2865
    %v2886 = vpack.c.b16 %v2870, %v2868
    %v2887 = vpack.c.b16 %v2871, %v2869
    %2904 = vmatprep.subr.bf16.mxu0 %v2873
    %2905 = vmatpush1.bf16.msra.mxu0 %v2872
    %2906 = vmatprep.subr.bf16.mxu0 %v2875
    %2907 = vmatpush1.bf16.msra.mxu0 %v2874
    %2908 = vmatprep.subr.bf16.mxu0 %v2877
    %2909 = vmatpush1.bf16.msra.mxu0 %v2876
    %2910 = vmatprep.subr.bf16.mxu0 %v2879
    %2911 = vmatpush1.bf16.msra.mxu0 %v2878
    %2912 = vmatprep.subr.bf16.mxu0 %v2881
    %2913 = vmatpush1.bf16.msra.mxu0 %v2880
    %2914 = vmatprep.subr.bf16.mxu0 %v2883
    %2915 = vmatpush1.bf16.msra.mxu0 %v2882
    %2916 = vmatprep.subr.bf16.mxu0 %v2885
    %2917 = vmatpush1.bf16.msra.mxu0 %v2884
    %2918 = vmatprep.subr.bf16.mxu0 %v2887
    %2919 = vmatpush1.bf16.msra.mxu0 %v2886
    %2920 = vmatprep.subr.bf16.mxu0 0
    %2921 = vmatpush1.bf16.msra.mxu0 0
    %2922 = vmatprep.subr.bf16.mxu0 0
    %2923 = vmatpush1.bf16.msra.mxu0 0
    %2924 = vmatprep.subr.bf16.mxu0 0
    %2925 = vmatpush1.bf16.msra.mxu0 0
    %2926 = vmatprep.subr.bf16.mxu0 0
    %2927 = vmatpush1.bf16.msra.mxu0 0
    %2928 = vmatprep.subr.bf16.mxu0 0
    %2929 = vmatpush1.bf16.msra.mxu0 0
    %2930 = vmatprep.subr.bf16.mxu0 0
    %2931 = vmatpush1.bf16.msra.mxu0 0
    %2932 = vmatprep.subr.bf16.mxu0 0
    %2933 = vmatpush1.bf16.msra.mxu0 0
    %2934 = vmatprep.subr.bf16.mxu0 0
    %2935 = vmatpush1.bf16.msra.mxu0 0
    %2936 = vmatprep.mubr.bf16.mxu0 0
    %2937 = vmatmul.mubr.bf16.gmra.mrb[0].mxu0 %v2807
    %v2938 = vpop.f32.mrb[0].mxu0
    %v2939 = vadd.f32 0.0, %v2938
    %v2940 = vpop.f32.mrb[0].mxu0
    %v2941 = vadd.f32 0.0, %v2940
    %v2942 = vpop.f32.mrb[0].mxu0
    %v2943 = vpop.f32.mrb[0].mxu0
    %2944 = vdwg.mxu0
    %v2945 = vrot.slane %v2939, 4
    %v2946 = vadd.f32 %v2939, %v2945
    %v2947 = vrot.slane %v2946, 2
    %v2948 = vadd.f32 %v2946, %v2947
    %v2949 = vrot.slane %v2948, 1
    %v2950 = vadd.f32 %v2948, %v2949
    %v2951 = vrot.slane %v2941, 4
    %v2952 = vadd.f32 %v2941, %v2951
    %v2953 = vrot.slane %v2952, 2
    %v2954 = vadd.f32 %v2952, %v2953
    %v2955 = vrot.slane %v2954, 1
    %v2956 = vadd.f32 %v2954, %v2955
    %v2957 = vmul.f32 %v2950, 0.125
    %v2958 = vmul.f32 %v2956, 0.125
    %v2959 = vmul.f32 %v2939, %v2939
    %v2960 = vmul.f32 %v2941, %v2941
    %v2961 = vrot.slane %v2959, 4
    %v2962 = vadd.f32 %v2959, %v2961
    %v2963 = vrot.slane %v2962, 2
    %v2964 = vadd.f32 %v2962, %v2963
    %v2965 = vrot.slane %v2964, 1
    %v2966 = vadd.f32 %v2964, %v2965
    %v2967 = vrot.slane %v2960, 4
    %v2968 = vadd.f32 %v2960, %v2967
    %v2969 = vrot.slane %v2968, 2
    %v2970 = vadd.f32 %v2968, %v2969
    %v2971 = vrot.slane %v2970, 1
    %v2972 = vadd.f32 %v2970, %v2971
    %v2973 = vmul.f32 %v2966, 0.125
    %v2974 = vmul.f32 %v2972, 0.125
    %v2975 = vmul.f32 %v2957, %v2957
    %v2976 = vmul.f32 %v2958, %v2958
    %v2977 = vsub.f32 %v2973, %v2975
    %v2978 = vsub.f32 %v2974, %v2976
    %v2979 = vmax.f32 %v2977, 0.0
    %v2980 = vmax.f32 %v2978, 0.0
    %s2981 = scalar_lea.vmem [#allocation2], 24
    %v2982 = vld [vmem:[%s2981] ss:$8 sm:$0x3]
    %s2983 = scalar_lea.vmem [#allocation5], 24
    %v2984 = vld [vmem:[%s2983] ss:$8 sm:$0x3]
    %v2985 = vsub.f32 %v2939, %v2957
    %v2986 = vsub.f32 %v2941, %v2958
    %v2987 = vadd.f32 %v2979, 1e-05
    %v2988 = vadd.f32 %v2980, 1e-05
    %v2989 = vrsqrt.pop %v2987
    %v2990 = vrsqrt.pop %v2988
    %v2991 = vmul.f32 %v2985, %v2989
    %v2992 = vmul.f32 %v2986, %v2990
    %v2994 = vlaneseq
    %v2995 = vshrl.u32 %v2994, 7
    %v2996 = vsub.s32 0, %v2995
    %v2997 = vrot.slane %v2982, %v2996
    %v2998 = vlaneseq
    %v2999 = vshrl.u32 %v2998, 7
    %v3000 = vsub.s32 1, %v2999
    %v3001 = vrot.slane %v2982, %v3000
    %v3004 = vmul.f32 %v2991, %v2997
    %v3005 = vmul.f32 %v2992, %v3001
    %v3007 = vlaneseq
    %v3008 = vshrl.u32 %v3007, 7
    %v3009 = vsub.s32 0, %v3008
    %v3010 = vrot.slane %v2984, %v3009
    %v3011 = vlaneseq
    %v3012 = vshrl.u32 %v3011, 7
    %v3013 = vsub.s32 1, %v3012
    %v3014 = vrot.slane %v2984, %v3013
    %v3017 = vadd.f32 %v3004, %v3010
    %v3018 = vadd.f32 %v3005, %v3014
    %v3019 = vpack.c.bf16 %v1850, %v1850
    %v3020 = vpack.c.bf16 %v1851, %v1851
    %v3021 = vld [vmem:[#allocation17] sm:$0xff]
    %v3022 = vld [vmem:[#allocation17 + $0x8] sm:$0xff]
    %v3023 = vld [vmem:[#allocation17 + $0x10] sm:$0xff]
    %v3024 = vld [vmem:[#allocation17 + $0x18] sm:$0xff]
    %v3025 = vld [vmem:[#allocation17 + $0x20] sm:$0xff]
    %v3026 = vld [vmem:[#allocation17 + $0x28] sm:$0xff]
    %v3027 = vld [vmem:[#allocation17 + $0x30] sm:$0xff]
    %v3028 = vld [vmem:[#allocation17 + $0x38] sm:$0xff]
    %v3029 = vld [vmem:[#allocation17 + $0x40] sm:$0xff]
    %v3030 = vld [vmem:[#allocation17 + $0x48] sm:$0xff]
    %v3031 = vld [vmem:[#allocation17 + $0x50] sm:$0xff]
    %v3032 = vld [vmem:[#allocation17 + $0x58] sm:$0xff]
    %v3033 = vld [vmem:[#allocation17 + $0x60] sm:$0xff]
    %v3034 = vld [vmem:[#allocation17 + $0x68] sm:$0xff]
    %v3035 = vld [vmem:[#allocation17 + $0x70] sm:$0xff]
    %v3036 = vld [vmem:[#allocation17 + $0x78] sm:$0xff]
    %v3037 = vld [vmem:[#allocation17 + $0x80] sm:$0xff]
    %v3038 = vld [vmem:[#allocation17 + $0x88] sm:$0xff]
    %v3039 = vld [vmem:[#allocation17 + $0x90] sm:$0xff]
    %v3040 = vld [vmem:[#allocation17 + $0x98] sm:$0xff]
    %v3041 = vld [vmem:[#allocation17 + $0xa0] sm:$0xff]
    %v3042 = vld [vmem:[#allocation17 + $0xa8] sm:$0xff]
    %v3043 = vld [vmem:[#allocation17 + $0xb0] sm:$0xff]
    %v3044 = vld [vmem:[#allocation17 + $0xb8] sm:$0xff]
    %v3045 = vld [vmem:[#allocation17 + $0xc0] sm:$0xff]
    %v3046 = vld [vmem:[#allocation17 + $0xc8] sm:$0xff]
    %v3047 = vld [vmem:[#allocation17 + $0xd0] sm:$0xff]
    %v3048 = vld [vmem:[#allocation17 + $0xd8] sm:$0xff]
    %v3049 = vld [vmem:[#allocation17 + $0xe0] sm:$0xff]
    %v3050 = vld [vmem:[#allocation17 + $0xe8] sm:$0xff]
    %v3051 = vld [vmem:[#allocation17 + $0xf0] sm:$0xff]
    %v3052 = vld [vmem:[#allocation17 + $0xf8] sm:$0xff]
    %v3085 = vunpack.c.l.b16 %v3021
    %v3086 = vunpack.c.h.b16 %v3021
    %v3087 = vunpack.c.l.b16 %v3022
    %v3088 = vunpack.c.h.b16 %v3022
    %v3089 = vunpack.c.l.b16 %v3023
    %v3090 = vunpack.c.h.b16 %v3023
    %v3091 = vunpack.c.l.b16 %v3024
    %v3092 = vunpack.c.h.b16 %v3024
    %v3093 = vunpack.c.l.b16 %v3025
    %v3094 = vunpack.c.h.b16 %v3025
    %v3095 = vunpack.c.l.b16 %v3026
    %v3096 = vunpack.c.h.b16 %v3026
    %v3097 = vunpack.c.l.b16 %v3027
    %v3098 = vunpack.c.h.b16 %v3027
    %v3099 = vunpack.c.l.b16 %v3028
    %v3100 = vunpack.c.h.b16 %v3028
    %v3101 = vunpack.c.l.b16 %v3029
    %v3102 = vunpack.c.h.b16 %v3029
    %v3103 = vunpack.c.l.b16 %v3030
    %v3104 = vunpack.c.h.b16 %v3030
    %v3105 = vunpack.c.l.b16 %v3031
    %v3106 = vunpack.c.h.b16 %v3031
    %v3107 = vunpack.c.l.b16 %v3032
    %v3108 = vunpack.c.h.b16 %v3032
    %v3109 = vunpack.c.l.b16 %v3033
    %v3110 = vunpack.c.h.b16 %v3033
    %v3111 = vunpack.c.l.b16 %v3034
    %v3112 = vunpack.c.h.b16 %v3034
    %v3113 = vunpack.c.l.b16 %v3035
    %v3114 = vunpack.c.h.b16 %v3035
    %v3115 = vunpack.c.l.b16 %v3036
    %v3116 = vunpack.c.h.b16 %v3036
    %v3117 = vunpack.c.l.b16 %v3037
    %v3118 = vunpack.c.h.b16 %v3037
    %v3119 = vunpack.c.l.b16 %v3038
    %v3120 = vunpack.c.h.b16 %v3038
    %v3121 = vunpack.c.l.b16 %v3039
    %v3122 = vunpack.c.h.b16 %v3039
    %v3123 = vunpack.c.l.b16 %v3040
    %v3124 = vunpack.c.h.b16 %v3040
    %v3125 = vunpack.c.l.b16 %v3041
    %v3126 = vunpack.c.h.b16 %v3041
    %v3127 = vunpack.c.l.b16 %v3042
    %v3128 = vunpack.c.h.b16 %v3042
    %v3129 = vunpack.c.l.b16 %v3043
    %v3130 = vunpack.c.h.b16 %v3043
    %v3131 = vunpack.c.l.b16 %v3044
    %v3132 = vunpack.c.h.b16 %v3044
    %v3133 = vunpack.c.l.b16 %v3045
    %v3134 = vunpack.c.h.b16 %v3045
    %v3135 = vunpack.c.l.b16 %v3046
    %v3136 = vunpack.c.h.b16 %v3046
    %v3137 = vunpack.c.l.b16 %v3047
    %v3138 = vunpack.c.h.b16 %v3047
    %v3139 = vunpack.c.l.b16 %v3048
    %v3140 = vunpack.c.h.b16 %v3048
    %v3141 = vunpack.c.l.b16 %v3049
    %v3142 = vunpack.c.h.b16 %v3049
    %v3143 = vunpack.c.l.b16 %v3050
    %v3144 = vunpack.c.h.b16 %v3050
    %v3145 = vunpack.c.l.b16 %v3051
    %v3146 = vunpack.c.h.b16 %v3051
    %v3147 = vunpack.c.l.b16 %v3052
    %v3148 = vunpack.c.h.b16 %v3052
    %v3149 = vpack.c.b16 %v3087, %v3085
    %v3150 = vpack.c.b16 %v3088, %v3086
    %v3151 = vpack.c.b16 %v3091, %v3089
    %v3152 = vpack.c.b16 %v3092, %v3090
    %v3153 = vpack.c.b16 %v3095, %v3093
    %v3154 = vpack.c.b16 %v3096, %v3094
    %v3155 = vpack.c.b16 %v3099, %v3097
    %v3156 = vpack.c.b16 %v3100, %v3098
    %v3157 = vpack.c.b16 %v3103, %v3101
    %v3158 = vpack.c.b16 %v3104, %v3102
    %v3159 = vpack.c.b16 %v3107, %v3105
    %v3160 = vpack.c.b16 %v3108, %v3106
    %v3161 = vpack.c.b16 %v3111, %v3109
    %v3162 = vpack.c.b16 %v3112, %v3110
    %v3163 = vpack.c.b16 %v3115, %v3113
    %v3164 = vpack.c.b16 %v3116, %v3114
    %v3165 = vpack.c.b16 %v3119, %v3117
    %v3166 = vpack.c.b16 %v3120, %v3118
    %v3167 = vpack.c.b16 %v3123, %v3121
    %v3168 = vpack.c.b16 %v3124, %v3122
    %v3169 = vpack.c.b16 %v3127, %v3125
    %v3170 = vpack.c.b16 %v3128, %v3126
    %v3171 = vpack.c.b16 %v3131, %v3129
    %v3172 = vpack.c.b16 %v3132, %v3130
    %v3173 = vpack.c.b16 %v3135, %v3133
    %v3174 = vpack.c.b16 %v3136, %v3134
    %v3175 = vpack.c.b16 %v3139, %v3137
    %v3176 = vpack.c.b16 %v3140, %v3138
    %v3177 = vpack.c.b16 %v3143, %v3141
    %v3178 = vpack.c.b16 %v3144, %v3142
    %v3179 = vpack.c.b16 %v3147, %v3145
    %v3180 = vpack.c.b16 %v3148, %v3146
    %3213 = vmatprep.subr.bf16.mxu0 %v3150
    %3214 = vmatpush1.bf16.msra.mxu0 %v3149
    %3215 = vmatprep.subr.bf16.mxu0 %v3152
    %3216 = vmatpush1.bf16.msra.mxu0 %v3151
    %3217 = vmatprep.subr.bf16.mxu0 %v3154
    %3218 = vmatpush1.bf16.msra.mxu0 %v3153
    %3219 = vmatprep.subr.bf16.mxu0 %v3156
    %3220 = vmatpush1.bf16.msra.mxu0 %v3155
    %3221 = vmatprep.subr.bf16.mxu0 %v3158
    %3222 = vmatpush1.bf16.msra.mxu0 %v3157
    %3223 = vmatprep.subr.bf16.mxu0 %v3160
    %3224 = vmatpush1.bf16.msra.mxu0 %v3159
    %3225 = vmatprep.subr.bf16.mxu0 %v3162
    %3226 = vmatpush1.bf16.msra.mxu0 %v3161
    %3227 = vmatprep.subr.bf16.mxu0 %v3164
    %3228 = vmatpush1.bf16.msra.mxu0 %v3163
    %3229 = vmatprep.subr.bf16.mxu0 %v3166
    %3230 = vmatpush1.bf16.msra.mxu0 %v3165
    %3231 = vmatprep.subr.bf16.mxu0 %v3168
    %3232 = vmatpush1.bf16.msra.mxu0 %v3167
    %3233 = vmatprep.subr.bf16.mxu0 %v3170
    %3234 = vmatpush1.bf16.msra.mxu0 %v3169
    %3235 = vmatprep.subr.bf16.mxu0 %v3172
    %3236 = vmatpush1.bf16.msra.mxu0 %v3171
    %3237 = vmatprep.subr.bf16.mxu0 %v3174
    %3238 = vmatpush1.bf16.msra.mxu0 %v3173
    %3239 = vmatprep.subr.bf16.mxu0 %v3176
    %3240 = vmatpush1.bf16.msra.mxu0 %v3175
    %3241 = vmatprep.subr.bf16.mxu0 %v3178
    %3242 = vmatpush1.bf16.msra.mxu0 %v3177
    %3243 = vmatprep.subr.bf16.mxu0 %v3180
    %3244 = vmatpush1.bf16.msra.mxu0 %v3179
    %3245 = vmatprep.mubr.bf16.mxu0 %v3020
    %3246 = vmatmul.mubr.bf16.gmra.mrb[0].mxu0 %v3019
    %v3247 = vpop.f32.mrb[0].mxu0
    %v3248 = vadd.f32 0.0, %v3247
    %v3249 = vpop.f32.mrb[0].mxu0
    %v3250 = vadd.f32 0.0, %v3249
    %v3251 = vpop.f32.mrb[0].mxu0
    %v3252 = vpop.f32.mrb[0].mxu0
    %3253 = vdwg.mxu0
    %v3254 = vrot.slane %v3248, 4
    %v3255 = vadd.f32 %v3248, %v3254
    %v3256 = vrot.slane %v3255, 2
    %v3257 = vadd.f32 %v3255, %v3256
    %v3258 = vrot.slane %v3257, 1
    %v3259 = vadd.f32 %v3257, %v3258
    %v3260 = vrot.slane %v3250, 4
    %v3261 = vadd.f32 %v3250, %v3260
    %v3262 = vrot.slane %v3261, 2
    %v3263 = vadd.f32 %v3261, %v3262
    %v3264 = vrot.slane %v3263, 1
    %v3265 = vadd.f32 %v3263, %v3264
    %v3266 = vmul.f32 %v3259, 0.125
    %v3267 = vmul.f32 %v3265, 0.125
    %v3268 = vmul.f32 %v3248, %v3248
    %v3269 = vmul.f32 %v3250, %v3250
    %v3270 = vrot.slane %v3268, 4
    %v3271 = vadd.f32 %v3268, %v3270
    %v3272 = vrot.slane %v3271, 2
    %v3273 = vadd.f32 %v3271, %v3272
    %v3274 = vrot.slane %v3273, 1
    %v3275 = vadd.f32 %v3273, %v3274
    %v3276 = vrot.slane %v3269, 4
    %v3277 = vadd.f32 %v3269, %v3276
    %v3278 = vrot.slane %v3277, 2
    %v3279 = vadd.f32 %v3277, %v3278
    %v3280 = vrot.slane %v3279, 1
    %v3281 = vadd.f32 %v3279, %v3280
    %v3282 = vmul.f32 %v3275, 0.125
    %v3283 = vmul.f32 %v3281, 0.125
    %v3284 = vmul.f32 %v3266, %v3266
    %v3285 = vmul.f32 %v3267, %v3267
    %v3286 = vsub.f32 %v3282, %v3284
    %v3287 = vsub.f32 %v3283, %v3285
    %v3288 = vmax.f32 %v3286, 0.0
    %v3289 = vmax.f32 %v3287, 0.0
    %s3290 = scalar_lea.vmem [#allocation2], 25
    %v3291 = vld [vmem:[%s3290] ss:$8 sm:$0x3]
    %s3292 = scalar_lea.vmem [#allocation5], 25
    %v3293 = vld [vmem:[%s3292] ss:$8 sm:$0x3]
    %v3294 = vsub.f32 %v3248, %v3266
    %v3295 = vsub.f32 %v3250, %v3267
    %v3296 = vadd.f32 %v3288, 1e-05
    %v3297 = vadd.f32 %v3289, 1e-05
    %v3298 = vrsqrt.pop %v3296
    %v3299 = vrsqrt.pop %v3297
    %v3300 = vmul.f32 %v3294, %v3298
    %v3301 = vmul.f32 %v3295, %v3299
    %v3303 = vlaneseq
    %v3304 = vshrl.u32 %v3303, 7
    %v3305 = vsub.s32 0, %v3304
    %v3306 = vrot.slane %v3291, %v3305
    %v3307 = vlaneseq
    %v3308 = vshrl.u32 %v3307, 7
    %v3309 = vsub.s32 1, %v3308
    %v3310 = vrot.slane %v3291, %v3309
    %v3313 = vmul.f32 %v3300, %v3306
    %v3314 = vmul.f32 %v3301, %v3310
    %v3316 = vlaneseq
    %v3317 = vshrl.u32 %v3316, 7
    %v3318 = vsub.s32 0, %v3317
    %v3319 = vrot.slane %v3293, %v3318
    %v3320 = vlaneseq
    %v3321 = vshrl.u32 %v3320, 7
    %v3322 = vsub.s32 1, %v3321
    %v3323 = vrot.slane %v3293, %v3322
    %v3326 = vadd.f32 %v3313, %v3319
    %v3327 = vadd.f32 %v3314, %v3323
    %v3328 = vtanh.pop %v3326
    %v3329 = vtanh.pop %v3327
    %v3330 = vpack.c.bf16 %v3328, %v3328
    %v3331 = vpack.c.bf16 %v3329, %v3329
    %v3332 = vld [vmem:[%s14] sm:$0xf]
    %v3333 = vld [vmem:[%s14 + $0x4] sm:$0xf]
    %v3334 = vld [vmem:[%s14 + $0x8] sm:$0xf]
    %v3335 = vld [vmem:[%s14 + $0xc] sm:$0xf]
    %v3336 = vld [vmem:[%s14 + $0x10] sm:$0xf]
    %v3337 = vld [vmem:[%s14 + $0x14] sm:$0xf]
    %v3338 = vld [vmem:[%s14 + $0x18] sm:$0xf]
    %v3339 = vld [vmem:[%s14 + $0x1c] sm:$0xf]
    %v3340 = vld [vmem:[%s14 + $0x20] sm:$0xf]
    %v3341 = vld [vmem:[%s14 + $0x24] sm:$0xf]
    %v3342 = vld [vmem:[%s14 + $0x28] sm:$0xf]
    %v3343 = vld [vmem:[%s14 + $0x2c] sm:$0xf]
    %v3344 = vld [vmem:[%s14 + $0x30] sm:$0xf]
    %v3345 = vld [vmem:[%s14 + $0x34] sm:$0xf]
    %v3346 = vld [vmem:[%s14 + $0x38] sm:$0xf]
    %v3347 = vld [vmem:[%s14 + $0x3c] sm:$0xf]
    %v3348 = vld [vmem:[%s14 + $0x40] sm:$0xf]
    %v3349 = vld [vmem:[%s14 + $0x44] sm:$0xf]
    %v3350 = vld [vmem:[%s14 + $0x48] sm:$0xf]
    %v3351 = vld [vmem:[%s14 + $0x4c] sm:$0xf]
    %v3352 = vld [vmem:[%s14 + $0x50] sm:$0xf]
    %v3353 = vld [vmem:[%s14 + $0x54] sm:$0xf]
    %v3354 = vld [vmem:[%s14 + $0x58] sm:$0xf]
    %v3355 = vld [vmem:[%s14 + $0x5c] sm:$0xf]
    %v3356 = vld [vmem:[%s14 + $0x60] sm:$0xf]
    %v3357 = vld [vmem:[%s14 + $0x64] sm:$0xf]
    %v3358 = vld [vmem:[%s14 + $0x68] sm:$0xf]
    %v3359 = vld [vmem:[%s14 + $0x6c] sm:$0xf]
    %v3360 = vld [vmem:[%s14 + $0x70] sm:$0xf]
    %v3361 = vld [vmem:[%s14 + $0x74] sm:$0xf]
    %v3362 = vld [vmem:[%s14 + $0x78] sm:$0xf]
    %v3363 = vld [vmem:[%s14 + $0x7c] sm:$0xf]
    %v3364 = vld [vmem:[%s15] sm:$0x1]
    %v3366 = vlaneseq
    %v3367 = vshrl.u32 %v3366, 7
    %v3368 = vsub.s32 0, %v3367
    %v3369 = vrot.slane %v3364, %v3368
    %v3403 = vunpack.c.l.b16 %v3332
    %v3404 = vunpack.c.l.b16 %v3333
    %v3405 = vunpack.c.l.b16 %v3334
    %v3406 = vunpack.c.l.b16 %v3335
    %v3407 = vunpack.c.l.b16 %v3336
    %v3408 = vunpack.c.l.b16 %v3337
    %v3409 = vunpack.c.l.b16 %v3338
    %v3410 = vunpack.c.l.b16 %v3339
    %v3411 = vunpack.c.l.b16 %v3340
    %v3412 = vunpack.c.l.b16 %v3341
    %v3413 = vunpack.c.l.b16 %v3342
    %v3414 = vunpack.c.l.b16 %v3343
    %v3415 = vunpack.c.l.b16 %v3344
    %v3416 = vunpack.c.l.b16 %v3345
    %v3417 = vunpack.c.l.b16 %v3346
    %v3418 = vunpack.c.l.b16 %v3347
    %v3419 = vunpack.c.l.b16 %v3348
    %v3420 = vunpack.c.l.b16 %v3349
    %v3421 = vunpack.c.l.b16 %v3350
    %v3422 = vunpack.c.l.b16 %v3351
    %v3423 = vunpack.c.l.b16 %v3352
    %v3424 = vunpack.c.l.b16 %v3353
    %v3425 = vunpack.c.l.b16 %v3354
    %v3426 = vunpack.c.l.b16 %v3355
    %v3427 = vunpack.c.l.b16 %v3356
    %v3428 = vunpack.c.l.b16 %v3357
    %v3429 = vunpack.c.l.b16 %v3358
    %v3430 = vunpack.c.l.b16 %v3359
    %v3431 = vunpack.c.l.b16 %v3360
    %v3432 = vunpack.c.l.b16 %v3361
    %v3433 = vunpack.c.l.b16 %v3362
    %v3434 = vunpack.c.l.b16 %v3363
    %v3435 = vpack.c.b16 %v3404, %v3403
    %v3436 = vpack.c.b16 %v3406, %v3405
    %v3437 = vpack.c.b16 %v3408, %v3407
    %v3438 = vpack.c.b16 %v3410, %v3409
    %v3439 = vpack.c.b16 %v3412, %v3411
    %v3440 = vpack.c.b16 %v3414, %v3413
    %v3441 = vpack.c.b16 %v3416, %v3415
    %v3442 = vpack.c.b16 %v3418, %v3417
    %v3443 = vpack.c.b16 %v3420, %v3419
    %v3444 = vpack.c.b16 %v3422, %v3421
    %v3445 = vpack.c.b16 %v3424, %v3423
    %v3446 = vpack.c.b16 %v3426, %v3425
    %v3447 = vpack.c.b16 %v3428, %v3427
    %v3448 = vpack.c.b16 %v3430, %v3429
    %v3449 = vpack.c.b16 %v3432, %v3431
    %v3450 = vpack.c.b16 %v3434, %v3433
    %3467 = vmatprep.subr.bf16.mxu0 0
    %3468 = vmatpush1.bf16.msra.mxu0 %v3435
    %3469 = vmatprep.subr.bf16.mxu0 0
    %3470 = vmatpush1.bf16.msra.mxu0 %v3436
    %3471 = vmatprep.subr.bf16.mxu0 0
    %3472 = vmatpush1.bf16.msra.mxu0 %v3437
    %3473 = vmatprep.subr.bf16.mxu0 0
    %3474 = vmatpush1.bf16.msra.mxu0 %v3438
    %3475 = vmatprep.subr.bf16.mxu0 0
    %3476 = vmatpush1.bf16.msra.mxu0 %v3439
    %3477 = vmatprep.subr.bf16.mxu0 0
    %3478 = vmatpush1.bf16.msra.mxu0 %v3440
    %3479 = vmatprep.subr.bf16.mxu0 0
    %3480 = vmatpush1.bf16.msra.mxu0 %v3441
    %3481 = vmatprep.subr.bf16.mxu0 0
    %3482 = vmatpush1.bf16.msra.mxu0 %v3442
    %3483 = vmatprep.subr.bf16.mxu0 0
    %3484 = vmatpush1.bf16.msra.mxu0 %v3443
    %3485 = vmatprep.subr.bf16.mxu0 0
    %3486 = vmatpush1.bf16.msra.mxu0 %v3444
    %3487 = vmatprep.subr.bf16.mxu0 0
    %3488 = vmatpush1.bf16.msra.mxu0 %v3445
    %3489 = vmatprep.subr.bf16.mxu0 0
    %3490 = vmatpush1.bf16.msra.mxu0 %v3446
    %3491 = vmatprep.subr.bf16.mxu0 0
    %3492 = vmatpush1.bf16.msra.mxu0 %v3447
    %3493 = vmatprep.subr.bf16.mxu0 0
    %3494 = vmatpush1.bf16.msra.mxu0 %v3448
    %3495 = vmatprep.subr.bf16.mxu0 0
    %3496 = vmatpush1.bf16.msra.mxu0 %v3449
    %3497 = vmatprep.subr.bf16.mxu0 0
    %3498 = vmatpush1.bf16.msra.mxu0 %v3450
    %3499 = vmatprep.mubr.bf16.mxu0 %v3331
    %3500 = vmatmul.mubr.bf16.gmra.mrb[0].mxu0 %v3330
    %v3501 = vpop.f32.mrb[0].mxu0
    %v3502 = vadd.f32 %v3369, %v3501
    %v3503 = vpop.f32.mrb[0].mxu0
    %v3504 = vpop.f32.mrb[0].mxu0
    %v3505 = vpop.f32.mrb[0].mxu0
    %3506 = vdwg.mxu0
    %vm3507 = vcmp.eq.s32.totalorder %v241, 126
    %vm3508 = vcmp.eq.s32.totalorder %v241, 127
    %v3509 = vsel %vm3508, %v2542, %v1080
    %v3510 = vsel %vm3507, %v1498, %v3509
    %3511 = vst [vmem:[%s20] sm:$0xff] %v1073
    %3512 = vst [vmem:[%s20 + $0x8] sm:$0xff] %v1074
    %3513 = vst [vmem:[%s20 + $0x10] sm:$0xff] %v3510
    %3514 = vst [vmem:[%s20 + $0x18] sm:$0xff] %v1484
    %3515 = vst [vmem:[%s20 + $0x20] sm:$0xff] %v2114
    %3516 = vst [vmem:[%s20 + $0x28] sm:$0xff] %v2124
    %3517 = vst [vmem:[%s20 + $0x30] sm:$0xff] %v2528
    %3518 = vst [vmem:[%s20 + $0x38] sm:$0xff] %v3017
    %3519 = vst [vmem:[%s20 + $0x40] sm:$0xff] %v3018
    %3520 = vst [vmem:[%s20 + $0x48] sm:$0xff] %v3502
    // Predicated region
    $region134: #{forward.3} parent=1 // pred_check
      _
    $region135: #{forward.3} parent=1 // pred_check_branch
      %3522 = sbr.rel (0) target = $region137
    $region136: #{forward.3} parent=1 // pred_region
      _
    $region137: #{forward.3} parent=1 // pred_fallthru
      _
    // Predicated region
    $region138: #{forward.3} parent=1 // pred_check
      _
    $region139: #{forward.3} parent=1 // pred_check_branch
      %3524 = sbr.rel (0) target = $region141
    $region140: #{forward.3} parent=1 // pred_region
      _
    $region141: #{forward.3} parent=1 // pred_fallthru
      _
    %3525 = vsyncpa [#allocation3], 1
    %3526 = vsyncpa [#allocation6], 1
    %3527 = vsyncpa [#allocation9], 1
    %3528 = vsyncpa [#allocation12], 1
    %3529 = vsyncpa [#allocation15], 1
    %3530 = vsyncpa [#allocation18], 1
    %3531 = vsyncpa [#allocation4], 1
    %3532 = vsyncpa [#allocation21], 1

</llo_original>
